<compile_context>
chip_gen: v6e
topology: v6e:2x2x1
jax: 0.10.0
libtpu: 0.0.40
codegen_flags: <defaults>
</compile_context>

<pallas_src>
import jax
import jax.numpy as jnp
from jax.experimental import pallas as pl
from jax.experimental.pallas import tpu as pltpu


def _round_up(x, m):
    return (x + m - 1) // m * m


def _conv_out_hw(h):
    return (h - 1) // 2 + 1            # k=3, s=2, p=1


# ---------------------------------------------------------------------------
# Pallas kernels
# ---------------------------------------------------------------------------
def conv3x3s2_relu_kernel(t_ref, w_ref, b_ref, o_ref):
    # t: (9, 1, M, C) bf16   w: (9, C, Np) bf16   b: (1, Np) f32   o: (1, M, Np) bf16
    m, np_ = o_ref.shape[1], o_ref.shape[2]
    acc = jnp.zeros((m, np_), jnp.float32)
    for j in range(9):                                    # 9 shifted taps == 3x3 kernel
        acc += jnp.dot(t_ref[j, 0], w_ref[j], preferred_element_type=jnp.float32)
    o_ref[0] = jnp.maximum(acc + b_ref[...], 0.0).astype(o_ref.dtype)


def conv3_pool_fc_tanh_kernel(t_ref, w_ref, b_ref, wfc_ref, bfc_ref, o_ref):
    # Fused conv3 + global average pool + Linear + tanh (one image per grid step).
    # t: (9, 1, M, C) bf16  w: (9, C, Np) bf16  b: (1, Np) f32
    # wfc: (Np, OUTp) bf16  bfc: (1, OUTp) f32  o: (1, 1, OUTp) f32
    m, np_ = t_ref.shape[2], w_ref.shape[2]
    acc = jnp.zeros((m, np_), jnp.float32)
    for j in range(9):
        acc += jnp.dot(t_ref[j, 0], w_ref[j], preferred_element_type=jnp.float32)
    feat = jnp.maximum(acc + b_ref[...], 0.0)             # relu(conv3)     (M, Np) f32
    pooled = jnp.mean(feat, axis=0, keepdims=True)        # AdaptiveAvgPool (1, Np)
    logits = jnp.dot(pooled.astype(jnp.bfloat16), wfc_ref[...],
                     preferred_element_type=jnp.float32) + bfc_ref[...]
    o_ref[0] = jnp.tanh(logits)


# ---------------------------------------------------------------------------
# Wrappers
# ---------------------------------------------------------------------------
def _make_taps(x_nhwc, oh, ow):
    """9 stride-2 tap views of the 1-padded NHWC input, shaped (9, B, OH*OW, C).

    pad + strided slice + reshape + stack + cast fuse into a single XLA
    materialization; K stays equal to C (no 128 padding of the contraction dim)."""
    B, H, W, C = x_nhwc.shape
    xp = jnp.pad(x_nhwc, ((0, 0), (1, 2 * oh - H + 1), (1, 2 * ow - W + 1), (0, 0)))
    taps = [xp[:, dy:dy + 2 * oh:2, dx:dx + 2 * ow:2, :].reshape(B, oh * ow, C)
            for dy in range(3) for dx in range(3)]
    return jnp.stack(taps, axis=0).astype(jnp.bfloat16)


def _prep_conv_weights(w_oihw, b, Np):
    O, C = w_oihw.shape[0], w_oihw.shape[1]
    w = jnp.transpose(w_oihw, (2, 3, 1, 0)).reshape(9, C, O)            # (dy,dx,c,o)
    w = jnp.pad(w, ((0, 0), (0, 0), (0, Np - O))).astype(jnp.bfloat16)  # (9, C, Np)
    bias = jnp.pad(b.reshape(1, O).astype(jnp.float32), ((0, 0), (0, Np - O)))
    return w, bias


def conv3x3_s2_relu(x_nhwc, w_oihw, b):
    """3x3 stride-2 pad-1 conv + ReLU as 9 accumulated MXU dots, one image per grid step."""
    B, H, W, C = x_nhwc.shape
    O = w_oihw.shape[0]
    oh, ow = _conv_out_hw(H), _conv_out_hw(W)
    m = oh * ow
    Np = _round_up(max(O, 128), 128)

    taps = _make_taps(x_nhwc, oh, ow)                     # (9, B, m, C) bf16
    w, bias = _prep_conv_weights(w_oihw, b, Np)

    cost = pl.CostEstimate(
        flops=2 * B * m * 9 * C * Np, transcendentals=0,
        bytes_accessed=9 * B * m * C * 2 + 9 * C * Np * 2 + Np * 4 + B * m * Np * 2)
    out = pl.pallas_call(
        conv3x3s2_relu_kernel,
        out_shape=jax.ShapeDtypeStruct((B, m, Np), jnp.bfloat16),
        grid=(B,),
        in_specs=[
            pl.BlockSpec((9, 1, m, C), lambda i: (0, i, 0, 0)),   # one image's taps / step
            pl.BlockSpec((9, C, Np), lambda i: (0, 0, 0)),        # weights resident
            pl.BlockSpec((1, Np), lambda i: (0, 0)),              # bias resident
        ],
        out_specs=pl.BlockSpec((1, m, Np), lambda i: (i, 0, 0)),
        compiler_params=pltpu.CompilerParams(
            dimension_semantics=("parallel",),                    # >=2 steps -> v7x megacore
            vmem_limit_bytes=32 * 1024 * 1024),
        cost_estimate=cost,
    )(taps, w, bias)
    return out[:, :, :O].reshape(B, oh, ow, O)


def conv3_pool_fc_tanh(x_nhwc, w_oihw, b, fc_w, fc_b):
    """Fused conv3 + AdaptiveAvgPool2d((1,1)) + Linear + tanh (no HBM round trip for conv3)."""
    B, H, W, C = x_nhwc.shape
    O = w_oihw.shape[0]
    OUT = fc_w.shape[0]
    oh, ow = _conv_out_hw(H), _conv_out_hw(W)
    m = oh * ow
    Np = _round_up(max(O, 128), 128)
    OUTp = _round_up(max(OUT, 128), 128)

    taps = _make_taps(x_nhwc, oh, ow)                     # (9, B, m, C) bf16
    w, bias = _prep_conv_weights(w_oihw, b, Np)
    wfc = jnp.pad(fc_w.T.astype(jnp.bfloat16),
                  ((0, Np - fc_w.shape[1]), (0, OUTp - OUT)))          # (Np, OUTp)
    bfc = jnp.pad(fc_b.reshape(1, OUT).astype(jnp.float32), ((0, 0), (0, OUTp - OUT)))

    cost = pl.CostEstimate(
        flops=2 * B * m * 9 * C * Np + 2 * B * Np * OUTp,
        transcendentals=B * OUTp,
        bytes_accessed=(9 * B * m * C * 2 + 9 * C * Np * 2 + Np * 4
                        + Np * OUTp * 2 + OUTp * 4 + B * OUTp * 4))
    out = pl.pallas_call(
        conv3_pool_fc_tanh_kernel,
        out_shape=jax.ShapeDtypeStruct((B, 1, OUTp), jnp.float32),
        grid=(B,),
        in_specs=[
            pl.BlockSpec((9, 1, m, C), lambda i: (0, i, 0, 0)),
            pl.BlockSpec((9, C, Np), lambda i: (0, 0, 0)),
            pl.BlockSpec((1, Np), lambda i: (0, 0)),
            pl.BlockSpec((Np, OUTp), lambda i: (0, 0)),
            pl.BlockSpec((1, OUTp), lambda i: (0, 0)),
        ],
        out_specs=pl.BlockSpec((1, 1, OUTp), lambda i: (i, 0, 0)),
        compiler_params=pltpu.CompilerParams(
            dimension_semantics=("parallel",),
            vmem_limit_bytes=32 * 1024 * 1024),
        cost_estimate=cost,
    )(taps, w, bias, wfc, bfc)
    return out.reshape(B, OUTp)[:, :OUT]


# ---------------------------------------------------------------------------
# Parameter init (deterministic, shapes match the PyTorch module)
# ---------------------------------------------------------------------------
def init_params(key, input_channels, output_size):
    def conv_init(k, cout, cin):
        k1, k2 = jax.random.split(k)
        bound = 1.0 / jnp.sqrt(cin * 9.0)
        w = jax.random.uniform(k1, (cout, cin, 3, 3), jnp.float32, -bound, bound)
        b = jax.random.uniform(k2, (cout,), jnp.float32, -bound, bound)
        return w, b

    keys = jax.random.split(key, 4)
    params = {}
    params["conv1"] = conv_init(keys[0], 32, input_channels)
    params["conv2"] = conv_init(keys[1], 64, 32)
    params["conv3"] = conv_init(keys[2], 64, 64)
    k1, k2 = jax.random.split(keys[3])
    bound = 1.0 / jnp.sqrt(64.0)
    params["fc"] = (
        jax.random.uniform(k1, (output_size, 64), jnp.float32, -bound, bound),
        jax.random.uniform(k2, (output_size,), jnp.float32, -bound, bound),
    )
    return params


def flexible_image_encoder(x_nchw, params):
    # NCHW -> NHWC; bf16 activations (f32 accumulation inside the kernels).
    x = jnp.transpose(x_nchw, (0, 2, 3, 1)).astype(jnp.bfloat16)
    x = conv3x3_s2_relu(x, *params["conv1"])                       # (B, H/2, W/2, 32)
    x = conv3x3_s2_relu(x, *params["conv2"])                       # (B, H/4, W/4, 64)
    return conv3_pool_fc_tanh(x, *params["conv3"], *params["fc"])  # (B, output_size)


# ---------------------------------------------------------------------------
if __name__ == "__main__":
    key = jax.random.PRNGKey(0)
    k_x, k_p = jax.random.split(key)

    batch, in_ch, spatial, out_size = 2, 4, 16, 8
    x = jax.random.normal(k_x, (batch, in_ch, spatial, spatial), jnp.float32)  # NCHW like PyTorch
    params = init_params(k_p, in_ch, out_size)

    out = jax.jit(flexible_image_encoder)(x, params)
    out = jax.block_until_ready(out)
    assert out.shape == (batch, out_size), out.shape
    assert bool(jnp.all(jnp.isfinite(out)))
    print("KERNEL_OK")
</pallas_src>

<mosaic_0001>
module attributes {stable_mosaic.version = 11 : i64} {
  func.func @conv3x3s2_relu_kernel(%arg0: i32, %arg1: memref<9x1x64x4xbf16, #tpu.memory_space<vmem>>, %arg2: memref<9x4x128xbf16, #tpu.memory_space<vmem>>, %arg3: memref<1x128xf32, #tpu.memory_space<vmem>>, %arg4: memref<1x64x128xbf16, #tpu.memory_space<vmem>>) attributes {dimension_semantics = [#tpu.dimension_semantics<parallel>], iteration_bounds = array<i64: 2>, scalar_prefetch = 0 : i64, scratch_operands = 0 : i64, tpu.core_type = #tpu.core_type<tc>, window_params = [{transform_indices = @transform_0, window_bounds = array<i64: 9, 1, 64, 4>}, {pipeline_mode = #tpu.pipeline_mode<synchronous>, transform_indices = @transform_1, window_bounds = array<i64: 9, 4, 128>}, {pipeline_mode = #tpu.pipeline_mode<synchronous>, transform_indices = @transform_2, window_bounds = array<i64: 1, 128>}, {transform_indices = @transform_3, window_bounds = array<i64: 1, 64, 128>}]} {
    %cst = arith.constant 0.000000e+00 : f32
    %0 = vector.broadcast %cst : f32 to vector<64x128xf32>
    %c0 = arith.constant 0 : index
    %c0_0 = arith.constant 0 : index
    %c0_1 = arith.constant 0 : index
    %c0_2 = arith.constant 0 : index
    %1 = vector.load %arg1[%c0, %c0_0, %c0_1, %c0_2] : memref<9x1x64x4xbf16, #tpu.memory_space<vmem>>, vector<1x1x64x4xbf16>
    %2 = vector.shape_cast %1 : vector<1x1x64x4xbf16> to vector<64x4xbf16>
    %c0_3 = arith.constant 0 : index
    %c0_4 = arith.constant 0 : index
    %c0_5 = arith.constant 0 : index
    %3 = vector.load %arg2[%c0_3, %c0_4, %c0_5] : memref<9x4x128xbf16, #tpu.memory_space<vmem>>, vector<1x4x128xbf16>
    %4 = vector.shape_cast %3 : vector<1x4x128xbf16> to vector<4x128xbf16>
    %cst_6 = arith.constant dense<0.000000e+00> : vector<64x128xf32>
    %5 = tpu.matmul %2, %4, %cst_6 {dimension_numbers = #tpu.dot_dimension_numbers<[1], [0], [0], [1], [0, 0, 1, 1], [], []>} : vector<64x4xbf16>, vector<4x128xbf16>, vector<64x128xf32> -> vector<64x128xf32>
    %6 = arith.addf %0, %5 : vector<64x128xf32>
    %c1 = arith.constant 1 : index
    %c0_7 = arith.constant 0 : index
    %c0_8 = arith.constant 0 : index
    %c0_9 = arith.constant 0 : index
    %7 = vector.load %arg1[%c1, %c0_7, %c0_8, %c0_9] : memref<9x1x64x4xbf16, #tpu.memory_space<vmem>>, vector<1x1x64x4xbf16>
    %8 = vector.shape_cast %7 : vector<1x1x64x4xbf16> to vector<64x4xbf16>
    %c1_10 = arith.constant 1 : index
    %c0_11 = arith.constant 0 : index
    %c0_12 = arith.constant 0 : index
    %9 = vector.load %arg2[%c1_10, %c0_11, %c0_12] : memref<9x4x128xbf16, #tpu.memory_space<vmem>>, vector<1x4x128xbf16>
    %10 = vector.shape_cast %9 : vector<1x4x128xbf16> to vector<4x128xbf16>
    %cst_13 = arith.constant dense<0.000000e+00> : vector<64x128xf32>
    %11 = tpu.matmul %8, %10, %cst_13 {dimension_numbers = #tpu.dot_dimension_numbers<[1], [0], [0], [1], [0, 0, 1, 1], [], []>} : vector<64x4xbf16>, vector<4x128xbf16>, vector<64x128xf32> -> vector<64x128xf32>
    %12 = arith.addf %6, %11 : vector<64x128xf32>
    %c2 = arith.constant 2 : index
    %c0_14 = arith.constant 0 : index
    %c0_15 = arith.constant 0 : index
    %c0_16 = arith.constant 0 : index
    %13 = vector.load %arg1[%c2, %c0_14, %c0_15, %c0_16] : memref<9x1x64x4xbf16, #tpu.memory_space<vmem>>, vector<1x1x64x4xbf16>
    %14 = vector.shape_cast %13 : vector<1x1x64x4xbf16> to vector<64x4xbf16>
    %c2_17 = arith.constant 2 : index
    %c0_18 = arith.constant 0 : index
    %c0_19 = arith.constant 0 : index
    %15 = vector.load %arg2[%c2_17, %c0_18, %c0_19] : memref<9x4x128xbf16, #tpu.memory_space<vmem>>, vector<1x4x128xbf16>
    %16 = vector.shape_cast %15 : vector<1x4x128xbf16> to vector<4x128xbf16>
    %cst_20 = arith.constant dense<0.000000e+00> : vector<64x128xf32>
    %17 = tpu.matmul %14, %16, %cst_20 {dimension_numbers = #tpu.dot_dimension_numbers<[1], [0], [0], [1], [0, 0, 1, 1], [], []>} : vector<64x4xbf16>, vector<4x128xbf16>, vector<64x128xf32> -> vector<64x128xf32>
    %18 = arith.addf %12, %17 : vector<64x128xf32>
    %c3 = arith.constant 3 : index
    %c0_21 = arith.constant 0 : index
    %c0_22 = arith.constant 0 : index
    %c0_23 = arith.constant 0 : index
    %19 = vector.load %arg1[%c3, %c0_21, %c0_22, %c0_23] : memref<9x1x64x4xbf16, #tpu.memory_space<vmem>>, vector<1x1x64x4xbf16>
    %20 = vector.shape_cast %19 : vector<1x1x64x4xbf16> to vector<64x4xbf16>
    %c3_24 = arith.constant 3 : index
    %c0_25 = arith.constant 0 : index
    %c0_26 = arith.constant 0 : index
    %21 = vector.load %arg2[%c3_24, %c0_25, %c0_26] : memref<9x4x128xbf16, #tpu.memory_space<vmem>>, vector<1x4x128xbf16>
    %22 = vector.shape_cast %21 : vector<1x4x128xbf16> to vector<4x128xbf16>
    %cst_27 = arith.constant dense<0.000000e+00> : vector<64x128xf32>
    %23 = tpu.matmul %20, %22, %cst_27 {dimension_numbers = #tpu.dot_dimension_numbers<[1], [0], [0], [1], [0, 0, 1, 1], [], []>} : vector<64x4xbf16>, vector<4x128xbf16>, vector<64x128xf32> -> vector<64x128xf32>
    %24 = arith.addf %18, %23 : vector<64x128xf32>
    %c4 = arith.constant 4 : index
    %c0_28 = arith.constant 0 : index
    %c0_29 = arith.constant 0 : index
    %c0_30 = arith.constant 0 : index
    %25 = vector.load %arg1[%c4, %c0_28, %c0_29, %c0_30] : memref<9x1x64x4xbf16, #tpu.memory_space<vmem>>, vector<1x1x64x4xbf16>
    %26 = vector.shape_cast %25 : vector<1x1x64x4xbf16> to vector<64x4xbf16>
    %c4_31 = arith.constant 4 : index
    %c0_32 = arith.constant 0 : index
    %c0_33 = arith.constant 0 : index
    %27 = vector.load %arg2[%c4_31, %c0_32, %c0_33] : memref<9x4x128xbf16, #tpu.memory_space<vmem>>, vector<1x4x128xbf16>
    %28 = vector.shape_cast %27 : vector<1x4x128xbf16> to vector<4x128xbf16>
    %cst_34 = arith.constant dense<0.000000e+00> : vector<64x128xf32>
    %29 = tpu.matmul %26, %28, %cst_34 {dimension_numbers = #tpu.dot_dimension_numbers<[1], [0], [0], [1], [0, 0, 1, 1], [], []>} : vector<64x4xbf16>, vector<4x128xbf16>, vector<64x128xf32> -> vector<64x128xf32>
    %30 = arith.addf %24, %29 : vector<64x128xf32>
    %c5 = arith.constant 5 : index
    %c0_35 = arith.constant 0 : index
    %c0_36 = arith.constant 0 : index
    %c0_37 = arith.constant 0 : index
    %31 = vector.load %arg1[%c5, %c0_35, %c0_36, %c0_37] : memref<9x1x64x4xbf16, #tpu.memory_space<vmem>>, vector<1x1x64x4xbf16>
    %32 = vector.shape_cast %31 : vector<1x1x64x4xbf16> to vector<64x4xbf16>
    %c5_38 = arith.constant 5 : index
    %c0_39 = arith.constant 0 : index
    %c0_40 = arith.constant 0 : index
    %33 = vector.load %arg2[%c5_38, %c0_39, %c0_40] : memref<9x4x128xbf16, #tpu.memory_space<vmem>>, vector<1x4x128xbf16>
    %34 = vector.shape_cast %33 : vector<1x4x128xbf16> to vector<4x128xbf16>
    %cst_41 = arith.constant dense<0.000000e+00> : vector<64x128xf32>
    %35 = tpu.matmul %32, %34, %cst_41 {dimension_numbers = #tpu.dot_dimension_numbers<[1], [0], [0], [1], [0, 0, 1, 1], [], []>} : vector<64x4xbf16>, vector<4x128xbf16>, vector<64x128xf32> -> vector<64x128xf32>
    %36 = arith.addf %30, %35 : vector<64x128xf32>
    %c6 = arith.constant 6 : index
    %c0_42 = arith.constant 0 : index
    %c0_43 = arith.constant 0 : index
    %c0_44 = arith.constant 0 : index
    %37 = vector.load %arg1[%c6, %c0_42, %c0_43, %c0_44] : memref<9x1x64x4xbf16, #tpu.memory_space<vmem>>, vector<1x1x64x4xbf16>
    %38 = vector.shape_cast %37 : vector<1x1x64x4xbf16> to vector<64x4xbf16>
    %c6_45 = arith.constant 6 : index
    %c0_46 = arith.constant 0 : index
    %c0_47 = arith.constant 0 : index
    %39 = vector.load %arg2[%c6_45, %c0_46, %c0_47] : memref<9x4x128xbf16, #tpu.memory_space<vmem>>, vector<1x4x128xbf16>
    %40 = vector.shape_cast %39 : vector<1x4x128xbf16> to vector<4x128xbf16>
    %cst_48 = arith.constant dense<0.000000e+00> : vector<64x128xf32>
    %41 = tpu.matmul %38, %40, %cst_48 {dimension_numbers = #tpu.dot_dimension_numbers<[1], [0], [0], [1], [0, 0, 1, 1], [], []>} : vector<64x4xbf16>, vector<4x128xbf16>, vector<64x128xf32> -> vector<64x128xf32>
    %42 = arith.addf %36, %41 : vector<64x128xf32>
    %c7 = arith.constant 7 : index
    %c0_49 = arith.constant 0 : index
    %c0_50 = arith.constant 0 : index
    %c0_51 = arith.constant 0 : index
    %43 = vector.load %arg1[%c7, %c0_49, %c0_50, %c0_51] : memref<9x1x64x4xbf16, #tpu.memory_space<vmem>>, vector<1x1x64x4xbf16>
    %44 = vector.shape_cast %43 : vector<1x1x64x4xbf16> to vector<64x4xbf16>
    %c7_52 = arith.constant 7 : index
    %c0_53 = arith.constant 0 : index
    %c0_54 = arith.constant 0 : index
    %45 = vector.load %arg2[%c7_52, %c0_53, %c0_54] : memref<9x4x128xbf16, #tpu.memory_space<vmem>>, vector<1x4x128xbf16>
    %46 = vector.shape_cast %45 : vector<1x4x128xbf16> to vector<4x128xbf16>
    %cst_55 = arith.constant dense<0.000000e+00> : vector<64x128xf32>
    %47 = tpu.matmul %44, %46, %cst_55 {dimension_numbers = #tpu.dot_dimension_numbers<[1], [0], [0], [1], [0, 0, 1, 1], [], []>} : vector<64x4xbf16>, vector<4x128xbf16>, vector<64x128xf32> -> vector<64x128xf32>
    %48 = arith.addf %42, %47 : vector<64x128xf32>
    %c8 = arith.constant 8 : index
    %c0_56 = arith.constant 0 : index
    %c0_57 = arith.constant 0 : index
    %c0_58 = arith.constant 0 : index
    %49 = vector.load %arg1[%c8, %c0_56, %c0_57, %c0_58] : memref<9x1x64x4xbf16, #tpu.memory_space<vmem>>, vector<1x1x64x4xbf16>
    %50 = vector.shape_cast %49 : vector<1x1x64x4xbf16> to vector<64x4xbf16>
    %c8_59 = arith.constant 8 : index
    %c0_60 = arith.constant 0 : index
    %c0_61 = arith.constant 0 : index
    %51 = vector.load %arg2[%c8_59, %c0_60, %c0_61] : memref<9x4x128xbf16, #tpu.memory_space<vmem>>, vector<1x4x128xbf16>
    %52 = vector.shape_cast %51 : vector<1x4x128xbf16> to vector<4x128xbf16>
    %cst_62 = arith.constant dense<0.000000e+00> : vector<64x128xf32>
    %53 = tpu.matmul %50, %52, %cst_62 {dimension_numbers = #tpu.dot_dimension_numbers<[1], [0], [0], [1], [0, 0, 1, 1], [], []>} : vector<64x4xbf16>, vector<4x128xbf16>, vector<64x128xf32> -> vector<64x128xf32>
    %54 = arith.addf %48, %53 : vector<64x128xf32>
    %c0_63 = arith.constant 0 : index
    %c0_64 = arith.constant 0 : index
    %55 = vector.load %arg3[%c0_63, %c0_64] : memref<1x128xf32, #tpu.memory_space<vmem>>, vector<1x128xf32>
    %56 = vector.broadcast %55 : vector<1x128xf32> to vector<64x128xf32>
    %57 = arith.addf %54, %56 : vector<64x128xf32>
    %cst_65 = arith.constant 0.000000e+00 : f32
    %58 = vector.broadcast %cst_65 : f32 to vector<64x128xf32>
    %59 = arith.maximumf %57, %58 : vector<64x128xf32>
    %60 = arith.truncf %59 : vector<64x128xf32> to vector<64x128xbf16>
    %c0_66 = arith.constant 0 : index
    %c0_67 = arith.constant 0 : index
    %c0_68 = arith.constant 0 : index
    %61 = vector.load %arg4[%c0_66, %c0_67, %c0_68] : memref<1x64x128xbf16, #tpu.memory_space<vmem>>, vector<1x64x128xbf16>
    %62 = vector.shape_cast %61 : vector<1x64x128xbf16> to vector<64x128xbf16>
    %63 = vector.shape_cast %60 : vector<64x128xbf16> to vector<1x64x128xbf16>
    tpu.vector_store %arg4[%c0_66, %c0_67, %c0_68], %63 {strides = array<i32>} : memref<1x64x128xbf16, #tpu.memory_space<vmem>>, vector<1x64x128xbf16>,
    return
  }
  func.func @transform_0(%arg0: i32) -> (i32, i32, i32, i32) {
    %c0_i32 = arith.constant 0 : i32
    %c0_i32_0 = arith.constant 0 : i32
    %c0_i32_1 = arith.constant 0 : i32
    %c0_i32_2 = arith.constant 0 : i32
    return %c0_i32, %arg0, %c0_i32_0, %c0_i32_1 : i32, i32, i32, i32
  }
  func.func @transform_1(%arg0: i32) -> (i32, i32, i32) {
    %c0_i32 = arith.constant 0 : i32
    %c0_i32_0 = arith.constant 0 : i32
    %c0_i32_1 = arith.constant 0 : i32
    %c0_i32_2 = arith.constant 0 : i32
    return %c0_i32, %c0_i32_0, %c0_i32_1 : i32, i32, i32
  }
  func.func @transform_2(%arg0: i32) -> (i32, i32) {
    %c0_i32 = arith.constant 0 : i32
    %c0_i32_0 = arith.constant 0 : i32
    %c0_i32_1 = arith.constant 0 : i32
    return %c0_i32, %c0_i32_0 : i32, i32
  }
  func.func @transform_3(%arg0: i32) -> (i32, i32, i32) {
    %c0_i32 = arith.constant 0 : i32
    %c0_i32_0 = arith.constant 0 : i32
    %c0_i32_1 = arith.constant 0 : i32
    return %arg0, %c0_i32, %c0_i32_0 : i32, i32, i32
  }
}

module attributes {stable_mosaic.version = 11 : i64} {
  func.func @conv3x3s2_relu_kernel(%arg0: i32, %arg1: memref<9x1x16x32xbf16, #tpu.memory_space<vmem>>, %arg2: memref<9x32x128xbf16, #tpu.memory_space<vmem>>, %arg3: memref<1x128xf32, #tpu.memory_space<vmem>>, %arg4: memref<1x16x128xbf16, #tpu.memory_space<vmem>>) attributes {dimension_semantics = [#tpu.dimension_semantics<parallel>], iteration_bounds = array<i64: 2>, scalar_prefetch = 0 : i64, scratch_operands = 0 : i64, tpu.core_type = #tpu.core_type<tc>, window_params = [{transform_indices = @transform_0, window_bounds = array<i64: 9, 1, 16, 32>}, {pipeline_mode = #tpu.pipeline_mode<synchronous>, transform_indices = @transform_1, window_bounds = array<i64: 9, 32, 128>}, {pipeline_mode = #tpu.pipeline_mode<synchronous>, transform_indices = @transform_2, window_bounds = array<i64: 1, 128>}, {transform_indices = @transform_3, window_bounds = array<i64: 1, 16, 128>}]} {
    %cst = arith.constant 0.000000e+00 : f32
    %0 = vector.broadcast %cst : f32 to vector<16x128xf32>
    %c0 = arith.constant 0 : index
    %c0_0 = arith.constant 0 : index
    %c0_1 = arith.constant 0 : index
    %c0_2 = arith.constant 0 : index
    %1 = vector.load %arg1[%c0, %c0_0, %c0_1, %c0_2] : memref<9x1x16x32xbf16, #tpu.memory_space<vmem>>, vector<1x1x16x32xbf16>
    %2 = vector.shape_cast %1 : vector<1x1x16x32xbf16> to vector<16x32xbf16>
    %c0_3 = arith.constant 0 : index
    %c0_4 = arith.constant 0 : index
    %c0_5 = arith.constant 0 : index
    %3 = vector.load %arg2[%c0_3, %c0_4, %c0_5] : memref<9x32x128xbf16, #tpu.memory_space<vmem>>, vector<1x32x128xbf16>
    %4 = vector.shape_cast %3 : vector<1x32x128xbf16> to vector<32x128xbf16>
    %cst_6 = arith.constant dense<0.000000e+00> : vector<16x128xf32>
    %5 = tpu.matmul %2, %4, %cst_6 {dimension_numbers = #tpu.dot_dimension_numbers<[1], [0], [0], [1], [0, 0, 1, 1], [], []>} : vector<16x32xbf16>, vector<32x128xbf16>, vector<16x128xf32> -> vector<16x128xf32>
    %6 = arith.addf %0, %5 : vector<16x128xf32>
    %c1 = arith.constant 1 : index
    %c0_7 = arith.constant 0 : index
    %c0_8 = arith.constant 0 : index
    %c0_9 = arith.constant 0 : index
    %7 = vector.load %arg1[%c1, %c0_7, %c0_8, %c0_9] : memref<9x1x16x32xbf16, #tpu.memory_space<vmem>>, vector<1x1x16x32xbf16>
    %8 = vector.shape_cast %7 : vector<1x1x16x32xbf16> to vector<16x32xbf16>
    %c1_10 = arith.constant 1 : index
    %c0_11 = arith.constant 0 : index
    %c0_12 = arith.constant 0 : index
    %9 = vector.load %arg2[%c1_10, %c0_11, %c0_12] : memref<9x32x128xbf16, #tpu.memory_space<vmem>>, vector<1x32x128xbf16>
    %10 = vector.shape_cast %9 : vector<1x32x128xbf16> to vector<32x128xbf16>
    %cst_13 = arith.constant dense<0.000000e+00> : vector<16x128xf32>
    %11 = tpu.matmul %8, %10, %cst_13 {dimension_numbers = #tpu.dot_dimension_numbers<[1], [0], [0], [1], [0, 0, 1, 1], [], []>} : vector<16x32xbf16>, vector<32x128xbf16>, vector<16x128xf32> -> vector<16x128xf32>
    %12 = arith.addf %6, %11 : vector<16x128xf32>
    %c2 = arith.constant 2 : index
    %c0_14 = arith.constant 0 : index
    %c0_15 = arith.constant 0 : index
    %c0_16 = arith.constant 0 : index
    %13 = vector.load %arg1[%c2, %c0_14, %c0_15, %c0_16] : memref<9x1x16x32xbf16, #tpu.memory_space<vmem>>, vector<1x1x16x32xbf16>
    %14 = vector.shape_cast %13 : vector<1x1x16x32xbf16> to vector<16x32xbf16>
    %c2_17 = arith.constant 2 : index
    %c0_18 = arith.constant 0 : index
    %c0_19 = arith.constant 0 : index
    %15 = vector.load %arg2[%c2_17, %c0_18, %c0_19] : memref<9x32x128xbf16, #tpu.memory_space<vmem>>, vector<1x32x128xbf16>
    %16 = vector.shape_cast %15 : vector<1x32x128xbf16> to vector<32x128xbf16>
    %cst_20 = arith.constant dense<0.000000e+00> : vector<16x128xf32>
    %17 = tpu.matmul %14, %16, %cst_20 {dimension_numbers = #tpu.dot_dimension_numbers<[1], [0], [0], [1], [0, 0, 1, 1], [], []>} : vector<16x32xbf16>, vector<32x128xbf16>, vector<16x128xf32> -> vector<16x128xf32>
    %18 = arith.addf %12, %17 : vector<16x128xf32>
    %c3 = arith.constant 3 : index
    %c0_21 = arith.constant 0 : index
    %c0_22 = arith.constant 0 : index
    %c0_23 = arith.constant 0 : index
    %19 = vector.load %arg1[%c3, %c0_21, %c0_22, %c0_23] : memref<9x1x16x32xbf16, #tpu.memory_space<vmem>>, vector<1x1x16x32xbf16>
    %20 = vector.shape_cast %19 : vector<1x1x16x32xbf16> to vector<16x32xbf16>
    %c3_24 = arith.constant 3 : index
    %c0_25 = arith.constant 0 : index
    %c0_26 = arith.constant 0 : index
    %21 = vector.load %arg2[%c3_24, %c0_25, %c0_26] : memref<9x32x128xbf16, #tpu.memory_space<vmem>>, vector<1x32x128xbf16>
    %22 = vector.shape_cast %21 : vector<1x32x128xbf16> to vector<32x128xbf16>
    %cst_27 = arith.constant dense<0.000000e+00> : vector<16x128xf32>
    %23 = tpu.matmul %20, %22, %cst_27 {dimension_numbers = #tpu.dot_dimension_numbers<[1], [0], [0], [1], [0, 0, 1, 1], [], []>} : vector<16x32xbf16>, vector<32x128xbf16>, vector<16x128xf32> -> vector<16x128xf32>
    %24 = arith.addf %18, %23 : vector<16x128xf32>
    %c4 = arith.constant 4 : index
    %c0_28 = arith.constant 0 : index
    %c0_29 = arith.constant 0 : index
    %c0_30 = arith.constant 0 : index
    %25 = vector.load %arg1[%c4, %c0_28, %c0_29, %c0_30] : memref<9x1x16x32xbf16, #tpu.memory_space<vmem>>, vector<1x1x16x32xbf16>
    %26 = vector.shape_cast %25 : vector<1x1x16x32xbf16> to vector<16x32xbf16>
    %c4_31 = arith.constant 4 : index
    %c0_32 = arith.constant 0 : index
    %c0_33 = arith.constant 0 : index
    %27 = vector.load %arg2[%c4_31, %c0_32, %c0_33] : memref<9x32x128xbf16, #tpu.memory_space<vmem>>, vector<1x32x128xbf16>
    %28 = vector.shape_cast %27 : vector<1x32x128xbf16> to vector<32x128xbf16>
    %cst_34 = arith.constant dense<0.000000e+00> : vector<16x128xf32>
    %29 = tpu.matmul %26, %28, %cst_34 {dimension_numbers = #tpu.dot_dimension_numbers<[1], [0], [0], [1], [0, 0, 1, 1], [], []>} : vector<16x32xbf16>, vector<32x128xbf16>, vector<16x128xf32> -> vector<16x128xf32>
    %30 = arith.addf %24, %29 : vector<16x128xf32>
    %c5 = arith.constant 5 : index
    %c0_35 = arith.constant 0 : index
    %c0_36 = arith.constant 0 : index
    %c0_37 = arith.constant 0 : index
    %31 = vector.load %arg1[%c5, %c0_35, %c0_36, %c0_37] : memref<9x1x16x32xbf16, #tpu.memory_space<vmem>>, vector<1x1x16x32xbf16>
    %32 = vector.shape_cast %31 : vector<1x1x16x32xbf16> to vector<16x32xbf16>
    %c5_38 = arith.constant 5 : index
    %c0_39 = arith.constant 0 : index
    %c0_40 = arith.constant 0 : index
    %33 = vector.load %arg2[%c5_38, %c0_39, %c0_40] : memref<9x32x128xbf16, #tpu.memory_space<vmem>>, vector<1x32x128xbf16>
    %34 = vector.shape_cast %33 : vector<1x32x128xbf16> to vector<32x128xbf16>
    %cst_41 = arith.constant dense<0.000000e+00> : vector<16x128xf32>
    %35 = tpu.matmul %32, %34, %cst_41 {dimension_numbers = #tpu.dot_dimension_numbers<[1], [0], [0], [1], [0, 0, 1, 1], [], []>} : vector<16x32xbf16>, vector<32x128xbf16>, vector<16x128xf32> -> vector<16x128xf32>
    %36 = arith.addf %30, %35 : vector<16x128xf32>
    %c6 = arith.constant 6 : index
    %c0_42 = arith.constant 0 : index
    %c0_43 = arith.constant 0 : index
    %c0_44 = arith.constant 0 : index
    %37 = vector.load %arg1[%c6, %c0_42, %c0_43, %c0_44] : memref<9x1x16x32xbf16, #tpu.memory_space<vmem>>, vector<1x1x16x32xbf16>
    %38 = vector.shape_cast %37 : vector<1x1x16x32xbf16> to vector<16x32xbf16>
    %c6_45 = arith.constant 6 : index
    %c0_46 = arith.constant 0 : index
    %c0_47 = arith.constant 0 : index
    %39 = vector.load %arg2[%c6_45, %c0_46, %c0_47] : memref<9x32x128xbf16, #tpu.memory_space<vmem>>, vector<1x32x128xbf16>
    %40 = vector.shape_cast %39 : vector<1x32x128xbf16> to vector<32x128xbf16>
    %cst_48 = arith.constant dense<0.000000e+00> : vector<16x128xf32>
    %41 = tpu.matmul %38, %40, %cst_48 {dimension_numbers = #tpu.dot_dimension_numbers<[1], [0], [0], [1], [0, 0, 1, 1], [], []>} : vector<16x32xbf16>, vector<32x128xbf16>, vector<16x128xf32> -> vector<16x128xf32>
    %42 = arith.addf %36, %41 : vector<16x128xf32>
    %c7 = arith.constant 7 : index
    %c0_49 = arith.constant 0 : index
    %c0_50 = arith.constant 0 : index
    %c0_51 = arith.constant 0 : index
    %43 = vector.load %arg1[%c7, %c0_49, %c0_50, %c0_51] : memref<9x1x16x32xbf16, #tpu.memory_space<vmem>>, vector<1x1x16x32xbf16>
    %44 = vector.shape_cast %43 : vector<1x1x16x32xbf16> to vector<16x32xbf16>
    %c7_52 = arith.constant 7 : index
    %c0_53 = arith.constant 0 : index
    %c0_54 = arith.constant 0 : index
    %45 = vector.load %arg2[%c7_52, %c0_53, %c0_54] : memref<9x32x128xbf16, #tpu.memory_space<vmem>>, vector<1x32x128xbf16>
    %46 = vector.shape_cast %45 : vector<1x32x128xbf16> to vector<32x128xbf16>
    %cst_55 = arith.constant dense<0.000000e+00> : vector<16x128xf32>
    %47 = tpu.matmul %44, %46, %cst_55 {dimension_numbers = #tpu.dot_dimension_numbers<[1], [0], [0], [1], [0, 0, 1, 1], [], []>} : vector<16x32xbf16>, vector<32x128xbf16>, vector<16x128xf32> -> vector<16x128xf32>
    %48 = arith.addf %42, %47 : vector<16x128xf32>
    %c8 = arith.constant 8 : index
    %c0_56 = arith.constant 0 : index
    %c0_57 = arith.constant 0 : index
    %c0_58 = arith.constant 0 : index
    %49 = vector.load %arg1[%c8, %c0_56, %c0_57, %c0_58] : memref<9x1x16x32xbf16, #tpu.memory_space<vmem>>, vector<1x1x16x32xbf16>
    %50 = vector.shape_cast %49 : vector<1x1x16x32xbf16> to vector<16x32xbf16>
    %c8_59 = arith.constant 8 : index
    %c0_60 = arith.constant 0 : index
    %c0_61 = arith.constant 0 : index
    %51 = vector.load %arg2[%c8_59, %c0_60, %c0_61] : memref<9x32x128xbf16, #tpu.memory_space<vmem>>, vector<1x32x128xbf16>
    %52 = vector.shape_cast %51 : vector<1x32x128xbf16> to vector<32x128xbf16>
    %cst_62 = arith.constant dense<0.000000e+00> : vector<16x128xf32>
    %53 = tpu.matmul %50, %52, %cst_62 {dimension_numbers = #tpu.dot_dimension_numbers<[1], [0], [0], [1], [0, 0, 1, 1], [], []>} : vector<16x32xbf16>, vector<32x128xbf16>, vector<16x128xf32> -> vector<16x128xf32>
    %54 = arith.addf %48, %53 : vector<16x128xf32>
    %c0_63 = arith.constant 0 : index
    %c0_64 = arith.constant 0 : index
    %55 = vector.load %arg3[%c0_63, %c0_64] : memref<1x128xf32, #tpu.memory_space<vmem>>, vector<1x128xf32>
    %56 = vector.broadcast %55 : vector<1x128xf32> to vector<16x128xf32>
    %57 = arith.addf %54, %56 : vector<16x128xf32>
    %cst_65 = arith.constant 0.000000e+00 : f32
    %58 = vector.broadcast %cst_65 : f32 to vector<16x128xf32>
    %59 = arith.maximumf %57, %58 : vector<16x128xf32>
    %60 = arith.truncf %59 : vector<16x128xf32> to vector<16x128xbf16>
    %c0_66 = arith.constant 0 : index
    %c0_67 = arith.constant 0 : index
    %c0_68 = arith.constant 0 : index
    %61 = vector.load %arg4[%c0_66, %c0_67, %c0_68] : memref<1x16x128xbf16, #tpu.memory_space<vmem>>, vector<1x16x128xbf16>
    %62 = vector.shape_cast %61 : vector<1x16x128xbf16> to vector<16x128xbf16>
    %63 = vector.shape_cast %60 : vector<16x128xbf16> to vector<1x16x128xbf16>
    tpu.vector_store %arg4[%c0_66, %c0_67, %c0_68], %63 {strides = array<i32>} : memref<1x16x128xbf16, #tpu.memory_space<vmem>>, vector<1x16x128xbf16>,
    return
  }
  func.func @transform_0(%arg0: i32) -> (i32, i32, i32, i32) {
    %c0_i32 = arith.constant 0 : i32
    %c0_i32_0 = arith.constant 0 : i32
    %c0_i32_1 = arith.constant 0 : i32
    %c0_i32_2 = arith.constant 0 : i32
    return %c0_i32, %arg0, %c0_i32_0, %c0_i32_1 : i32, i32, i32, i32
  }
  func.func @transform_1(%arg0: i32) -> (i32, i32, i32) {
    %c0_i32 = arith.constant 0 : i32
    %c0_i32_0 = arith.constant 0 : i32
    %c0_i32_1 = arith.constant 0 : i32
    %c0_i32_2 = arith.constant 0 : i32
    return %c0_i32, %c0_i32_0, %c0_i32_1 : i32, i32, i32
  }
  func.func @transform_2(%arg0: i32) -> (i32, i32) {
    %c0_i32 = arith.constant 0 : i32
    %c0_i32_0 = arith.constant 0 : i32
    %c0_i32_1 = arith.constant 0 : i32
    return %c0_i32, %c0_i32_0 : i32, i32
  }
  func.func @transform_3(%arg0: i32) -> (i32, i32, i32) {
    %c0_i32 = arith.constant 0 : i32
    %c0_i32_0 = arith.constant 0 : i32
    %c0_i32_1 = arith.constant 0 : i32
    return %arg0, %c0_i32, %c0_i32_0 : i32, i32, i32
  }
}

module attributes {stable_mosaic.version = 11 : i64} {
  func.func @conv3_pool_fc_tanh_kernel(%arg0: i32, %arg1: memref<9x1x4x64xbf16, #tpu.memory_space<vmem>>, %arg2: memref<9x64x128xbf16, #tpu.memory_space<vmem>>, %arg3: memref<1x128xf32, #tpu.memory_space<vmem>>, %arg4: memref<128x128xbf16, #tpu.memory_space<vmem>>, %arg5: memref<1x128xf32, #tpu.memory_space<vmem>>, %arg6: memref<1x1x128xf32, #tpu.memory_space<vmem>>) attributes {dimension_semantics = [#tpu.dimension_semantics<parallel>], iteration_bounds = array<i64: 2>, scalar_prefetch = 0 : i64, scratch_operands = 0 : i64, tpu.core_type = #tpu.core_type<tc>, window_params = [{transform_indices = @transform_0, window_bounds = array<i64: 9, 1, 4, 64>}, {pipeline_mode = #tpu.pipeline_mode<synchronous>, transform_indices = @transform_1, window_bounds = array<i64: 9, 64, 128>}, {pipeline_mode = #tpu.pipeline_mode<synchronous>, transform_indices = @transform_2, window_bounds = array<i64: 1, 128>}, {pipeline_mode = #tpu.pipeline_mode<synchronous>, transform_indices = @transform_3, window_bounds = array<i64: 128, 128>}, {pipeline_mode = #tpu.pipeline_mode<synchronous>, transform_indices = @transform_4, window_bounds = array<i64: 1, 128>}, {transform_indices = @transform_5, window_bounds = array<i64: 1, 1, 128>}]} {
    %cst = arith.constant 0.000000e+00 : f32
    %0 = vector.broadcast %cst : f32 to vector<4x128xf32>
    %c0 = arith.constant 0 : index
    %c0_0 = arith.constant 0 : index
    %c0_1 = arith.constant 0 : index
    %c0_2 = arith.constant 0 : index
    %1 = vector.load %arg1[%c0, %c0_0, %c0_1, %c0_2] : memref<9x1x4x64xbf16, #tpu.memory_space<vmem>>, vector<1x1x4x64xbf16>
    %2 = vector.shape_cast %1 : vector<1x1x4x64xbf16> to vector<4x64xbf16>
    %c0_3 = arith.constant 0 : index
    %c0_4 = arith.constant 0 : index
    %c0_5 = arith.constant 0 : index
    %3 = vector.load %arg2[%c0_3, %c0_4, %c0_5] : memref<9x64x128xbf16, #tpu.memory_space<vmem>>, vector<1x64x128xbf16>
    %4 = vector.shape_cast %3 : vector<1x64x128xbf16> to vector<64x128xbf16>
    %cst_6 = arith.constant dense<0.000000e+00> : vector<4x128xf32>
    %5 = tpu.matmul %2, %4, %cst_6 {dimension_numbers = #tpu.dot_dimension_numbers<[1], [0], [0], [1], [0, 0, 1, 1], [], []>} : vector<4x64xbf16>, vector<64x128xbf16>, vector<4x128xf32> -> vector<4x128xf32>
    %6 = arith.addf %0, %5 : vector<4x128xf32>
    %c1 = arith.constant 1 : index
    %c0_7 = arith.constant 0 : index
    %c0_8 = arith.constant 0 : index
    %c0_9 = arith.constant 0 : index
    %7 = vector.load %arg1[%c1, %c0_7, %c0_8, %c0_9] : memref<9x1x4x64xbf16, #tpu.memory_space<vmem>>, vector<1x1x4x64xbf16>
    %8 = vector.shape_cast %7 : vector<1x1x4x64xbf16> to vector<4x64xbf16>
    %c1_10 = arith.constant 1 : index
    %c0_11 = arith.constant 0 : index
    %c0_12 = arith.constant 0 : index
    %9 = vector.load %arg2[%c1_10, %c0_11, %c0_12] : memref<9x64x128xbf16, #tpu.memory_space<vmem>>, vector<1x64x128xbf16>
    %10 = vector.shape_cast %9 : vector<1x64x128xbf16> to vector<64x128xbf16>
    %cst_13 = arith.constant dense<0.000000e+00> : vector<4x128xf32>
    %11 = tpu.matmul %8, %10, %cst_13 {dimension_numbers = #tpu.dot_dimension_numbers<[1], [0], [0], [1], [0, 0, 1, 1], [], []>} : vector<4x64xbf16>, vector<64x128xbf16>, vector<4x128xf32> -> vector<4x128xf32>
    %12 = arith.addf %6, %11 : vector<4x128xf32>
    %c2 = arith.constant 2 : index
    %c0_14 = arith.constant 0 : index
    %c0_15 = arith.constant 0 : index
    %c0_16 = arith.constant 0 : index
    %13 = vector.load %arg1[%c2, %c0_14, %c0_15, %c0_16] : memref<9x1x4x64xbf16, #tpu.memory_space<vmem>>, vector<1x1x4x64xbf16>
    %14 = vector.shape_cast %13 : vector<1x1x4x64xbf16> to vector<4x64xbf16>
    %c2_17 = arith.constant 2 : index
    %c0_18 = arith.constant 0 : index
    %c0_19 = arith.constant 0 : index
    %15 = vector.load %arg2[%c2_17, %c0_18, %c0_19] : memref<9x64x128xbf16, #tpu.memory_space<vmem>>, vector<1x64x128xbf16>
    %16 = vector.shape_cast %15 : vector<1x64x128xbf16> to vector<64x128xbf16>
    %cst_20 = arith.constant dense<0.000000e+00> : vector<4x128xf32>
    %17 = tpu.matmul %14, %16, %cst_20 {dimension_numbers = #tpu.dot_dimension_numbers<[1], [0], [0], [1], [0, 0, 1, 1], [], []>} : vector<4x64xbf16>, vector<64x128xbf16>, vector<4x128xf32> -> vector<4x128xf32>
    %18 = arith.addf %12, %17 : vector<4x128xf32>
    %c3 = arith.constant 3 : index
    %c0_21 = arith.constant 0 : index
    %c0_22 = arith.constant 0 : index
    %c0_23 = arith.constant 0 : index
    %19 = vector.load %arg1[%c3, %c0_21, %c0_22, %c0_23] : memref<9x1x4x64xbf16, #tpu.memory_space<vmem>>, vector<1x1x4x64xbf16>
    %20 = vector.shape_cast %19 : vector<1x1x4x64xbf16> to vector<4x64xbf16>
    %c3_24 = arith.constant 3 : index
    %c0_25 = arith.constant 0 : index
    %c0_26 = arith.constant 0 : index
    %21 = vector.load %arg2[%c3_24, %c0_25, %c0_26] : memref<9x64x128xbf16, #tpu.memory_space<vmem>>, vector<1x64x128xbf16>
    %22 = vector.shape_cast %21 : vector<1x64x128xbf16> to vector<64x128xbf16>
    %cst_27 = arith.constant dense<0.000000e+00> : vector<4x128xf32>
    %23 = tpu.matmul %20, %22, %cst_27 {dimension_numbers = #tpu.dot_dimension_numbers<[1], [0], [0], [1], [0, 0, 1, 1], [], []>} : vector<4x64xbf16>, vector<64x128xbf16>, vector<4x128xf32> -> vector<4x128xf32>
    %24 = arith.addf %18, %23 : vector<4x128xf32>
    %c4 = arith.constant 4 : index
    %c0_28 = arith.constant 0 : index
    %c0_29 = arith.constant 0 : index
    %c0_30 = arith.constant 0 : index
    %25 = vector.load %arg1[%c4, %c0_28, %c0_29, %c0_30] : memref<9x1x4x64xbf16, #tpu.memory_space<vmem>>, vector<1x1x4x64xbf16>
    %26 = vector.shape_cast %25 : vector<1x1x4x64xbf16> to vector<4x64xbf16>
    %c4_31 = arith.constant 4 : index
    %c0_32 = arith.constant 0 : index
    %c0_33 = arith.constant 0 : index
    %27 = vector.load %arg2[%c4_31, %c0_32, %c0_33] : memref<9x64x128xbf16, #tpu.memory_space<vmem>>, vector<1x64x128xbf16>
    %28 = vector.shape_cast %27 : vector<1x64x128xbf16> to vector<64x128xbf16>
    %cst_34 = arith.constant dense<0.000000e+00> : vector<4x128xf32>
    %29 = tpu.matmul %26, %28, %cst_34 {dimension_numbers = #tpu.dot_dimension_numbers<[1], [0], [0], [1], [0, 0, 1, 1], [], []>} : vector<4x64xbf16>, vector<64x128xbf16>, vector<4x128xf32> -> vector<4x128xf32>
    %30 = arith.addf %24, %29 : vector<4x128xf32>
    %c5 = arith.constant 5 : index
    %c0_35 = arith.constant 0 : index
    %c0_36 = arith.constant 0 : index
    %c0_37 = arith.constant 0 : index
    %31 = vector.load %arg1[%c5, %c0_35, %c0_36, %c0_37] : memref<9x1x4x64xbf16, #tpu.memory_space<vmem>>, vector<1x1x4x64xbf16>
    %32 = vector.shape_cast %31 : vector<1x1x4x64xbf16> to vector<4x64xbf16>
    %c5_38 = arith.constant 5 : index
    %c0_39 = arith.constant 0 : index
    %c0_40 = arith.constant 0 : index
    %33 = vector.load %arg2[%c5_38, %c0_39, %c0_40] : memref<9x64x128xbf16, #tpu.memory_space<vmem>>, vector<1x64x128xbf16>
    %34 = vector.shape_cast %33 : vector<1x64x128xbf16> to vector<64x128xbf16>
    %cst_41 = arith.constant dense<0.000000e+00> : vector<4x128xf32>
    %35 = tpu.matmul %32, %34, %cst_41 {dimension_numbers = #tpu.dot_dimension_numbers<[1], [0], [0], [1], [0, 0, 1, 1], [], []>} : vector<4x64xbf16>, vector<64x128xbf16>, vector<4x128xf32> -> vector<4x128xf32>
    %36 = arith.addf %30, %35 : vector<4x128xf32>
    %c6 = arith.constant 6 : index
    %c0_42 = arith.constant 0 : index
    %c0_43 = arith.constant 0 : index
    %c0_44 = arith.constant 0 : index
    %37 = vector.load %arg1[%c6, %c0_42, %c0_43, %c0_44] : memref<9x1x4x64xbf16, #tpu.memory_space<vmem>>, vector<1x1x4x64xbf16>
    %38 = vector.shape_cast %37 : vector<1x1x4x64xbf16> to vector<4x64xbf16>
    %c6_45 = arith.constant 6 : index
    %c0_46 = arith.constant 0 : index
    %c0_47 = arith.constant 0 : index
    %39 = vector.load %arg2[%c6_45, %c0_46, %c0_47] : memref<9x64x128xbf16, #tpu.memory_space<vmem>>, vector<1x64x128xbf16>
    %40 = vector.shape_cast %39 : vector<1x64x128xbf16> to vector<64x128xbf16>
    %cst_48 = arith.constant dense<0.000000e+00> : vector<4x128xf32>
    %41 = tpu.matmul %38, %40, %cst_48 {dimension_numbers = #tpu.dot_dimension_numbers<[1], [0], [0], [1], [0, 0, 1, 1], [], []>} : vector<4x64xbf16>, vector<64x128xbf16>, vector<4x128xf32> -> vector<4x128xf32>
    %42 = arith.addf %36, %41 : vector<4x128xf32>
    %c7 = arith.constant 7 : index
    %c0_49 = arith.constant 0 : index
    %c0_50 = arith.constant 0 : index
    %c0_51 = arith.constant 0 : index
    %43 = vector.load %arg1[%c7, %c0_49, %c0_50, %c0_51] : memref<9x1x4x64xbf16, #tpu.memory_space<vmem>>, vector<1x1x4x64xbf16>
    %44 = vector.shape_cast %43 : vector<1x1x4x64xbf16> to vector<4x64xbf16>
    %c7_52 = arith.constant 7 : index
    %c0_53 = arith.constant 0 : index
    %c0_54 = arith.constant 0 : index
    %45 = vector.load %arg2[%c7_52, %c0_53, %c0_54] : memref<9x64x128xbf16, #tpu.memory_space<vmem>>, vector<1x64x128xbf16>
    %46 = vector.shape_cast %45 : vector<1x64x128xbf16> to vector<64x128xbf16>
    %cst_55 = arith.constant dense<0.000000e+00> : vector<4x128xf32>
    %47 = tpu.matmul %44, %46, %cst_55 {dimension_numbers = #tpu.dot_dimension_numbers<[1], [0], [0], [1], [0, 0, 1, 1], [], []>} : vector<4x64xbf16>, vector<64x128xbf16>, vector<4x128xf32> -> vector<4x128xf32>
    %48 = arith.addf %42, %47 : vector<4x128xf32>
    %c8 = arith.constant 8 : index
    %c0_56 = arith.constant 0 : index
    %c0_57 = arith.constant 0 : index
    %c0_58 = arith.constant 0 : index
    %49 = vector.load %arg1[%c8, %c0_56, %c0_57, %c0_58] : memref<9x1x4x64xbf16, #tpu.memory_space<vmem>>, vector<1x1x4x64xbf16>
    %50 = vector.shape_cast %49 : vector<1x1x4x64xbf16> to vector<4x64xbf16>
    %c8_59 = arith.constant 8 : index
    %c0_60 = arith.constant 0 : index
    %c0_61 = arith.constant 0 : index
    %51 = vector.load %arg2[%c8_59, %c0_60, %c0_61] : memref<9x64x128xbf16, #tpu.memory_space<vmem>>, vector<1x64x128xbf16>
    %52 = vector.shape_cast %51 : vector<1x64x128xbf16> to vector<64x128xbf16>
    %cst_62 = arith.constant dense<0.000000e+00> : vector<4x128xf32>
    %53 = tpu.matmul %50, %52, %cst_62 {dimension_numbers = #tpu.dot_dimension_numbers<[1], [0], [0], [1], [0, 0, 1, 1], [], []>} : vector<4x64xbf16>, vector<64x128xbf16>, vector<4x128xf32> -> vector<4x128xf32>
    %54 = arith.addf %48, %53 : vector<4x128xf32>
    %c0_63 = arith.constant 0 : index
    %c0_64 = arith.constant 0 : index
    %55 = vector.load %arg3[%c0_63, %c0_64] : memref<1x128xf32, #tpu.memory_space<vmem>>, vector<1x128xf32>
    %56 = vector.broadcast %55 : vector<1x128xf32> to vector<4x128xf32>
    %57 = arith.addf %54, %56 : vector<4x128xf32>
    %cst_65 = arith.constant 0.000000e+00 : f32
    %58 = vector.broadcast %cst_65 : f32 to vector<4x128xf32>
    %59 = arith.maximumf %57, %58 : vector<4x128xf32>
    %cst_66 = arith.constant dense<0.000000e+00> : vector<128xf32>
    %60 = vector.multi_reduction <add>, %59, %cst_66 [0] : vector<4x128xf32> to vector<128xf32>
    %61 = vector.shape_cast %60 : vector<128xf32> to vector<1x128xf32>
    %cst_67 = arith.constant 4.000000e+00 : f32
    %62 = vector.broadcast %cst_67 : f32 to vector<1x128xf32>
    %63 = arith.divf %61, %62 : vector<1x128xf32>
    %64 = arith.truncf %63 : vector<1x128xf32> to vector<1x128xbf16>
    %c0_68 = arith.constant 0 : index
    %c0_69 = arith.constant 0 : index
    %65 = vector.load %arg4[%c0_68, %c0_69] : memref<128x128xbf16, #tpu.memory_space<vmem>>, vector<128x128xbf16>
    %cst_70 = arith.constant dense<0.000000e+00> : vector<1x128xf32>
    %66 = tpu.matmul %64, %65, %cst_70 {dimension_numbers = #tpu.dot_dimension_numbers<[1], [0], [0], [1], [0, 0, 1, 1], [], []>} : vector<1x128xbf16>, vector<128x128xbf16>, vector<1x128xf32> -> vector<1x128xf32>
    %c0_71 = arith.constant 0 : index
    %c0_72 = arith.constant 0 : index
    %67 = vector.load %arg5[%c0_71, %c0_72] : memref<1x128xf32, #tpu.memory_space<vmem>>, vector<1x128xf32>
    %68 = arith.addf %66, %67 : vector<1x128xf32>
    %69 = math.tanh %68 : vector<1x128xf32>
    %c0_73 = arith.constant 0 : index
    %c0_74 = arith.constant 0 : index
    %c0_75 = arith.constant 0 : index
    %70 = vector.load %arg6[%c0_73, %c0_74, %c0_75] : memref<1x1x128xf32, #tpu.memory_space<vmem>>, vector<1x1x128xf32>
    %71 = vector.shape_cast %70 : vector<1x1x128xf32> to vector<1x128xf32>
    %72 = vector.shape_cast %69 : vector<1x128xf32> to vector<1x1x128xf32>
    tpu.vector_store %arg6[%c0_73, %c0_74, %c0_75], %72 {strides = array<i32>} : memref<1x1x128xf32, #tpu.memory_space<vmem>>, vector<1x1x128xf32>,
    return
  }
  func.func @transform_0(%arg0: i32) -> (i32, i32, i32, i32) {
    %c0_i32 = arith.constant 0 : i32
    %c0_i32_0 = arith.constant 0 : i32
    %c0_i32_1 = arith.constant 0 : i32
    %c0_i32_2 = arith.constant 0 : i32
    return %c0_i32, %arg0, %c0_i32_0, %c0_i32_1 : i32, i32, i32, i32
  }
  func.func @transform_1(%arg0: i32) -> (i32, i32, i32) {
    %c0_i32 = arith.constant 0 : i32
    %c0_i32_0 = arith.constant 0 : i32
    %c0_i32_1 = arith.constant 0 : i32
    %c0_i32_2 = arith.constant 0 : i32
    return %c0_i32, %c0_i32_0, %c0_i32_1 : i32, i32, i32
  }
  func.func @transform_2(%arg0: i32) -> (i32, i32) {
    %c0_i32 = arith.constant 0 : i32
    %c0_i32_0 = arith.constant 0 : i32
    %c0_i32_1 = arith.constant 0 : i32
    return %c0_i32, %c0_i32_0 : i32, i32
  }
  func.func @transform_3(%arg0: i32) -> (i32, i32) {
    %c0_i32 = arith.constant 0 : i32
    %c0_i32_0 = arith.constant 0 : i32
    %c0_i32_1 = arith.constant 0 : i32
    return %c0_i32, %c0_i32_0 : i32, i32
  }
  func.func @transform_4(%arg0: i32) -> (i32, i32) {
    %c0_i32 = arith.constant 0 : i32
    %c0_i32_0 = arith.constant 0 : i32
    %c0_i32_1 = arith.constant 0 : i32
    return %c0_i32, %c0_i32_0 : i32, i32
  }
  func.func @transform_5(%arg0: i32) -> (i32, i32, i32) {
    %c0_i32 = arith.constant 0 : i32
    %c0_i32_0 = arith.constant 0 : i32
    %c0_i32_1 = arith.constant 0 : i32
    return %arg0, %c0_i32, %c0_i32_0 : i32, i32, i32
  }
}

</mosaic_0001>

<llo_original>
// kernel: flexible_image_encoder.3
$region0: #{flexible_image_encoder.3}
  #allocation0 [shape = 'u32[]', space=smem, size = 0x4, offset = 0x4, fixed_abs, tag = 'smem constant byte address 0x4 - core index']
  #allocation1 [shape = 'u32[144,128]{1,0:T(1,128)}', space=vmem, size = 0x12000, scoped, tag = 'internal scratch']
  %s0 = inlined_call_operand.vmem [shape: bf16[9,2,64,4], index: 0, kind: input, shape index: {}]
  %s1 = inlined_call_operand.vmem [shape: bf16[9,4,128], index: 1, kind: input, shape index: {}]
  %s2 = inlined_call_operand.vmem [shape: f32[1,128], index: 2, kind: input, shape index: {}]
  %s3 = inlined_call_operand.vmem [shape: bf16[2,64,128], index: 3, kind: output, shape index: {}]
  %s4 = sld [smem:[#allocation0]]
  $region86: #{flexible_image_encoder.3} parent=0
    _
  %s6 = ssub.s32 1, %s4
  %s7 = scalar_select 0, %s6, %s4
  $region1: #{flexible_image_encoder.3} parent=0
    #allocation2 [shape = 'u8[294912]{0}', space=vmem, size = 0x48000, scoped, tag = 'input window, operand 0']
    loop: start=0, step=1, limit=4
    $region2: #{flexible_image_encoder.3} parent=1 // loop_pre_header
      _
    $region3: #{flexible_image_encoder.3} parent=1 // loop_header
      %s9 = sphi 0, %s13
      %p10 = scmp.ge.s32.totalorder %s9, 4
      %s19 = sphi 0, %s21
      %s22 = sphi 0, %s19
      %s23 = sphi 0, %s22
      %s39 = sphi 0, %s23
      %s43 = sphi 0, %s43
      %s45 = sphi 0, %s43
      %s46 = sphi 0, %s45
      %s60 = sphi 0, %s46
      %s64 = sphi 0, %s64
      %s66 = sphi 0, %s64
      %s67 = sphi 0, %s66
      %s81 = sphi 0, %s67
      %s87 = sphi 0, %s89
      %s90 = sphi 0, %s87
      %s91 = sphi 0, %s90
      %s107 = sphi 0, %s91
    $region4: #{flexible_image_encoder.3} parent=1 // loop_header_branch
      %12 = sbr.rel (%p10) target = $region8
    $region5: #{flexible_image_encoder.3} parent=1 // loop_body
      %s14 = ssub.s32 %s9, 1
      %s15 = ssub.s32 %s9, 2
      %s16 = sadd.s32 %s9, 1
      %s17 = ssub.s32 %s9, %s16
      %p18 = scmp.eq.s32.totalorder %s17, 0
      %s20 = sadd.s32 %s19, 1
      %s21 = scalar_select %p18, %s19, %s20
      %p24 = pneg %p18
      %p25 = scmp.eq.s32.totalorder %s9, 1
      %p26 = por %p24, %p25
      %p27 = scmp.ne.s32.totalorder %s19, %s22
      %p28 = scmp.eq.s32.totalorder %s9, 0
      %p29 = por %p27, %p28
      %p30 = scmp.ne.s32.totalorder %s19, %s22
      %p31 = scmp.eq.s32.totalorder %s14, 1
      %p32 = por %p30, %p31
      %p33 = scmp.ne.s32.totalorder %s22, %s23
      %p34 = scmp.eq.s32.totalorder %s14, 0
      %p35 = por %p33, %p34
      %p36 = scmp.ne.s32.totalorder %s22, %s23
      %p37 = scmp.eq.s32.totalorder %s15, 1
      %p38 = por %p36, %p37
      %p40 = scmp.ne.s32.totalorder %s23, %s39
      %p41 = scmp.eq.s32.totalorder %s15, 0
      %p42 = por %p40, %p41
      %s44 = sadd.s32 %s43, 1
      %p47 = scmp.eq.s32.totalorder %s9, 1
      %p48 = scmp.ne.s32.totalorder %s43, %s45
      %p49 = scmp.eq.s32.totalorder %s9, 0
      %p50 = por %p48, %p49
      %p51 = scmp.ne.s32.totalorder %s43, %s45
      %p52 = scmp.eq.s32.totalorder %s14, 1
      %p53 = por %p51, %p52
      %p54 = scmp.ne.s32.totalorder %s45, %s46
      %p55 = scmp.eq.s32.totalorder %s14, 0
      %p56 = por %p54, %p55
      %p57 = scmp.ne.s32.totalorder %s45, %s46
      %p58 = scmp.eq.s32.totalorder %s15, 1
      %p59 = por %p57, %p58
      %p61 = scmp.ne.s32.totalorder %s46, %s60
      %p62 = scmp.eq.s32.totalorder %s15, 0
      %p63 = por %p61, %p62
      %s65 = sadd.s32 %s64, 1
      %p68 = scmp.eq.s32.totalorder %s9, 1
      %p69 = scmp.ne.s32.totalorder %s64, %s66
      %p70 = scmp.eq.s32.totalorder %s9, 0
      %p71 = por %p69, %p70
      %p72 = scmp.ne.s32.totalorder %s64, %s66
      %p73 = scmp.eq.s32.totalorder %s14, 1
      %p74 = por %p72, %p73
      %p75 = scmp.ne.s32.totalorder %s66, %s67
      %p76 = scmp.eq.s32.totalorder %s14, 0
      %p77 = por %p75, %p76
      %p78 = scmp.ne.s32.totalorder %s66, %s67
      %p79 = scmp.eq.s32.totalorder %s15, 1
      %p80 = por %p78, %p79
      %p82 = scmp.ne.s32.totalorder %s67, %s81
      %p83 = scmp.eq.s32.totalorder %s15, 0
      %p84 = por %p82, %p83
      %s85 = ssub.s32 %s9, %s16
      %p86 = scmp.eq.s32.totalorder %s85, 0
      %s88 = sadd.s32 %s87, 1
      %s89 = scalar_select %p86, %s87, %s88
      %p92 = pneg %p86
      %p93 = scmp.eq.s32.totalorder %s9, 1
      %p94 = por %p92, %p93
      %p95 = scmp.ne.s32.totalorder %s87, %s90
      %p96 = scmp.eq.s32.totalorder %s9, 0
      %p97 = por %p95, %p96
      %p98 = scmp.ne.s32.totalorder %s87, %s90
      %p99 = scmp.eq.s32.totalorder %s14, 1
      %p100 = por %p98, %p99
      %p101 = scmp.ne.s32.totalorder %s90, %s91
      %p102 = scmp.eq.s32.totalorder %s14, 0
      %p103 = por %p101, %p102
      %p104 = scmp.ne.s32.totalorder %s90, %s91
      %p105 = scmp.eq.s32.totalorder %s15, 1
      %p106 = por %p104, %p105
      %p108 = scmp.ne.s32.totalorder %s91, %s107
      %p109 = scmp.eq.s32.totalorder %s15, 0
      %p110 = por %p108, %p109
      %p111 = scmp.le.s32.totalorder 1, %s9
      %p112 = scmp.lt.s32.totalorder %s9, 3
      %p113 = pnand %p111, %p112
      %p114 = pneg %p113
      // Predicated region
      $region9: #{flexible_image_encoder.3} parent=5 // pred_check
        _
      $region10: #{flexible_image_encoder.3} parent=5 // pred_check_branch
        %116 = sbr.rel (%p113) target = $region12
      $region11: #{flexible_image_encoder.3} parent=5 // pred_region
        %s117 = ssub.s32 %s9, 1
        // Predicated region
        $region13: #{flexible_image_encoder.3} parent=11 // pred_check
          %p118 = pneg %p56
        $region14: #{flexible_image_encoder.3} parent=11 // pred_check_branch
          %120 = sbr.rel (%p118) target = $region16
        $region15: #{flexible_image_encoder.3} parent=11 // pred_region
          _
        $region16: #{flexible_image_encoder.3} parent=11 // pred_fallthru
          _
        // Predicated region
        $region17: #{flexible_image_encoder.3} parent=11 // pred_check
          %p121 = pneg %p77
        $region18: #{flexible_image_encoder.3} parent=11 // pred_check_branch
          %123 = sbr.rel (%p121) target = $region20
        $region19: #{flexible_image_encoder.3} parent=11 // pred_region
          _
        $region20: #{flexible_image_encoder.3} parent=11 // pred_fallthru
          _
      $region12: #{flexible_image_encoder.3} parent=5 // pred_fallthru
        _
      %p124 = scmp.lt.s32.totalorder %s9, 2
      // Predicated region
      $region21: #{flexible_image_encoder.3} parent=5 // pred_check
        %p125 = pneg %p124
      $region22: #{flexible_image_encoder.3} parent=5 // pred_check_branch
        %127 = sbr.rel (%p125) target = $region24
      $region23: #{flexible_image_encoder.3} parent=5 // pred_region
        // Predicated region
        $region25: #{flexible_image_encoder.3} parent=23 // pred_check
          %p128 = pneg %p29
        $region26: #{flexible_image_encoder.3} parent=23 // pred_check_branch
          %130 = sbr.rel (%p128) target = $region28
        $region27: #{flexible_image_encoder.3} parent=23 // pred_region
          %s131 = sand.u32 %s19, 1
          %s132 = sand.u32 %s19, 1
          %s133 = smul.addr %s132, 288
          %s134 = scalar_lea.vmem [#allocation2], %s133
          %s135 = smul.addr %s9, 8
          %s136 = smul.addr %s135, 4
          %s137 = scalar_lea.vmem %s0, %s136
          // Predicated region
          $region29: #{flexible_image_encoder.3} parent=27 // pred_check
            _
          $region30: #{flexible_image_encoder.3} parent=27 // pred_check_branch
            %139 = sbr.rel (0) target = $region32
          $region31: #{flexible_image_encoder.3} parent=27 // pred_region
            // Predicated region
            $region33: #{flexible_image_encoder.3} parent=31 // pred_check
              _
            $region34: #{flexible_image_encoder.3} parent=31 // pred_check_branch
              %141 = sbr.rel target = $region36
            $region35: #{flexible_image_encoder.3} parent=31 // pred_region
              // Predicated region
              $region48: #{flexible_image_encoder.3} parent=35 // pred_check
                _
              $region49: #{flexible_image_encoder.3} parent=35 // pred_check_branch
                %299 = sbr.rel (0) target = $region51
              $region50: #{flexible_image_encoder.3} parent=35 // pred_region
                loop: start=0, step=1, limit=1
                $region52: #{flexible_image_encoder.3} parent=50 // loop_pre_header
                  _
                $region53: #{flexible_image_encoder.3} parent=50 // loop_header
                  %s301 = sphi 0, %s305
                  %p302 = scmp.ge.s32.totalorder %s301, 1
                  %s306 = sphi %s137, %s137
                  %s307 = sphi %s134, %s134
                $region54: #{flexible_image_encoder.3} parent=50 // loop_header_branch
                  %304 = sbr.rel (%p302) target = $region58
                $region55: #{flexible_image_encoder.3} parent=50 // loop_body
                  _
                $region56: #{flexible_image_encoder.3} parent=50 // loop_footer
                  %s305 = sadd.s32 1, %s301
                $region57: #{flexible_image_encoder.3} parent=50 // loop_footer_branch
                  %300 = sbr.rel target = $region53
                $region58: #{flexible_image_encoder.3} parent=50 // loop_exit
                  _
                %s309 = ssub.s32 16, 1
                loop: start=0, step=1, limit=1
                $region59: #{flexible_image_encoder.3} parent=50 // loop_pre_header
                  _
                $region60: #{flexible_image_encoder.3} parent=50 // loop_header
                  %s311 = sphi 0, %s315
                  %p312 = scmp.ge.s32.totalorder %s311, 1
                  %s316 = sphi %s137, %s137
                  %s317 = sphi %s134, %s134
                $region61: #{flexible_image_encoder.3} parent=50 // loop_header_branch
                  %314 = sbr.rel (%p312) target = $region65
                $region62: #{flexible_image_encoder.3} parent=50 // loop_body
                  %v318 = vld [vmem:[%s316] sm:%s309]
                  %319 = vst [vmem:[%s317] sm:%s309] %v318
                  %v320 = vld [vmem:[%s316 + $0x4] sm:%s309]
                  %321 = vst [vmem:[%s317 + $0x4] sm:%s309] %v320
                  %v322 = vld [vmem:[%s316 + $0x8] sm:%s309]
                  %323 = vst [vmem:[%s317 + $0x8] sm:%s309] %v322
                  %v324 = vld [vmem:[%s316 + $0xc] sm:%s309]
                  %325 = vst [vmem:[%s317 + $0xc] sm:%s309] %v324
                  %v326 = vld [vmem:[%s316 + $0x10] sm:%s309]
                  %327 = vst [vmem:[%s317 + $0x10] sm:%s309] %v326
                  %v328 = vld [vmem:[%s316 + $0x14] sm:%s309]
                  %329 = vst [vmem:[%s317 + $0x14] sm:%s309] %v328
                  %v330 = vld [vmem:[%s316 + $0x18] sm:%s309]
                  %331 = vst [vmem:[%s317 + $0x18] sm:%s309] %v330
                  %v332 = vld [vmem:[%s316 + $0x1c] sm:%s309]
                  %333 = vst [vmem:[%s317 + $0x1c] sm:%s309] %v332
                  %v334 = vld [vmem:[%s316 + $0x40] sm:%s309]
                  %335 = vst [vmem:[%s317 + $0x20] sm:%s309] %v334
                  %v336 = vld [vmem:[%s316 + $0x44] sm:%s309]
                  %337 = vst [vmem:[%s317 + $0x24] sm:%s309] %v336
                  %v338 = vld [vmem:[%s316 + $0x48] sm:%s309]
                  %339 = vst [vmem:[%s317 + $0x28] sm:%s309] %v338
                  %v340 = vld [vmem:[%s316 + $0x4c] sm:%s309]
                  %341 = vst [vmem:[%s317 + $0x2c] sm:%s309] %v340
                  %v342 = vld [vmem:[%s316 + $0x50] sm:%s309]
                  %343 = vst [vmem:[%s317 + $0x30] sm:%s309] %v342
                  %v344 = vld [vmem:[%s316 + $0x54] sm:%s309]
                  %345 = vst [vmem:[%s317 + $0x34] sm:%s309] %v344
                  %v346 = vld [vmem:[%s316 + $0x58] sm:%s309]
                  %347 = vst [vmem:[%s317 + $0x38] sm:%s309] %v346
                  %v348 = vld [vmem:[%s316 + $0x5c] sm:%s309]
                  %349 = vst [vmem:[%s317 + $0x3c] sm:%s309] %v348
                  %v350 = vld [vmem:[%s316 + $0x80] sm:%s309]
                  %351 = vst [vmem:[%s317 + $0x40] sm:%s309] %v350
                  %v352 = vld [vmem:[%s316 + $0x84] sm:%s309]
                  %353 = vst [vmem:[%s317 + $0x44] sm:%s309] %v352
                  %v354 = vld [vmem:[%s316 + $0x88] sm:%s309]
                  %355 = vst [vmem:[%s317 + $0x48] sm:%s309] %v354
                  %v356 = vld [vmem:[%s316 + $0x8c] sm:%s309]
                  %357 = vst [vmem:[%s317 + $0x4c] sm:%s309] %v356
                  %v358 = vld [vmem:[%s316 + $0x90] sm:%s309]
                  %359 = vst [vmem:[%s317 + $0x50] sm:%s309] %v358
                  %v360 = vld [vmem:[%s316 + $0x94] sm:%s309]
                  %361 = vst [vmem:[%s317 + $0x54] sm:%s309] %v360
                  %v362 = vld [vmem:[%s316 + $0x98] sm:%s309]
                  %363 = vst [vmem:[%s317 + $0x58] sm:%s309] %v362
                  %v364 = vld [vmem:[%s316 + $0x9c] sm:%s309]
                  %365 = vst [vmem:[%s317 + $0x5c] sm:%s309] %v364
                  %v366 = vld [vmem:[%s316 + $0xc0] sm:%s309]
                  %367 = vst [vmem:[%s317 + $0x60] sm:%s309] %v366
                  %v368 = vld [vmem:[%s316 + $0xc4] sm:%s309]
                  %369 = vst [vmem:[%s317 + $0x64] sm:%s309] %v368
                  %v370 = vld [vmem:[%s316 + $0xc8] sm:%s309]
                  %371 = vst [vmem:[%s317 + $0x68] sm:%s309] %v370
                  %v372 = vld [vmem:[%s316 + $0xcc] sm:%s309]
                  %373 = vst [vmem:[%s317 + $0x6c] sm:%s309] %v372
                  %v374 = vld [vmem:[%s316 + $0xd0] sm:%s309]
                  %375 = vst [vmem:[%s317 + $0x70] sm:%s309] %v374
                  %v376 = vld [vmem:[%s316 + $0xd4] sm:%s309]
                  %377 = vst [vmem:[%s317 + $0x74] sm:%s309] %v376
                  %v378 = vld [vmem:[%s316 + $0xd8] sm:%s309]
                  %379 = vst [vmem:[%s317 + $0x78] sm:%s309] %v378
                  %v380 = vld [vmem:[%s316 + $0xdc] sm:%s309]
                  %381 = vst [vmem:[%s317 + $0x7c] sm:%s309] %v380
                  %v382 = vld [vmem:[%s316 + $0x100] sm:%s309]
                  %383 = vst [vmem:[%s317 + $0x80] sm:%s309] %v382
                  %v384 = vld [vmem:[%s316 + $0x104] sm:%s309]
                  %385 = vst [vmem:[%s317 + $0x84] sm:%s309] %v384
                  %v386 = vld [vmem:[%s316 + $0x108] sm:%s309]
                  %387 = vst [vmem:[%s317 + $0x88] sm:%s309] %v386
                  %v388 = vld [vmem:[%s316 + $0x10c] sm:%s309]
                  %389 = vst [vmem:[%s317 + $0x8c] sm:%s309] %v388
                  %v390 = vld [vmem:[%s316 + $0x110] sm:%s309]
                  %391 = vst [vmem:[%s317 + $0x90] sm:%s309] %v390
                  %v392 = vld [vmem:[%s316 + $0x114] sm:%s309]
                  %393 = vst [vmem:[%s317 + $0x94] sm:%s309] %v392
                  %v394 = vld [vmem:[%s316 + $0x118] sm:%s309]
                  %395 = vst [vmem:[%s317 + $0x98] sm:%s309] %v394
                  %v396 = vld [vmem:[%s316 + $0x11c] sm:%s309]
                  %397 = vst [vmem:[%s317 + $0x9c] sm:%s309] %v396
                  %v398 = vld [vmem:[%s316 + $0x140] sm:%s309]
                  %399 = vst [vmem:[%s317 + $0xa0] sm:%s309] %v398
                  %v400 = vld [vmem:[%s316 + $0x144] sm:%s309]
                  %401 = vst [vmem:[%s317 + $0xa4] sm:%s309] %v400
                  %v402 = vld [vmem:[%s316 + $0x148] sm:%s309]
                  %403 = vst [vmem:[%s317 + $0xa8] sm:%s309] %v402
                  %v404 = vld [vmem:[%s316 + $0x14c] sm:%s309]
                  %405 = vst [vmem:[%s317 + $0xac] sm:%s309] %v404
                  %v406 = vld [vmem:[%s316 + $0x150] sm:%s309]
                  %407 = vst [vmem:[%s317 + $0xb0] sm:%s309] %v406
                  %v408 = vld [vmem:[%s316 + $0x154] sm:%s309]
                  %409 = vst [vmem:[%s317 + $0xb4] sm:%s309] %v408
                  %v410 = vld [vmem:[%s316 + $0x158] sm:%s309]
                  %411 = vst [vmem:[%s317 + $0xb8] sm:%s309] %v410
                  %v412 = vld [vmem:[%s316 + $0x15c] sm:%s309]
                  %413 = vst [vmem:[%s317 + $0xbc] sm:%s309] %v412
                  %v414 = vld [vmem:[%s316 + $0x180] sm:%s309]
                  %415 = vst [vmem:[%s317 + $0xc0] sm:%s309] %v414
                  %v416 = vld [vmem:[%s316 + $0x184] sm:%s309]
                  %417 = vst [vmem:[%s317 + $0xc4] sm:%s309] %v416
                  %v418 = vld [vmem:[%s316 + $0x188] sm:%s309]
                  %419 = vst [vmem:[%s317 + $0xc8] sm:%s309] %v418
                  %v420 = vld [vmem:[%s316 + $0x18c] sm:%s309]
                  %421 = vst [vmem:[%s317 + $0xcc] sm:%s309] %v420
                  %v422 = vld [vmem:[%s316 + $0x190] sm:%s309]
                  %423 = vst [vmem:[%s317 + $0xd0] sm:%s309] %v422
                  %v424 = vld [vmem:[%s316 + $0x194] sm:%s309]
                  %425 = vst [vmem:[%s317 + $0xd4] sm:%s309] %v424
                  %v426 = vld [vmem:[%s316 + $0x198] sm:%s309]
                  %427 = vst [vmem:[%s317 + $0xd8] sm:%s309] %v426
                  %v428 = vld [vmem:[%s316 + $0x19c] sm:%s309]
                  %429 = vst [vmem:[%s317 + $0xdc] sm:%s309] %v428
                  %v430 = vld [vmem:[%s316 + $0x1c0] sm:%s309]
                  %431 = vst [vmem:[%s317 + $0xe0] sm:%s309] %v430
                  %v432 = vld [vmem:[%s316 + $0x1c4] sm:%s309]
                  %433 = vst [vmem:[%s317 + $0xe4] sm:%s309] %v432
                  %v434 = vld [vmem:[%s316 + $0x1c8] sm:%s309]
                  %435 = vst [vmem:[%s317 + $0xe8] sm:%s309] %v434
                  %v436 = vld [vmem:[%s316 + $0x1cc] sm:%s309]
                  %437 = vst [vmem:[%s317 + $0xec] sm:%s309] %v436
                  %v438 = vld [vmem:[%s316 + $0x1d0] sm:%s309]
                  %439 = vst [vmem:[%s317 + $0xf0] sm:%s309] %v438
                  %v440 = vld [vmem:[%s316 + $0x1d4] sm:%s309]
                  %441 = vst [vmem:[%s317 + $0xf4] sm:%s309] %v440
                  %v442 = vld [vmem:[%s316 + $0x1d8] sm:%s309]
                  %443 = vst [vmem:[%s317 + $0xf8] sm:%s309] %v442
                  %v444 = vld [vmem:[%s316 + $0x1dc] sm:%s309]
                  %445 = vst [vmem:[%s317 + $0xfc] sm:%s309] %v444
                  %v446 = vld [vmem:[%s316 + $0x200] sm:%s309]
                  %447 = vst [vmem:[%s317 + $0x100] sm:%s309] %v446
                  %v448 = vld [vmem:[%s316 + $0x204] sm:%s309]
                  %449 = vst [vmem:[%s317 + $0x104] sm:%s309] %v448
                  %v450 = vld [vmem:[%s316 + $0x208] sm:%s309]
                  %451 = vst [vmem:[%s317 + $0x108] sm:%s309] %v450
                  %v452 = vld [vmem:[%s316 + $0x20c] sm:%s309]
                  %453 = vst [vmem:[%s317 + $0x10c] sm:%s309] %v452
                  %v454 = vld [vmem:[%s316 + $0x210] sm:%s309]
                  %455 = vst [vmem:[%s317 + $0x110] sm:%s309] %v454
                  %v456 = vld [vmem:[%s316 + $0x214] sm:%s309]
                  %457 = vst [vmem:[%s317 + $0x114] sm:%s309] %v456
                  %v458 = vld [vmem:[%s316 + $0x218] sm:%s309]
                  %459 = vst [vmem:[%s317 + $0x118] sm:%s309] %v458
                  %v460 = vld [vmem:[%s316 + $0x21c] sm:%s309]
                  %461 = vst [vmem:[%s317 + $0x11c] sm:%s309] %v460
                $region63: #{flexible_image_encoder.3} parent=50 // loop_footer
                  %s315 = sadd.s32 1, %s311
                $region64: #{flexible_image_encoder.3} parent=50 // loop_footer_branch
                  %310 = sbr.rel target = $region60
                $region65: #{flexible_image_encoder.3} parent=50 // loop_exit
                  _
              $region51: #{flexible_image_encoder.3} parent=35 // pred_fallthru
                _
            $region36: #{flexible_image_encoder.3} parent=31 // pred_fallthru
              _
            // Predicated region
            $region37: #{flexible_image_encoder.3} parent=31 // pred_check
              _
            $region38: #{flexible_image_encoder.3} parent=31 // pred_check_branch
              %143 = sbr.rel (0) target = $region40
            $region39: #{flexible_image_encoder.3} parent=31 // pred_region
              %s145 = ssub.s32 16, 1
              loop: start=0, step=1, limit=1
              $region41: #{flexible_image_encoder.3} parent=39 // loop_pre_header
                _
              $region42: #{flexible_image_encoder.3} parent=39 // loop_header
                %s147 = sphi 0, %s151
                %p148 = scmp.ge.s32.totalorder %s147, 1
                %s152 = sphi %s137, %s137
                %s153 = sphi %s134, %s134
              $region43: #{flexible_image_encoder.3} parent=39 // loop_header_branch
                %150 = sbr.rel (%p148) target = $region47
              $region44: #{flexible_image_encoder.3} parent=39 // loop_body
                %v154 = vld [vmem:[%s152] sm:%s145]
                %155 = vst [vmem:[%s153] sm:%s145] %v154
                %v156 = vld [vmem:[%s152 + $0x4] sm:%s145]
                %157 = vst [vmem:[%s153 + $0x4] sm:%s145] %v156
                %v158 = vld [vmem:[%s152 + $0x8] sm:%s145]
                %159 = vst [vmem:[%s153 + $0x8] sm:%s145] %v158
                %v160 = vld [vmem:[%s152 + $0xc] sm:%s145]
                %161 = vst [vmem:[%s153 + $0xc] sm:%s145] %v160
                %v162 = vld [vmem:[%s152 + $0x10] sm:%s145]
                %163 = vst [vmem:[%s153 + $0x10] sm:%s145] %v162
                %v164 = vld [vmem:[%s152 + $0x14] sm:%s145]
                %165 = vst [vmem:[%s153 + $0x14] sm:%s145] %v164
                %v166 = vld [vmem:[%s152 + $0x18] sm:%s145]
                %167 = vst [vmem:[%s153 + $0x18] sm:%s145] %v166
                %v168 = vld [vmem:[%s152 + $0x1c] sm:%s145]
                %169 = vst [vmem:[%s153 + $0x1c] sm:%s145] %v168
                %v170 = vld [vmem:[%s152 + $0x40] sm:%s145]
                %171 = vst [vmem:[%s153 + $0x20] sm:%s145] %v170
                %v172 = vld [vmem:[%s152 + $0x44] sm:%s145]
                %173 = vst [vmem:[%s153 + $0x24] sm:%s145] %v172
                %v174 = vld [vmem:[%s152 + $0x48] sm:%s145]
                %175 = vst [vmem:[%s153 + $0x28] sm:%s145] %v174
                %v176 = vld [vmem:[%s152 + $0x4c] sm:%s145]
                %177 = vst [vmem:[%s153 + $0x2c] sm:%s145] %v176
                %v178 = vld [vmem:[%s152 + $0x50] sm:%s145]
                %179 = vst [vmem:[%s153 + $0x30] sm:%s145] %v178
                %v180 = vld [vmem:[%s152 + $0x54] sm:%s145]
                %181 = vst [vmem:[%s153 + $0x34] sm:%s145] %v180
                %v182 = vld [vmem:[%s152 + $0x58] sm:%s145]
                %183 = vst [vmem:[%s153 + $0x38] sm:%s145] %v182
                %v184 = vld [vmem:[%s152 + $0x5c] sm:%s145]
                %185 = vst [vmem:[%s153 + $0x3c] sm:%s145] %v184
                %v186 = vld [vmem:[%s152 + $0x80] sm:%s145]
                %187 = vst [vmem:[%s153 + $0x40] sm:%s145] %v186
                %v188 = vld [vmem:[%s152 + $0x84] sm:%s145]
                %189 = vst [vmem:[%s153 + $0x44] sm:%s145] %v188
                %v190 = vld [vmem:[%s152 + $0x88] sm:%s145]
                %191 = vst [vmem:[%s153 + $0x48] sm:%s145] %v190
                %v192 = vld [vmem:[%s152 + $0x8c] sm:%s145]
                %193 = vst [vmem:[%s153 + $0x4c] sm:%s145] %v192
                %v194 = vld [vmem:[%s152 + $0x90] sm:%s145]
                %195 = vst [vmem:[%s153 + $0x50] sm:%s145] %v194
                %v196 = vld [vmem:[%s152 + $0x94] sm:%s145]
                %197 = vst [vmem:[%s153 + $0x54] sm:%s145] %v196
                %v198 = vld [vmem:[%s152 + $0x98] sm:%s145]
                %199 = vst [vmem:[%s153 + $0x58] sm:%s145] %v198
                %v200 = vld [vmem:[%s152 + $0x9c] sm:%s145]
                %201 = vst [vmem:[%s153 + $0x5c] sm:%s145] %v200
                %v202 = vld [vmem:[%s152 + $0xc0] sm:%s145]
                %203 = vst [vmem:[%s153 + $0x60] sm:%s145] %v202
                %v204 = vld [vmem:[%s152 + $0xc4] sm:%s145]
                %205 = vst [vmem:[%s153 + $0x64] sm:%s145] %v204
                %v206 = vld [vmem:[%s152 + $0xc8] sm:%s145]
                %207 = vst [vmem:[%s153 + $0x68] sm:%s145] %v206
                %v208 = vld [vmem:[%s152 + $0xcc] sm:%s145]
                %209 = vst [vmem:[%s153 + $0x6c] sm:%s145] %v208
                %v210 = vld [vmem:[%s152 + $0xd0] sm:%s145]
                %211 = vst [vmem:[%s153 + $0x70] sm:%s145] %v210
                %v212 = vld [vmem:[%s152 + $0xd4] sm:%s145]
                %213 = vst [vmem:[%s153 + $0x74] sm:%s145] %v212
                %v214 = vld [vmem:[%s152 + $0xd8] sm:%s145]
                %215 = vst [vmem:[%s153 + $0x78] sm:%s145] %v214
                %v216 = vld [vmem:[%s152 + $0xdc] sm:%s145]
                %217 = vst [vmem:[%s153 + $0x7c] sm:%s145] %v216
                %v218 = vld [vmem:[%s152 + $0x100] sm:%s145]
                %219 = vst [vmem:[%s153 + $0x80] sm:%s145] %v218
                %v220 = vld [vmem:[%s152 + $0x104] sm:%s145]
                %221 = vst [vmem:[%s153 + $0x84] sm:%s145] %v220
                %v222 = vld [vmem:[%s152 + $0x108] sm:%s145]
                %223 = vst [vmem:[%s153 + $0x88] sm:%s145] %v222
                %v224 = vld [vmem:[%s152 + $0x10c] sm:%s145]
                %225 = vst [vmem:[%s153 + $0x8c] sm:%s145] %v224
                %v226 = vld [vmem:[%s152 + $0x110] sm:%s145]
                %227 = vst [vmem:[%s153 + $0x90] sm:%s145] %v226
                %v228 = vld [vmem:[%s152 + $0x114] sm:%s145]
                %229 = vst [vmem:[%s153 + $0x94] sm:%s145] %v228
                %v230 = vld [vmem:[%s152 + $0x118] sm:%s145]
                %231 = vst [vmem:[%s153 + $0x98] sm:%s145] %v230
                %v232 = vld [vmem:[%s152 + $0x11c] sm:%s145]
                %233 = vst [vmem:[%s153 + $0x9c] sm:%s145] %v232
                %v234 = vld [vmem:[%s152 + $0x140] sm:%s145]
                %235 = vst [vmem:[%s153 + $0xa0] sm:%s145] %v234
                %v236 = vld [vmem:[%s152 + $0x144] sm:%s145]
                %237 = vst [vmem:[%s153 + $0xa4] sm:%s145] %v236
                %v238 = vld [vmem:[%s152 + $0x148] sm:%s145]
                %239 = vst [vmem:[%s153 + $0xa8] sm:%s145] %v238
                %v240 = vld [vmem:[%s152 + $0x14c] sm:%s145]
                %241 = vst [vmem:[%s153 + $0xac] sm:%s145] %v240
                %v242 = vld [vmem:[%s152 + $0x150] sm:%s145]
                %243 = vst [vmem:[%s153 + $0xb0] sm:%s145] %v242
                %v244 = vld [vmem:[%s152 + $0x154] sm:%s145]
                %245 = vst [vmem:[%s153 + $0xb4] sm:%s145] %v244
                %v246 = vld [vmem:[%s152 + $0x158] sm:%s145]
                %247 = vst [vmem:[%s153 + $0xb8] sm:%s145] %v246
                %v248 = vld [vmem:[%s152 + $0x15c] sm:%s145]
                %249 = vst [vmem:[%s153 + $0xbc] sm:%s145] %v248
                %v250 = vld [vmem:[%s152 + $0x180] sm:%s145]
                %251 = vst [vmem:[%s153 + $0xc0] sm:%s145] %v250
                %v252 = vld [vmem:[%s152 + $0x184] sm:%s145]
                %253 = vst [vmem:[%s153 + $0xc4] sm:%s145] %v252
                %v254 = vld [vmem:[%s152 + $0x188] sm:%s145]
                %255 = vst [vmem:[%s153 + $0xc8] sm:%s145] %v254
                %v256 = vld [vmem:[%s152 + $0x18c] sm:%s145]
                %257 = vst [vmem:[%s153 + $0xcc] sm:%s145] %v256
                %v258 = vld [vmem:[%s152 + $0x190] sm:%s145]
                %259 = vst [vmem:[%s153 + $0xd0] sm:%s145] %v258
                %v260 = vld [vmem:[%s152 + $0x194] sm:%s145]
                %261 = vst [vmem:[%s153 + $0xd4] sm:%s145] %v260
                %v262 = vld [vmem:[%s152 + $0x198] sm:%s145]
                %263 = vst [vmem:[%s153 + $0xd8] sm:%s145] %v262
                %v264 = vld [vmem:[%s152 + $0x19c] sm:%s145]
                %265 = vst [vmem:[%s153 + $0xdc] sm:%s145] %v264
                %v266 = vld [vmem:[%s152 + $0x1c0] sm:%s145]
                %267 = vst [vmem:[%s153 + $0xe0] sm:%s145] %v266
                %v268 = vld [vmem:[%s152 + $0x1c4] sm:%s145]
                %269 = vst [vmem:[%s153 + $0xe4] sm:%s145] %v268
                %v270 = vld [vmem:[%s152 + $0x1c8] sm:%s145]
                %271 = vst [vmem:[%s153 + $0xe8] sm:%s145] %v270
                %v272 = vld [vmem:[%s152 + $0x1cc] sm:%s145]
                %273 = vst [vmem:[%s153 + $0xec] sm:%s145] %v272
                %v274 = vld [vmem:[%s152 + $0x1d0] sm:%s145]
                %275 = vst [vmem:[%s153 + $0xf0] sm:%s145] %v274
                %v276 = vld [vmem:[%s152 + $0x1d4] sm:%s145]
                %277 = vst [vmem:[%s153 + $0xf4] sm:%s145] %v276
                %v278 = vld [vmem:[%s152 + $0x1d8] sm:%s145]
                %279 = vst [vmem:[%s153 + $0xf8] sm:%s145] %v278
                %v280 = vld [vmem:[%s152 + $0x1dc] sm:%s145]
                %281 = vst [vmem:[%s153 + $0xfc] sm:%s145] %v280
                %v282 = vld [vmem:[%s152 + $0x200] sm:%s145]
                %283 = vst [vmem:[%s153 + $0x100] sm:%s145] %v282
                %v284 = vld [vmem:[%s152 + $0x204] sm:%s145]
                %285 = vst [vmem:[%s153 + $0x104] sm:%s145] %v284
                %v286 = vld [vmem:[%s152 + $0x208] sm:%s145]
                %287 = vst [vmem:[%s153 + $0x108] sm:%s145] %v286
                %v288 = vld [vmem:[%s152 + $0x20c] sm:%s145]
                %289 = vst [vmem:[%s153 + $0x10c] sm:%s145] %v288
                %v290 = vld [vmem:[%s152 + $0x210] sm:%s145]
                %291 = vst [vmem:[%s153 + $0x110] sm:%s145] %v290
                %v292 = vld [vmem:[%s152 + $0x214] sm:%s145]
                %293 = vst [vmem:[%s153 + $0x114] sm:%s145] %v292
                %v294 = vld [vmem:[%s152 + $0x218] sm:%s145]
                %295 = vst [vmem:[%s153 + $0x118] sm:%s145] %v294
                %v296 = vld [vmem:[%s152 + $0x21c] sm:%s145]
                %297 = vst [vmem:[%s153 + $0x11c] sm:%s145] %v296
              $region45: #{flexible_image_encoder.3} parent=39 // loop_footer
                %s151 = sadd.s32 1, %s147
              $region46: #{flexible_image_encoder.3} parent=39 // loop_footer_branch
                %146 = sbr.rel target = $region42
              $region47: #{flexible_image_encoder.3} parent=39 // loop_exit
                _
            $region40: #{flexible_image_encoder.3} parent=31 // pred_fallthru
              _
          $region32: #{flexible_image_encoder.3} parent=27 // pred_fallthru
            _
          %462 = vnop
        $region28: #{flexible_image_encoder.3} parent=23 // pred_fallthru
          _
      $region24: #{flexible_image_encoder.3} parent=5 // pred_fallthru
        _
      %p463 = scmp.le.s32.totalorder 1, %s9
      %p464 = scmp.lt.s32.totalorder %s9, 3
      %p465 = pnand %p463, %p464
      %p466 = pneg %p465
      // Predicated region
      $region66: #{flexible_image_encoder.3} parent=5 // pred_check
        _
      $region67: #{flexible_image_encoder.3} parent=5 // pred_check_branch
        %468 = sbr.rel (%p465) target = $region69
      $region68: #{flexible_image_encoder.3} parent=5 // pred_region
        %s469 = ssub.s32 %s9, 1
        %s470 = sand.u32 %s22, 1
        %s471 = sand.u32 %s22, 1
        %s472 = smul.addr %s471, 288
        %s473 = scalar_lea.vmem [#allocation2], %s472
        // Predicated region
        $region70: #{flexible_image_encoder.3} parent=68 // pred_check
          %p474 = pneg %p35
        $region71: #{flexible_image_encoder.3} parent=68 // pred_check_branch
          %476 = sbr.rel (%p474) target = $region73
        $region72: #{flexible_image_encoder.3} parent=68 // pred_region
          _
        $region73: #{flexible_image_encoder.3} parent=68 // pred_fallthru
          _
        %s477 = sand.u32 %s22, 1
        %s478 = sand.u32 %s22, 1
        %s479 = smul.addr %s478, 288
        %s480 = scalar_lea.vmem [#allocation2], %s479
        %p481 = pneg %p35
        %p482 = pneg %p32
        %p483 = pneg %p56
        %p484 = pneg %p53
        %p485 = pneg %p77
        %p486 = pneg %p74
        %p487 = pneg %p103
        %p488 = pneg %p100
        %p489 = scmp.lt.s32.totalorder %s14, 1
        %s490 = scalar_select %p489, %s14, 1
        %s491 = smul.addr %s490, 8
        %s492 = smul.addr %s491, 4
        %s493 = scalar_lea.vmem %s3, %s492
        %p494 = scmp.lt.s32.totalorder %s14, 1
        %s495 = scalar_select %p494, %s14, 1
        %s496 = smul.addr %s495, 8
        %s497 = smul.addr %s496, 4
        %s498 = scalar_lea.vmem %s3, %s497
        %v500 = vld [vmem:[%s473] sm:$0xf]
        %v501 = vld [vmem:[%s473 + $0x4] sm:$0xf]
        %v502 = vld [vmem:[%s473 + $0x8] sm:$0xf]
        %v503 = vld [vmem:[%s473 + $0xc] sm:$0xf]
        %v504 = vld [vmem:[%s473 + $0x10] sm:$0xf]
        %v505 = vld [vmem:[%s473 + $0x14] sm:$0xf]
        %v506 = vld [vmem:[%s473 + $0x18] sm:$0xf]
        %v507 = vld [vmem:[%s473 + $0x1c] sm:$0xf]
        %v508 = vld [vmem:[%s1] sm:$0x3]
        %s509 = scalar_lea.vmem %s473, 32 [#allocation2]
        %v510 = vld [vmem:[%s509] sm:$0xf]
        %v511 = vld [vmem:[%s509 + $0x4] sm:$0xf]
        %v512 = vld [vmem:[%s509 + $0x8] sm:$0xf]
        %v513 = vld [vmem:[%s509 + $0xc] sm:$0xf]
        %v514 = vld [vmem:[%s509 + $0x10] sm:$0xf]
        %v515 = vld [vmem:[%s509 + $0x14] sm:$0xf]
        %v516 = vld [vmem:[%s509 + $0x18] sm:$0xf]
        %v517 = vld [vmem:[%s509 + $0x1c] sm:$0xf]
        %s518 = scalar_lea.vmem %s1, 2
        %v519 = vld [vmem:[%s518] sm:$0x3]
        %v528 = vunpack.c.l.b16 %v510
        %v529 = vunpack.c.l.b16 %v511
        %v530 = vunpack.c.l.b16 %v512
        %v531 = vunpack.c.l.b16 %v513
        %v532 = vunpack.c.l.b16 %v514
        %v533 = vunpack.c.l.b16 %v515
        %v534 = vunpack.c.l.b16 %v516
        %v535 = vunpack.c.l.b16 %v517
        %v536 = vpack.c.b16 %v529, %v528
        %v537 = vpack.c.b16 %v531, %v530
        %v538 = vpack.c.b16 %v533, %v532
        %v539 = vpack.c.b16 %v535, %v534
        %vm540 = vcmask 31744
        %v542 = vsel %vm540, %v536, 0
        %v545 = vsel %vm540, %v537, 0
        %v548 = vsel %vm540, %v538, 0
        %v551 = vsel %vm540, %v539, 0
        %vm553 = vcmask 1041408
        %v555 = vsel %vm553, %v519, 0
        %557 = vmatprep.subr.bf16.mxu0 0
        %558 = vmatpush1.bf16.msra.mxu0 0
        %559 = vmatprep.subr.bf16.mxu0 0
        %560 = vmatpush1.bf16.msra.mxu0 0
        %561 = vmatprep.subr.bf16.mxu0 0
        %562 = vmatpush1.bf16.msra.mxu0 0
        %563 = vmatprep.subr.bf16.mxu0 0
        %564 = vmatpush1.bf16.msra.mxu0 0
        %565 = vmatprep.subr.bf16.mxu0 0
        %566 = vmatpush1.bf16.msra.mxu0 0
        %567 = vmatprep.subr.bf16.mxu0 0
        %568 = vmatpush1.bf16.msra.mxu0 0
        %569 = vmatprep.subr.bf16.mxu0 0
        %570 = vmatpush1.bf16.msra.mxu0 0
        %571 = vmatprep.subr.bf16.mxu0 0
        %572 = vmatpush1.bf16.msra.mxu0 %v555
        %573 = vmatprep.subr.bf16.mxu0 0
        %574 = vmatpush2.bf16.msra.mxu0 0
        %575 = vmatprep.subr.bf16.mxu0 0
        %576 = vmatpush2.bf16.msra.mxu0 0
        %577 = vmatprep.subr.bf16.mxu0 0
        %578 = vmatpush2.bf16.msra.mxu0 0
        %579 = vmatprep.subr.bf16.mxu0 0
        %580 = vmatpush2.bf16.msra.mxu0 0
        %581 = vmatprep.subr.bf16.mxu0 0
        %582 = vmatpush2.bf16.msra.mxu0 0
        %583 = vmatprep.subr.bf16.mxu0 0
        %584 = vmatpush2.bf16.msra.mxu0 0
        %585 = vmatprep.subr.bf16.mxu0 0
        %586 = vmatpush2.bf16.msra.mxu0 0
        %587 = vmatprep.subr.bf16.mxu0 0
        %588 = vmatpush2.bf16.msra.mxu0 0
        %589 = vmatprep.mubr.bf16.mxu0 0
        %590 = vmatmul.mubr.bf16.gmra.mxu0 %v542
        %v591 = vpop.f32.mrf.mxu0
        %v592 = vadd.f32 0.0, %v591
        %v593 = vpop.f32.mrf.mxu0
        %v594 = vpop.f32.mrf.mxu0
        %v595 = vadd.f32 0.0, %v594
        %v596 = vpop.f32.mrf.mxu0
        %597 = vmatprep.mubr.bf16.mxu0 0
        %598 = vmatmul.mubr.bf16.gmra.mxu0 %v545
        %v599 = vpop.f32.mrf.mxu0
        %v600 = vadd.f32 0.0, %v599
        %v601 = vpop.f32.mrf.mxu0
        %v602 = vpop.f32.mrf.mxu0
        %v603 = vadd.f32 0.0, %v602
        %v604 = vpop.f32.mrf.mxu0
        %605 = vmatprep.mubr.bf16.mxu0 0
        %606 = vmatmul.mubr.bf16.gmra.mxu0 %v548
        %v607 = vpop.f32.mrf.mxu0
        %v608 = vadd.f32 0.0, %v607
        %v609 = vpop.f32.mrf.mxu0
        %v610 = vpop.f32.mrf.mxu0
        %v611 = vadd.f32 0.0, %v610
        %v612 = vpop.f32.mrf.mxu0
        %613 = vmatprep.mubr.bf16.mxu0 0
        %614 = vmatmul.mubr.bf16.gmra.mxu0 %v551
        %v615 = vpop.f32.mrf.mxu0
        %v616 = vadd.f32 0.0, %v615
        %v617 = vpop.f32.mrf.mxu0
        %v618 = vpop.f32.mrf.mxu0
        %v619 = vadd.f32 0.0, %v618
        %v620 = vpop.f32.mrf.mxu0
        %621 = vdwg.mxu0
        %v630 = vunpack.c.l.b16 %v500
        %v631 = vunpack.c.l.b16 %v501
        %v632 = vunpack.c.l.b16 %v502
        %v633 = vunpack.c.l.b16 %v503
        %v634 = vunpack.c.l.b16 %v504
        %v635 = vunpack.c.l.b16 %v505
        %v636 = vunpack.c.l.b16 %v506
        %v637 = vunpack.c.l.b16 %v507
        %v638 = vpack.c.b16 %v631, %v630
        %v639 = vpack.c.b16 %v633, %v632
        %v640 = vpack.c.b16 %v635, %v634
        %v641 = vpack.c.b16 %v637, %v636
        %v643 = vsel %vm540, %v638, 0
        %v646 = vsel %vm540, %v639, 0
        %v649 = vsel %vm540, %v640, 0
        %v652 = vsel %vm540, %v641, 0
        %v655 = vsel %vm553, %v508, 0
        %657 = vmatprep.subr.bf16.mxu0 0
        %658 = vmatpush1.bf16.msra.mxu0 0
        %659 = vmatprep.subr.bf16.mxu0 0
        %660 = vmatpush1.bf16.msra.mxu0 0
        %661 = vmatprep.subr.bf16.mxu0 0
        %662 = vmatpush1.bf16.msra.mxu0 0
        %663 = vmatprep.subr.bf16.mxu0 0
        %664 = vmatpush1.bf16.msra.mxu0 0
        %665 = vmatprep.subr.bf16.mxu0 0
        %666 = vmatpush1.bf16.msra.mxu0 0
        %667 = vmatprep.subr.bf16.mxu0 0
        %668 = vmatpush1.bf16.msra.mxu0 0
        %669 = vmatprep.subr.bf16.mxu0 0
        %670 = vmatpush1.bf16.msra.mxu0 0
        %671 = vmatprep.subr.bf16.mxu0 0
        %672 = vmatpush1.bf16.msra.mxu0 %v655
        %673 = vmatprep.subr.bf16.mxu0 0
        %674 = vmatpush2.bf16.msra.mxu0 0
        %675 = vmatprep.subr.bf16.mxu0 0
        %676 = vmatpush2.bf16.msra.mxu0 0
        %677 = vmatprep.subr.bf16.mxu0 0
        %678 = vmatpush2.bf16.msra.mxu0 0
        %679 = vmatprep.subr.bf16.mxu0 0
        %680 = vmatpush2.bf16.msra.mxu0 0
        %681 = vmatprep.subr.bf16.mxu0 0
        %682 = vmatpush2.bf16.msra.mxu0 0
        %683 = vmatprep.subr.bf16.mxu0 0
        %684 = vmatpush2.bf16.msra.mxu0 0
        %685 = vmatprep.subr.bf16.mxu0 0
        %686 = vmatpush2.bf16.msra.mxu0 0
        %687 = vmatprep.subr.bf16.mxu0 0
        %688 = vmatpush2.bf16.msra.mxu0 0
        %689 = vmatprep.mubr.bf16.mxu0 0
        %690 = vmatmul.mubr.bf16.gmra.mxu0 %v643
        %v691 = vpop.f32.mrf.mxu0
        %v692 = vadd.f32 %v592, %v691
        %v693 = vpop.f32.mrf.mxu0
        %v694 = vpop.f32.mrf.mxu0
        %v695 = vadd.f32 %v595, %v694
        %v696 = vpop.f32.mrf.mxu0
        %697 = vmatprep.mubr.bf16.mxu0 0
        %698 = vmatmul.mubr.bf16.gmra.mxu0 %v646
        %v699 = vpop.f32.mrf.mxu0
        %v700 = vadd.f32 %v600, %v699
        %v701 = vpop.f32.mrf.mxu0
        %v702 = vpop.f32.mrf.mxu0
        %v703 = vadd.f32 %v603, %v702
        %v704 = vpop.f32.mrf.mxu0
        %705 = vmatprep.mubr.bf16.mxu0 0
        %706 = vmatmul.mubr.bf16.gmra.mxu0 %v649
        %v707 = vpop.f32.mrf.mxu0
        %v708 = vadd.f32 %v608, %v707
        %v709 = vpop.f32.mrf.mxu0
        %v710 = vpop.f32.mrf.mxu0
        %v711 = vadd.f32 %v611, %v710
        %v712 = vpop.f32.mrf.mxu0
        %713 = vmatprep.mubr.bf16.mxu0 0
        %714 = vmatmul.mubr.bf16.gmra.mxu0 %v652
        %v715 = vpop.f32.mrf.mxu0
        %v716 = vadd.f32 %v616, %v715
        %v717 = vpop.f32.mrf.mxu0
        %v718 = vpop.f32.mrf.mxu0
        %v719 = vadd.f32 %v619, %v718
        %v720 = vpop.f32.mrf.mxu0
        %721 = vdwg.mxu0
        %s722 = scalar_lea.vmem %s473, 64 [#allocation2]
        %v723 = vld [vmem:[%s722] sm:$0xf]
        %v724 = vld [vmem:[%s722 + $0x4] sm:$0xf]
        %v725 = vld [vmem:[%s722 + $0x8] sm:$0xf]
        %v726 = vld [vmem:[%s722 + $0xc] sm:$0xf]
        %v727 = vld [vmem:[%s722 + $0x10] sm:$0xf]
        %v728 = vld [vmem:[%s722 + $0x14] sm:$0xf]
        %v729 = vld [vmem:[%s722 + $0x18] sm:$0xf]
        %v730 = vld [vmem:[%s722 + $0x1c] sm:$0xf]
        %s731 = scalar_lea.vmem %s1, 4
        %v732 = vld [vmem:[%s731] sm:$0x3]
        %v741 = vunpack.c.l.b16 %v723
        %v742 = vunpack.c.l.b16 %v724
        %v743 = vunpack.c.l.b16 %v725
        %v744 = vunpack.c.l.b16 %v726
        %v745 = vunpack.c.l.b16 %v727
        %v746 = vunpack.c.l.b16 %v728
        %v747 = vunpack.c.l.b16 %v729
        %v748 = vunpack.c.l.b16 %v730
        %v749 = vpack.c.b16 %v742, %v741
        %v750 = vpack.c.b16 %v744, %v743
        %v751 = vpack.c.b16 %v746, %v745
        %v752 = vpack.c.b16 %v748, %v747
        %v754 = vsel %vm540, %v749, 0
        %v757 = vsel %vm540, %v750, 0
        %v760 = vsel %vm540, %v751, 0
        %v763 = vsel %vm540, %v752, 0
        %v766 = vsel %vm553, %v732, 0
        %768 = vmatprep.subr.bf16.mxu0 0
        %769 = vmatpush1.bf16.msra.mxu0 0
        %770 = vmatprep.subr.bf16.mxu0 0
        %771 = vmatpush1.bf16.msra.mxu0 0
        %772 = vmatprep.subr.bf16.mxu0 0
        %773 = vmatpush1.bf16.msra.mxu0 0
        %774 = vmatprep.subr.bf16.mxu0 0
        %775 = vmatpush1.bf16.msra.mxu0 0
        %776 = vmatprep.subr.bf16.mxu0 0
        %777 = vmatpush1.bf16.msra.mxu0 0
        %778 = vmatprep.subr.bf16.mxu0 0
        %779 = vmatpush1.bf16.msra.mxu0 0
        %780 = vmatprep.subr.bf16.mxu0 0
        %781 = vmatpush1.bf16.msra.mxu0 0
        %782 = vmatprep.subr.bf16.mxu0 0
        %783 = vmatpush1.bf16.msra.mxu0 %v766
        %784 = vmatprep.subr.bf16.mxu0 0
        %785 = vmatpush2.bf16.msra.mxu0 0
        %786 = vmatprep.subr.bf16.mxu0 0
        %787 = vmatpush2.bf16.msra.mxu0 0
        %788 = vmatprep.subr.bf16.mxu0 0
        %789 = vmatpush2.bf16.msra.mxu0 0
        %790 = vmatprep.subr.bf16.mxu0 0
        %791 = vmatpush2.bf16.msra.mxu0 0
        %792 = vmatprep.subr.bf16.mxu0 0
        %793 = vmatpush2.bf16.msra.mxu0 0
        %794 = vmatprep.subr.bf16.mxu0 0
        %795 = vmatpush2.bf16.msra.mxu0 0
        %796 = vmatprep.subr.bf16.mxu0 0
        %797 = vmatpush2.bf16.msra.mxu0 0
        %798 = vmatprep.subr.bf16.mxu0 0
        %799 = vmatpush2.bf16.msra.mxu0 0
        %800 = vmatprep.mubr.bf16.mxu0 0
        %801 = vmatmul.mubr.bf16.gmra.mxu0 %v754
        %v802 = vpop.f32.mrf.mxu0
        %v803 = vadd.f32 0.0, %v802
        %v804 = vpop.f32.mrf.mxu0
        %v805 = vpop.f32.mrf.mxu0
        %v806 = vadd.f32 0.0, %v805
        %v807 = vpop.f32.mrf.mxu0
        %808 = vmatprep.mubr.bf16.mxu0 0
        %809 = vmatmul.mubr.bf16.gmra.mxu0 %v757
        %v810 = vpop.f32.mrf.mxu0
        %v811 = vadd.f32 0.0, %v810
        %v812 = vpop.f32.mrf.mxu0
        %v813 = vpop.f32.mrf.mxu0
        %v814 = vadd.f32 0.0, %v813
        %v815 = vpop.f32.mrf.mxu0
        %816 = vmatprep.mubr.bf16.mxu0 0
        %817 = vmatmul.mubr.bf16.gmra.mxu0 %v760
        %v818 = vpop.f32.mrf.mxu0
        %v819 = vadd.f32 0.0, %v818
        %v820 = vpop.f32.mrf.mxu0
        %v821 = vpop.f32.mrf.mxu0
        %v822 = vadd.f32 0.0, %v821
        %v823 = vpop.f32.mrf.mxu0
        %824 = vmatprep.mubr.bf16.mxu0 0
        %825 = vmatmul.mubr.bf16.gmra.mxu0 %v763
        %v826 = vpop.f32.mrf.mxu0
        %v827 = vadd.f32 0.0, %v826
        %v828 = vpop.f32.mrf.mxu0
        %v829 = vpop.f32.mrf.mxu0
        %v830 = vadd.f32 0.0, %v829
        %v831 = vpop.f32.mrf.mxu0
        %832 = vdwg.mxu0
        %v833 = vadd.f32 %v692, %v803
        %v834 = vadd.f32 %v695, %v806
        %v835 = vadd.f32 %v700, %v811
        %v836 = vadd.f32 %v703, %v814
        %v837 = vadd.f32 %v708, %v819
        %v838 = vadd.f32 %v711, %v822
        %v839 = vadd.f32 %v716, %v827
        %v840 = vadd.f32 %v719, %v830
        %s841 = scalar_lea.vmem %s473, 96 [#allocation2]
        %v842 = vld [vmem:[%s841] sm:$0xf]
        %v843 = vld [vmem:[%s841 + $0x4] sm:$0xf]
        %v844 = vld [vmem:[%s841 + $0x8] sm:$0xf]
        %v845 = vld [vmem:[%s841 + $0xc] sm:$0xf]
        %v846 = vld [vmem:[%s841 + $0x10] sm:$0xf]
        %v847 = vld [vmem:[%s841 + $0x14] sm:$0xf]
        %v848 = vld [vmem:[%s841 + $0x18] sm:$0xf]
        %v849 = vld [vmem:[%s841 + $0x1c] sm:$0xf]
        %s850 = scalar_lea.vmem %s1, 6
        %v851 = vld [vmem:[%s850] sm:$0x3]
        %v860 = vunpack.c.l.b16 %v842
        %v861 = vunpack.c.l.b16 %v843
        %v862 = vunpack.c.l.b16 %v844
        %v863 = vunpack.c.l.b16 %v845
        %v864 = vunpack.c.l.b16 %v846
        %v865 = vunpack.c.l.b16 %v847
        %v866 = vunpack.c.l.b16 %v848
        %v867 = vunpack.c.l.b16 %v849
        %v868 = vpack.c.b16 %v861, %v860
        %v869 = vpack.c.b16 %v863, %v862
        %v870 = vpack.c.b16 %v865, %v864
        %v871 = vpack.c.b16 %v867, %v866
        %v873 = vsel %vm540, %v868, 0
        %v876 = vsel %vm540, %v869, 0
        %v879 = vsel %vm540, %v870, 0
        %v882 = vsel %vm540, %v871, 0
        %v885 = vsel %vm553, %v851, 0
        %887 = vmatprep.subr.bf16.mxu0 0
        %888 = vmatpush1.bf16.msra.mxu0 0
        %889 = vmatprep.subr.bf16.mxu0 0
        %890 = vmatpush1.bf16.msra.mxu0 0
        %891 = vmatprep.subr.bf16.mxu0 0
        %892 = vmatpush1.bf16.msra.mxu0 0
        %893 = vmatprep.subr.bf16.mxu0 0
        %894 = vmatpush1.bf16.msra.mxu0 0
        %895 = vmatprep.subr.bf16.mxu0 0
        %896 = vmatpush1.bf16.msra.mxu0 0
        %897 = vmatprep.subr.bf16.mxu0 0
        %898 = vmatpush1.bf16.msra.mxu0 0
        %899 = vmatprep.subr.bf16.mxu0 0
        %900 = vmatpush1.bf16.msra.mxu0 0
        %901 = vmatprep.subr.bf16.mxu0 0
        %902 = vmatpush1.bf16.msra.mxu0 %v885
        %903 = vmatprep.subr.bf16.mxu0 0
        %904 = vmatpush2.bf16.msra.mxu0 0
        %905 = vmatprep.subr.bf16.mxu0 0
        %906 = vmatpush2.bf16.msra.mxu0 0
        %907 = vmatprep.subr.bf16.mxu0 0
        %908 = vmatpush2.bf16.msra.mxu0 0
        %909 = vmatprep.subr.bf16.mxu0 0
        %910 = vmatpush2.bf16.msra.mxu0 0
        %911 = vmatprep.subr.bf16.mxu0 0
        %912 = vmatpush2.bf16.msra.mxu0 0
        %913 = vmatprep.subr.bf16.mxu0 0
        %914 = vmatpush2.bf16.msra.mxu0 0
        %915 = vmatprep.subr.bf16.mxu0 0
        %916 = vmatpush2.bf16.msra.mxu0 0
        %917 = vmatprep.subr.bf16.mxu0 0
        %918 = vmatpush2.bf16.msra.mxu0 0
        %919 = vmatprep.mubr.bf16.mxu0 0
        %920 = vmatmul.mubr.bf16.gmra.mxu0 %v873
        %v921 = vpop.f32.mrf.mxu0
        %v922 = vadd.f32 0.0, %v921
        %v923 = vpop.f32.mrf.mxu0
        %v924 = vpop.f32.mrf.mxu0
        %v925 = vadd.f32 0.0, %v924
        %v926 = vpop.f32.mrf.mxu0
        %927 = vmatprep.mubr.bf16.mxu0 0
        %928 = vmatmul.mubr.bf16.gmra.mxu0 %v876
        %v929 = vpop.f32.mrf.mxu0
        %v930 = vadd.f32 0.0, %v929
        %v931 = vpop.f32.mrf.mxu0
        %v932 = vpop.f32.mrf.mxu0
        %v933 = vadd.f32 0.0, %v932
        %v934 = vpop.f32.mrf.mxu0
        %935 = vmatprep.mubr.bf16.mxu0 0
        %936 = vmatmul.mubr.bf16.gmra.mxu0 %v879
        %v937 = vpop.f32.mrf.mxu0
        %v938 = vadd.f32 0.0, %v937
        %v939 = vpop.f32.mrf.mxu0
        %v940 = vpop.f32.mrf.mxu0
        %v941 = vadd.f32 0.0, %v940
        %v942 = vpop.f32.mrf.mxu0
        %943 = vmatprep.mubr.bf16.mxu0 0
        %944 = vmatmul.mubr.bf16.gmra.mxu0 %v882
        %v945 = vpop.f32.mrf.mxu0
        %v946 = vadd.f32 0.0, %v945
        %v947 = vpop.f32.mrf.mxu0
        %v948 = vpop.f32.mrf.mxu0
        %v949 = vadd.f32 0.0, %v948
        %v950 = vpop.f32.mrf.mxu0
        %951 = vdwg.mxu0
        %v952 = vadd.f32 %v833, %v922
        %v953 = vadd.f32 %v834, %v925
        %v954 = vadd.f32 %v835, %v930
        %v955 = vadd.f32 %v836, %v933
        %v956 = vadd.f32 %v837, %v938
        %v957 = vadd.f32 %v838, %v941
        %v958 = vadd.f32 %v839, %v946
        %v959 = vadd.f32 %v840, %v949
        %s960 = scalar_lea.vmem %s473, 128 [#allocation2]
        %v961 = vld [vmem:[%s960] sm:$0xf]
        %v962 = vld [vmem:[%s960 + $0x4] sm:$0xf]
        %v963 = vld [vmem:[%s960 + $0x8] sm:$0xf]
        %v964 = vld [vmem:[%s960 + $0xc] sm:$0xf]
        %v965 = vld [vmem:[%s960 + $0x10] sm:$0xf]
        %v966 = vld [vmem:[%s960 + $0x14] sm:$0xf]
        %v967 = vld [vmem:[%s960 + $0x18] sm:$0xf]
        %v968 = vld [vmem:[%s960 + $0x1c] sm:$0xf]
        %s969 = scalar_lea.vmem %s1, 8
        %v970 = vld [vmem:[%s969] sm:$0x3]
        %v979 = vunpack.c.l.b16 %v961
        %v980 = vunpack.c.l.b16 %v962
        %v981 = vunpack.c.l.b16 %v963
        %v982 = vunpack.c.l.b16 %v964
        %v983 = vunpack.c.l.b16 %v965
        %v984 = vunpack.c.l.b16 %v966
        %v985 = vunpack.c.l.b16 %v967
        %v986 = vunpack.c.l.b16 %v968
        %v987 = vpack.c.b16 %v980, %v979
        %v988 = vpack.c.b16 %v982, %v981
        %v989 = vpack.c.b16 %v984, %v983
        %v990 = vpack.c.b16 %v986, %v985
        %v992 = vsel %vm540, %v987, 0
        %v995 = vsel %vm540, %v988, 0
        %v998 = vsel %vm540, %v989, 0
        %v1001 = vsel %vm540, %v990, 0
        %v1004 = vsel %vm553, %v970, 0
        %1006 = vmatprep.subr.bf16.mxu0 0
        %1007 = vmatpush1.bf16.msra.mxu0 0
        %1008 = vmatprep.subr.bf16.mxu0 0
        %1009 = vmatpush1.bf16.msra.mxu0 0
        %1010 = vmatprep.subr.bf16.mxu0 0
        %1011 = vmatpush1.bf16.msra.mxu0 0
        %1012 = vmatprep.subr.bf16.mxu0 0
        %1013 = vmatpush1.bf16.msra.mxu0 0
        %1014 = vmatprep.subr.bf16.mxu0 0
        %1015 = vmatpush1.bf16.msra.mxu0 0
        %1016 = vmatprep.subr.bf16.mxu0 0
        %1017 = vmatpush1.bf16.msra.mxu0 0
        %1018 = vmatprep.subr.bf16.mxu0 0
        %1019 = vmatpush1.bf16.msra.mxu0 0
        %1020 = vmatprep.subr.bf16.mxu0 0
        %1021 = vmatpush1.bf16.msra.mxu0 %v1004
        %1022 = vmatprep.subr.bf16.mxu0 0
        %1023 = vmatpush2.bf16.msra.mxu0 0
        %1024 = vmatprep.subr.bf16.mxu0 0
        %1025 = vmatpush2.bf16.msra.mxu0 0
        %1026 = vmatprep.subr.bf16.mxu0 0
        %1027 = vmatpush2.bf16.msra.mxu0 0
        %1028 = vmatprep.subr.bf16.mxu0 0
        %1029 = vmatpush2.bf16.msra.mxu0 0
        %1030 = vmatprep.subr.bf16.mxu0 0
        %1031 = vmatpush2.bf16.msra.mxu0 0
        %1032 = vmatprep.subr.bf16.mxu0 0
        %1033 = vmatpush2.bf16.msra.mxu0 0
        %1034 = vmatprep.subr.bf16.mxu0 0
        %1035 = vmatpush2.bf16.msra.mxu0 0
        %1036 = vmatprep.subr.bf16.mxu0 0
        %1037 = vmatpush2.bf16.msra.mxu0 0
        %1038 = vmatprep.mubr.bf16.mxu0 0
        %1039 = vmatmul.mubr.bf16.gmra.mxu0 %v992
        %v1040 = vpop.f32.mrf.mxu0
        %v1041 = vadd.f32 0.0, %v1040
        %v1042 = vpop.f32.mrf.mxu0
        %v1043 = vpop.f32.mrf.mxu0
        %v1044 = vadd.f32 0.0, %v1043
        %v1045 = vpop.f32.mrf.mxu0
        %1046 = vmatprep.mubr.bf16.mxu0 0
        %1047 = vmatmul.mubr.bf16.gmra.mxu0 %v995
        %v1048 = vpop.f32.mrf.mxu0
        %v1049 = vadd.f32 0.0, %v1048
        %v1050 = vpop.f32.mrf.mxu0
        %v1051 = vpop.f32.mrf.mxu0
        %v1052 = vadd.f32 0.0, %v1051
        %v1053 = vpop.f32.mrf.mxu0
        %1054 = vmatprep.mubr.bf16.mxu0 0
        %1055 = vmatmul.mubr.bf16.gmra.mxu0 %v998
        %v1056 = vpop.f32.mrf.mxu0
        %v1057 = vadd.f32 0.0, %v1056
        %v1058 = vpop.f32.mrf.mxu0
        %v1059 = vpop.f32.mrf.mxu0
        %v1060 = vadd.f32 0.0, %v1059
        %v1061 = vpop.f32.mrf.mxu0
        %1062 = vmatprep.mubr.bf16.mxu0 0
        %1063 = vmatmul.mubr.bf16.gmra.mxu0 %v1001
        %v1064 = vpop.f32.mrf.mxu0
        %v1065 = vadd.f32 0.0, %v1064
        %v1066 = vpop.f32.mrf.mxu0
        %v1067 = vpop.f32.mrf.mxu0
        %v1068 = vadd.f32 0.0, %v1067
        %v1069 = vpop.f32.mrf.mxu0
        %1070 = vdwg.mxu0
        %v1071 = vadd.f32 %v952, %v1041
        %v1072 = vadd.f32 %v953, %v1044
        %v1073 = vadd.f32 %v954, %v1049
        %v1074 = vadd.f32 %v955, %v1052
        %v1075 = vadd.f32 %v956, %v1057
        %v1076 = vadd.f32 %v957, %v1060
        %v1077 = vadd.f32 %v958, %v1065
        %v1078 = vadd.f32 %v959, %v1068
        %s1079 = scalar_lea.vmem %s473, 160 [#allocation2]
        %v1080 = vld [vmem:[%s1079] sm:$0xf]
        %v1081 = vld [vmem:[%s1079 + $0x4] sm:$0xf]
        %v1082 = vld [vmem:[%s1079 + $0x8] sm:$0xf]
        %v1083 = vld [vmem:[%s1079 + $0xc] sm:$0xf]
        %v1084 = vld [vmem:[%s1079 + $0x10] sm:$0xf]
        %v1085 = vld [vmem:[%s1079 + $0x14] sm:$0xf]
        %v1086 = vld [vmem:[%s1079 + $0x18] sm:$0xf]
        %v1087 = vld [vmem:[%s1079 + $0x1c] sm:$0xf]
        %s1088 = scalar_lea.vmem %s1, 10
        %v1089 = vld [vmem:[%s1088] sm:$0x3]
        %v1098 = vunpack.c.l.b16 %v1080
        %v1099 = vunpack.c.l.b16 %v1081
        %v1100 = vunpack.c.l.b16 %v1082
        %v1101 = vunpack.c.l.b16 %v1083
        %v1102 = vunpack.c.l.b16 %v1084
        %v1103 = vunpack.c.l.b16 %v1085
        %v1104 = vunpack.c.l.b16 %v1086
        %v1105 = vunpack.c.l.b16 %v1087
        %v1106 = vpack.c.b16 %v1099, %v1098
        %v1107 = vpack.c.b16 %v1101, %v1100
        %v1108 = vpack.c.b16 %v1103, %v1102
        %v1109 = vpack.c.b16 %v1105, %v1104
        %v1111 = vsel %vm540, %v1106, 0
        %v1114 = vsel %vm540, %v1107, 0
        %v1117 = vsel %vm540, %v1108, 0
        %v1120 = vsel %vm540, %v1109, 0
        %v1123 = vsel %vm553, %v1089, 0
        %1125 = vmatprep.subr.bf16.mxu0 0
        %1126 = vmatpush1.bf16.msra.mxu0 0
        %1127 = vmatprep.subr.bf16.mxu0 0
        %1128 = vmatpush1.bf16.msra.mxu0 0
        %1129 = vmatprep.subr.bf16.mxu0 0
        %1130 = vmatpush1.bf16.msra.mxu0 0
        %1131 = vmatprep.subr.bf16.mxu0 0
        %1132 = vmatpush1.bf16.msra.mxu0 0
        %1133 = vmatprep.subr.bf16.mxu0 0
        %1134 = vmatpush1.bf16.msra.mxu0 0
        %1135 = vmatprep.subr.bf16.mxu0 0
        %1136 = vmatpush1.bf16.msra.mxu0 0
        %1137 = vmatprep.subr.bf16.mxu0 0
        %1138 = vmatpush1.bf16.msra.mxu0 0
        %1139 = vmatprep.subr.bf16.mxu0 0
        %1140 = vmatpush1.bf16.msra.mxu0 %v1123
        %1141 = vmatprep.subr.bf16.mxu0 0
        %1142 = vmatpush2.bf16.msra.mxu0 0
        %1143 = vmatprep.subr.bf16.mxu0 0
        %1144 = vmatpush2.bf16.msra.mxu0 0
        %1145 = vmatprep.subr.bf16.mxu0 0
        %1146 = vmatpush2.bf16.msra.mxu0 0
        %1147 = vmatprep.subr.bf16.mxu0 0
        %1148 = vmatpush2.bf16.msra.mxu0 0
        %1149 = vmatprep.subr.bf16.mxu0 0
        %1150 = vmatpush2.bf16.msra.mxu0 0
        %1151 = vmatprep.subr.bf16.mxu0 0
        %1152 = vmatpush2.bf16.msra.mxu0 0
        %1153 = vmatprep.subr.bf16.mxu0 0
        %1154 = vmatpush2.bf16.msra.mxu0 0
        %1155 = vmatprep.subr.bf16.mxu0 0
        %1156 = vmatpush2.bf16.msra.mxu0 0
        %1157 = vmatprep.mubr.bf16.mxu0 0
        %1158 = vmatmul.mubr.bf16.gmra.mxu0 %v1111
        %v1159 = vpop.f32.mrf.mxu0
        %v1160 = vadd.f32 0.0, %v1159
        %v1161 = vpop.f32.mrf.mxu0
        %v1162 = vpop.f32.mrf.mxu0
        %v1163 = vadd.f32 0.0, %v1162
        %v1164 = vpop.f32.mrf.mxu0
        %1165 = vmatprep.mubr.bf16.mxu0 0
        %1166 = vmatmul.mubr.bf16.gmra.mxu0 %v1114
        %v1167 = vpop.f32.mrf.mxu0
        %v1168 = vadd.f32 0.0, %v1167
        %v1169 = vpop.f32.mrf.mxu0
        %v1170 = vpop.f32.mrf.mxu0
        %v1171 = vadd.f32 0.0, %v1170
        %v1172 = vpop.f32.mrf.mxu0
        %1173 = vmatprep.mubr.bf16.mxu0 0
        %1174 = vmatmul.mubr.bf16.gmra.mxu0 %v1117
        %v1175 = vpop.f32.mrf.mxu0
        %v1176 = vadd.f32 0.0, %v1175
        %v1177 = vpop.f32.mrf.mxu0
        %v1178 = vpop.f32.mrf.mxu0
        %v1179 = vadd.f32 0.0, %v1178
        %v1180 = vpop.f32.mrf.mxu0
        %1181 = vmatprep.mubr.bf16.mxu0 0
        %1182 = vmatmul.mubr.bf16.gmra.mxu0 %v1120
        %v1183 = vpop.f32.mrf.mxu0
        %v1184 = vadd.f32 0.0, %v1183
        %v1185 = vpop.f32.mrf.mxu0
        %v1186 = vpop.f32.mrf.mxu0
        %v1187 = vadd.f32 0.0, %v1186
        %v1188 = vpop.f32.mrf.mxu0
        %1189 = vdwg.mxu0
        %v1190 = vadd.f32 %v1071, %v1160
        %v1191 = vadd.f32 %v1072, %v1163
        %v1192 = vadd.f32 %v1073, %v1168
        %v1193 = vadd.f32 %v1074, %v1171
        %v1194 = vadd.f32 %v1075, %v1176
        %v1195 = vadd.f32 %v1076, %v1179
        %v1196 = vadd.f32 %v1077, %v1184
        %v1197 = vadd.f32 %v1078, %v1187
        %s1198 = scalar_lea.vmem %s473, 192 [#allocation2]
        %v1199 = vld [vmem:[%s1198] sm:$0xf]
        %v1200 = vld [vmem:[%s1198 + $0x4] sm:$0xf]
        %v1201 = vld [vmem:[%s1198 + $0x8] sm:$0xf]
        %v1202 = vld [vmem:[%s1198 + $0xc] sm:$0xf]
        %v1203 = vld [vmem:[%s1198 + $0x10] sm:$0xf]
        %v1204 = vld [vmem:[%s1198 + $0x14] sm:$0xf]
        %v1205 = vld [vmem:[%s1198 + $0x18] sm:$0xf]
        %v1206 = vld [vmem:[%s1198 + $0x1c] sm:$0xf]
        %s1207 = scalar_lea.vmem %s1, 12
        %v1208 = vld [vmem:[%s1207] sm:$0x3]
        %v1217 = vunpack.c.l.b16 %v1199
        %v1218 = vunpack.c.l.b16 %v1200
        %v1219 = vunpack.c.l.b16 %v1201
        %v1220 = vunpack.c.l.b16 %v1202
        %v1221 = vunpack.c.l.b16 %v1203
        %v1222 = vunpack.c.l.b16 %v1204
        %v1223 = vunpack.c.l.b16 %v1205
        %v1224 = vunpack.c.l.b16 %v1206
        %v1225 = vpack.c.b16 %v1218, %v1217
        %v1226 = vpack.c.b16 %v1220, %v1219
        %v1227 = vpack.c.b16 %v1222, %v1221
        %v1228 = vpack.c.b16 %v1224, %v1223
        %v1230 = vsel %vm540, %v1225, 0
        %v1233 = vsel %vm540, %v1226, 0
        %v1236 = vsel %vm540, %v1227, 0
        %v1239 = vsel %vm540, %v1228, 0
        %v1242 = vsel %vm553, %v1208, 0
        %1244 = vmatprep.subr.bf16.mxu0 0
        %1245 = vmatpush1.bf16.msra.mxu0 0
        %1246 = vmatprep.subr.bf16.mxu0 0
        %1247 = vmatpush1.bf16.msra.mxu0 0
        %1248 = vmatprep.subr.bf16.mxu0 0
        %1249 = vmatpush1.bf16.msra.mxu0 0
        %1250 = vmatprep.subr.bf16.mxu0 0
        %1251 = vmatpush1.bf16.msra.mxu0 0
        %1252 = vmatprep.subr.bf16.mxu0 0
        %1253 = vmatpush1.bf16.msra.mxu0 0
        %1254 = vmatprep.subr.bf16.mxu0 0
        %1255 = vmatpush1.bf16.msra.mxu0 0
        %1256 = vmatprep.subr.bf16.mxu0 0
        %1257 = vmatpush1.bf16.msra.mxu0 0
        %1258 = vmatprep.subr.bf16.mxu0 0
        %1259 = vmatpush1.bf16.msra.mxu0 %v1242
        %1260 = vmatprep.subr.bf16.mxu0 0
        %1261 = vmatpush2.bf16.msra.mxu0 0
        %1262 = vmatprep.subr.bf16.mxu0 0
        %1263 = vmatpush2.bf16.msra.mxu0 0
        %1264 = vmatprep.subr.bf16.mxu0 0
        %1265 = vmatpush2.bf16.msra.mxu0 0
        %1266 = vmatprep.subr.bf16.mxu0 0
        %1267 = vmatpush2.bf16.msra.mxu0 0
        %1268 = vmatprep.subr.bf16.mxu0 0
        %1269 = vmatpush2.bf16.msra.mxu0 0
        %1270 = vmatprep.subr.bf16.mxu0 0
        %1271 = vmatpush2.bf16.msra.mxu0 0
        %1272 = vmatprep.subr.bf16.mxu0 0
        %1273 = vmatpush2.bf16.msra.mxu0 0
        %1274 = vmatprep.subr.bf16.mxu0 0
        %1275 = vmatpush2.bf16.msra.mxu0 0
        %1276 = vmatprep.mubr.bf16.mxu0 0
        %1277 = vmatmul.mubr.bf16.gmra.mxu0 %v1230
        %v1278 = vpop.f32.mrf.mxu0
        %v1279 = vadd.f32 0.0, %v1278
        %v1280 = vpop.f32.mrf.mxu0
        %v1281 = vpop.f32.mrf.mxu0
        %v1282 = vadd.f32 0.0, %v1281
        %v1283 = vpop.f32.mrf.mxu0
        %1284 = vmatprep.mubr.bf16.mxu0 0
        %1285 = vmatmul.mubr.bf16.gmra.mxu0 %v1233
        %v1286 = vpop.f32.mrf.mxu0
        %v1287 = vadd.f32 0.0, %v1286
        %v1288 = vpop.f32.mrf.mxu0
        %v1289 = vpop.f32.mrf.mxu0
        %v1290 = vadd.f32 0.0, %v1289
        %v1291 = vpop.f32.mrf.mxu0
        %1292 = vmatprep.mubr.bf16.mxu0 0
        %1293 = vmatmul.mubr.bf16.gmra.mxu0 %v1236
        %v1294 = vpop.f32.mrf.mxu0
        %v1295 = vadd.f32 0.0, %v1294
        %v1296 = vpop.f32.mrf.mxu0
        %v1297 = vpop.f32.mrf.mxu0
        %v1298 = vadd.f32 0.0, %v1297
        %v1299 = vpop.f32.mrf.mxu0
        %1300 = vmatprep.mubr.bf16.mxu0 0
        %1301 = vmatmul.mubr.bf16.gmra.mxu0 %v1239
        %v1302 = vpop.f32.mrf.mxu0
        %v1303 = vadd.f32 0.0, %v1302
        %v1304 = vpop.f32.mrf.mxu0
        %v1305 = vpop.f32.mrf.mxu0
        %v1306 = vadd.f32 0.0, %v1305
        %v1307 = vpop.f32.mrf.mxu0
        %1308 = vdwg.mxu0
        %v1309 = vadd.f32 %v1190, %v1279
        %v1310 = vadd.f32 %v1191, %v1282
        %v1311 = vadd.f32 %v1192, %v1287
        %v1312 = vadd.f32 %v1193, %v1290
        %v1313 = vadd.f32 %v1194, %v1295
        %v1314 = vadd.f32 %v1195, %v1298
        %v1315 = vadd.f32 %v1196, %v1303
        %v1316 = vadd.f32 %v1197, %v1306
        %s1317 = scalar_lea.vmem %s473, 224 [#allocation2]
        %v1318 = vld [vmem:[%s1317] sm:$0xf]
        %v1319 = vld [vmem:[%s1317 + $0x4] sm:$0xf]
        %v1320 = vld [vmem:[%s1317 + $0x8] sm:$0xf]
        %v1321 = vld [vmem:[%s1317 + $0xc] sm:$0xf]
        %v1322 = vld [vmem:[%s1317 + $0x10] sm:$0xf]
        %v1323 = vld [vmem:[%s1317 + $0x14] sm:$0xf]
        %v1324 = vld [vmem:[%s1317 + $0x18] sm:$0xf]
        %v1325 = vld [vmem:[%s1317 + $0x1c] sm:$0xf]
        %s1326 = scalar_lea.vmem %s1, 14
        %v1327 = vld [vmem:[%s1326] sm:$0x3]
        %v1336 = vunpack.c.l.b16 %v1318
        %v1337 = vunpack.c.l.b16 %v1319
        %v1338 = vunpack.c.l.b16 %v1320
        %v1339 = vunpack.c.l.b16 %v1321
        %v1340 = vunpack.c.l.b16 %v1322
        %v1341 = vunpack.c.l.b16 %v1323
        %v1342 = vunpack.c.l.b16 %v1324
        %v1343 = vunpack.c.l.b16 %v1325
        %v1344 = vpack.c.b16 %v1337, %v1336
        %v1345 = vpack.c.b16 %v1339, %v1338
        %v1346 = vpack.c.b16 %v1341, %v1340
        %v1347 = vpack.c.b16 %v1343, %v1342
        %v1349 = vsel %vm540, %v1344, 0
        %v1352 = vsel %vm540, %v1345, 0
        %v1355 = vsel %vm540, %v1346, 0
        %v1358 = vsel %vm540, %v1347, 0
        %v1361 = vsel %vm553, %v1327, 0
        %1363 = vmatprep.subr.bf16.mxu0 0
        %1364 = vmatpush1.bf16.msra.mxu0 0
        %1365 = vmatprep.subr.bf16.mxu0 0
        %1366 = vmatpush1.bf16.msra.mxu0 0
        %1367 = vmatprep.subr.bf16.mxu0 0
        %1368 = vmatpush1.bf16.msra.mxu0 0
        %1369 = vmatprep.subr.bf16.mxu0 0
        %1370 = vmatpush1.bf16.msra.mxu0 0
        %1371 = vmatprep.subr.bf16.mxu0 0
        %1372 = vmatpush1.bf16.msra.mxu0 0
        %1373 = vmatprep.subr.bf16.mxu0 0
        %1374 = vmatpush1.bf16.msra.mxu0 0
        %1375 = vmatprep.subr.bf16.mxu0 0
        %1376 = vmatpush1.bf16.msra.mxu0 0
        %1377 = vmatprep.subr.bf16.mxu0 0
        %1378 = vmatpush1.bf16.msra.mxu0 %v1361
        %1379 = vmatprep.subr.bf16.mxu0 0
        %1380 = vmatpush2.bf16.msra.mxu0 0
        %1381 = vmatprep.subr.bf16.mxu0 0
        %1382 = vmatpush2.bf16.msra.mxu0 0
        %1383 = vmatprep.subr.bf16.mxu0 0
        %1384 = vmatpush2.bf16.msra.mxu0 0
        %1385 = vmatprep.subr.bf16.mxu0 0
        %1386 = vmatpush2.bf16.msra.mxu0 0
        %1387 = vmatprep.subr.bf16.mxu0 0
        %1388 = vmatpush2.bf16.msra.mxu0 0
        %1389 = vmatprep.subr.bf16.mxu0 0
        %1390 = vmatpush2.bf16.msra.mxu0 0
        %1391 = vmatprep.subr.bf16.mxu0 0
        %1392 = vmatpush2.bf16.msra.mxu0 0
        %1393 = vmatprep.subr.bf16.mxu0 0
        %1394 = vmatpush2.bf16.msra.mxu0 0
        %1395 = vmatprep.mubr.bf16.mxu0 0
        %1396 = vmatmul.mubr.bf16.gmra.mxu0 %v1349
        %v1397 = vpop.f32.mrf.mxu0
        %v1398 = vadd.f32 0.0, %v1397
        %v1399 = vpop.f32.mrf.mxu0
        %v1400 = vpop.f32.mrf.mxu0
        %v1401 = vadd.f32 0.0, %v1400
        %v1402 = vpop.f32.mrf.mxu0
        %1403 = vmatprep.mubr.bf16.mxu0 0
        %1404 = vmatmul.mubr.bf16.gmra.mxu0 %v1352
        %v1405 = vpop.f32.mrf.mxu0
        %v1406 = vadd.f32 0.0, %v1405
        %v1407 = vpop.f32.mrf.mxu0
        %v1408 = vpop.f32.mrf.mxu0
        %v1409 = vadd.f32 0.0, %v1408
        %v1410 = vpop.f32.mrf.mxu0
        %1411 = vmatprep.mubr.bf16.mxu0 0
        %1412 = vmatmul.mubr.bf16.gmra.mxu0 %v1355
        %v1413 = vpop.f32.mrf.mxu0
        %v1414 = vadd.f32 0.0, %v1413
        %v1415 = vpop.f32.mrf.mxu0
        %v1416 = vpop.f32.mrf.mxu0
        %v1417 = vadd.f32 0.0, %v1416
        %v1418 = vpop.f32.mrf.mxu0
        %1419 = vmatprep.mubr.bf16.mxu0 0
        %1420 = vmatmul.mubr.bf16.gmra.mxu0 %v1358
        %v1421 = vpop.f32.mrf.mxu0
        %v1422 = vadd.f32 0.0, %v1421
        %v1423 = vpop.f32.mrf.mxu0
        %v1424 = vpop.f32.mrf.mxu0
        %v1425 = vadd.f32 0.0, %v1424
        %v1426 = vpop.f32.mrf.mxu0
        %1427 = vdwg.mxu0
        %v1428 = vadd.f32 %v1309, %v1398
        %v1429 = vadd.f32 %v1310, %v1401
        %v1430 = vadd.f32 %v1311, %v1406
        %v1431 = vadd.f32 %v1312, %v1409
        %v1432 = vadd.f32 %v1313, %v1414
        %v1433 = vadd.f32 %v1314, %v1417
        %v1434 = vadd.f32 %v1315, %v1422
        %v1435 = vadd.f32 %v1316, %v1425
        %s1436 = scalar_lea.vmem %s473, 256 [#allocation2]
        %v1437 = vld [vmem:[%s1436] sm:$0xf]
        %v1438 = vld [vmem:[%s1436 + $0x4] sm:$0xf]
        %v1439 = vld [vmem:[%s1436 + $0x8] sm:$0xf]
        %v1440 = vld [vmem:[%s1436 + $0xc] sm:$0xf]
        %v1441 = vld [vmem:[%s1436 + $0x10] sm:$0xf]
        %v1442 = vld [vmem:[%s1436 + $0x14] sm:$0xf]
        %v1443 = vld [vmem:[%s1436 + $0x18] sm:$0xf]
        %v1444 = vld [vmem:[%s1436 + $0x1c] sm:$0xf]
        %s1445 = scalar_lea.vmem %s1, 16
        %v1446 = vld [vmem:[%s1445] sm:$0x3]
        %v1455 = vunpack.c.l.b16 %v1437
        %v1456 = vunpack.c.l.b16 %v1438
        %v1457 = vunpack.c.l.b16 %v1439
        %v1458 = vunpack.c.l.b16 %v1440
        %v1459 = vunpack.c.l.b16 %v1441
        %v1460 = vunpack.c.l.b16 %v1442
        %v1461 = vunpack.c.l.b16 %v1443
        %v1462 = vunpack.c.l.b16 %v1444
        %v1463 = vpack.c.b16 %v1456, %v1455
        %v1464 = vpack.c.b16 %v1458, %v1457
        %v1465 = vpack.c.b16 %v1460, %v1459
        %v1466 = vpack.c.b16 %v1462, %v1461
        %v1468 = vsel %vm540, %v1463, 0
        %v1471 = vsel %vm540, %v1464, 0
        %v1474 = vsel %vm540, %v1465, 0
        %v1477 = vsel %vm540, %v1466, 0
        %v1480 = vsel %vm553, %v1446, 0
        %1482 = vmatprep.subr.bf16.mxu0 0
        %1483 = vmatpush1.bf16.msra.mxu0 0
        %1484 = vmatprep.subr.bf16.mxu0 0
        %1485 = vmatpush1.bf16.msra.mxu0 0
        %1486 = vmatprep.subr.bf16.mxu0 0
        %1487 = vmatpush1.bf16.msra.mxu0 0
        %1488 = vmatprep.subr.bf16.mxu0 0
        %1489 = vmatpush1.bf16.msra.mxu0 0
        %1490 = vmatprep.subr.bf16.mxu0 0
        %1491 = vmatpush1.bf16.msra.mxu0 0
        %1492 = vmatprep.subr.bf16.mxu0 0
        %1493 = vmatpush1.bf16.msra.mxu0 0
        %1494 = vmatprep.subr.bf16.mxu0 0
        %1495 = vmatpush1.bf16.msra.mxu0 0
        %1496 = vmatprep.subr.bf16.mxu0 0
        %1497 = vmatpush1.bf16.msra.mxu0 %v1480
        %1498 = vmatprep.subr.bf16.mxu0 0
        %1499 = vmatpush2.bf16.msra.mxu0 0
        %1500 = vmatprep.subr.bf16.mxu0 0
        %1501 = vmatpush2.bf16.msra.mxu0 0
        %1502 = vmatprep.subr.bf16.mxu0 0
        %1503 = vmatpush2.bf16.msra.mxu0 0
        %1504 = vmatprep.subr.bf16.mxu0 0
        %1505 = vmatpush2.bf16.msra.mxu0 0
        %1506 = vmatprep.subr.bf16.mxu0 0
        %1507 = vmatpush2.bf16.msra.mxu0 0
        %1508 = vmatprep.subr.bf16.mxu0 0
        %1509 = vmatpush2.bf16.msra.mxu0 0
        %1510 = vmatprep.subr.bf16.mxu0 0
        %1511 = vmatpush2.bf16.msra.mxu0 0
        %1512 = vmatprep.subr.bf16.mxu0 0
        %1513 = vmatpush2.bf16.msra.mxu0 0
        %1514 = vmatprep.mubr.bf16.mxu0 0
        %1515 = vmatmul.mubr.bf16.gmra.mxu0 %v1468
        %v1516 = vpop.f32.mrf.mxu0
        %v1517 = vadd.f32 0.0, %v1516
        %v1518 = vpop.f32.mrf.mxu0
        %v1519 = vpop.f32.mrf.mxu0
        %v1520 = vadd.f32 0.0, %v1519
        %v1521 = vpop.f32.mrf.mxu0
        %1522 = vmatprep.mubr.bf16.mxu0 0
        %1523 = vmatmul.mubr.bf16.gmra.mxu0 %v1471
        %v1524 = vpop.f32.mrf.mxu0
        %v1525 = vadd.f32 0.0, %v1524
        %v1526 = vpop.f32.mrf.mxu0
        %v1527 = vpop.f32.mrf.mxu0
        %v1528 = vadd.f32 0.0, %v1527
        %v1529 = vpop.f32.mrf.mxu0
        %1530 = vmatprep.mubr.bf16.mxu0 0
        %1531 = vmatmul.mubr.bf16.gmra.mxu0 %v1474
        %v1532 = vpop.f32.mrf.mxu0
        %v1533 = vadd.f32 0.0, %v1532
        %v1534 = vpop.f32.mrf.mxu0
        %v1535 = vpop.f32.mrf.mxu0
        %v1536 = vadd.f32 0.0, %v1535
        %v1537 = vpop.f32.mrf.mxu0
        %1538 = vmatprep.mubr.bf16.mxu0 0
        %1539 = vmatmul.mubr.bf16.gmra.mxu0 %v1477
        %v1540 = vpop.f32.mrf.mxu0
        %v1541 = vadd.f32 0.0, %v1540
        %v1542 = vpop.f32.mrf.mxu0
        %v1543 = vpop.f32.mrf.mxu0
        %v1544 = vadd.f32 0.0, %v1543
        %v1545 = vpop.f32.mrf.mxu0
        %1546 = vdwg.mxu0
        %v1547 = vadd.f32 %v1428, %v1517
        %v1548 = vadd.f32 %v1429, %v1520
        %v1549 = vadd.f32 %v1430, %v1525
        %v1550 = vadd.f32 %v1431, %v1528
        %v1551 = vadd.f32 %v1432, %v1533
        %v1552 = vadd.f32 %v1433, %v1536
        %v1553 = vadd.f32 %v1434, %v1541
        %v1554 = vadd.f32 %v1435, %v1544
        %v1555 = vld [vmem:[%s2] sm:$0x1]
        %v1557 = vlaneseq
        %v1558 = vshrl.u32 %v1557, 7
        %v1559 = vsub.s32 0, %v1558
        %v1560 = vrot.slane %v1555, %v1559
        %v1562 = vadd.f32 %v1547, %v1560
        %v1563 = vadd.f32 %v1548, %v1560
        %v1564 = vadd.f32 %v1549, %v1560
        %v1565 = vadd.f32 %v1550, %v1560
        %v1566 = vadd.f32 %v1551, %v1560
        %v1567 = vadd.f32 %v1552, %v1560
        %v1568 = vadd.f32 %v1553, %v1560
        %v1569 = vadd.f32 %v1554, %v1560
        %v1570 = vmax.f32 %v1562, 0.0
        %v1571 = vmax.f32 %v1563, 0.0
        %v1572 = vmax.f32 %v1564, 0.0
        %v1573 = vmax.f32 %v1565, 0.0
        %v1574 = vmax.f32 %v1566, 0.0
        %v1575 = vmax.f32 %v1567, 0.0
        %v1576 = vmax.f32 %v1568, 0.0
        %v1577 = vmax.f32 %v1569, 0.0
        %v1578 = vpack.c.bf16 %v1571, %v1570
        %v1579 = vpack.c.bf16 %v1573, %v1572
        %v1580 = vpack.c.bf16 %v1575, %v1574
        %v1581 = vpack.c.bf16 %v1577, %v1576
        %v1586 = vunpack.c.l.b16 %v1578
        %v1587 = vunpack.c.h.b16 %v1578
        %v1588 = vunpack.c.l.b16 %v1579
        %v1589 = vunpack.c.h.b16 %v1579
        %v1590 = vunpack.c.l.b16 %v1580
        %v1591 = vunpack.c.h.b16 %v1580
        %v1592 = vunpack.c.l.b16 %v1581
        %v1593 = vunpack.c.h.b16 %v1581
        %v1594 = vpack.c.b16 %v1586, %v1586
        %v1595 = vpack.c.b16 %v1587, %v1587
        %v1596 = vpack.c.b16 %v1588, %v1588
        %v1597 = vpack.c.b16 %v1589, %v1589
        %v1598 = vpack.c.b16 %v1590, %v1590
        %v1599 = vpack.c.b16 %v1591, %v1591
        %v1600 = vpack.c.b16 %v1592, %v1592
        %v1601 = vpack.c.b16 %v1593, %v1593
        %1610 = vst [vmem:[%s498] sm:$0xf] %v1594
        %1611 = vst [vmem:[%s498 + $0x4] sm:$0xf] %v1595
        %1612 = vst [vmem:[%s498 + $0x8] sm:$0xf] %v1596
        %1613 = vst [vmem:[%s498 + $0xc] sm:$0xf] %v1597
        %1614 = vst [vmem:[%s498 + $0x10] sm:$0xf] %v1598
        %1615 = vst [vmem:[%s498 + $0x14] sm:$0xf] %v1599
        %1616 = vst [vmem:[%s498 + $0x18] sm:$0xf] %v1600
        %1617 = vst [vmem:[%s498 + $0x1c] sm:$0xf] %v1601
        %p1618 = scmp.lt.s32.totalorder %s14, 1
        %s1619 = scalar_select %p1618, %s14, 1
        %s1620 = smul.addr %s1619, 8
        %s1621 = smul.addr %s1620, 4
        %s1622 = scalar_lea.vmem %s3, %s1621
        // Predicated region
        $region74: #{flexible_image_encoder.3} parent=68 // pred_check
          %p1623 = pneg %p100
        $region75: #{flexible_image_encoder.3} parent=68 // pred_check_branch
          %1625 = sbr.rel (%p1623) target = $region77
        $region76: #{flexible_image_encoder.3} parent=68 // pred_region
          _
        $region77: #{flexible_image_encoder.3} parent=68 // pred_fallthru
          _
      $region69: #{flexible_image_encoder.3} parent=5 // pred_fallthru
        _
      %p1626 = scmp.le.s32.totalorder 2, %s9
      // Predicated region
      $region78: #{flexible_image_encoder.3} parent=5 // pred_check
        %p1627 = pneg %p1626
      $region79: #{flexible_image_encoder.3} parent=5 // pred_check_branch
        %1629 = sbr.rel (%p1627) target = $region81
      $region80: #{flexible_image_encoder.3} parent=5 // pred_region
        %s1630 = ssub.s32 %s9, 2
        // Predicated region
        $region82: #{flexible_image_encoder.3} parent=80 // pred_check
          %p1631 = pneg %p106
        $region83: #{flexible_image_encoder.3} parent=80 // pred_check_branch
          %1633 = sbr.rel (%p1631) target = $region85
        $region84: #{flexible_image_encoder.3} parent=80 // pred_region
          %p1634 = scmp.lt.s32.totalorder %s15, 1
          %s1635 = scalar_select %p1634, %s15, 1
          %s1636 = smul.addr %s1635, 8
          %s1637 = smul.addr %s1636, 4
          %s1638 = scalar_lea.vmem %s3, %s1637
        $region85: #{flexible_image_encoder.3} parent=80 // pred_fallthru
          _
      $region81: #{flexible_image_encoder.3} parent=5 // pred_fallthru
        _
    $region6: #{flexible_image_encoder.3} parent=1 // loop_footer
      %s13 = sadd.s32 1, %s9
    $region7: #{flexible_image_encoder.3} parent=1 // loop_footer_branch
      %8 = sbr.rel target = $region3
    $region8: #{flexible_image_encoder.3} parent=1 // loop_exit
      _

// kernel: flexible_image_encoder.4
$region0: #{flexible_image_encoder.4}
  #allocation0 [shape = 'u32[]', space=smem, size = 0x4, offset = 0x4, fixed_abs, tag = 'smem constant byte address 0x4 - core index']
  #allocation1 [shape = 'u32[144,128]{1,0:T(1,128)}', space=vmem, size = 0x12000, scoped, tag = 'internal scratch']
  %s0 = inlined_call_operand.vmem [shape: bf16[9,2,16,32], index: 0, kind: input, shape index: {}]
  %s1 = inlined_call_operand.vmem [shape: bf16[9,32,128], index: 1, kind: input, shape index: {}]
  %s2 = inlined_call_operand.vmem [shape: f32[1,128], index: 2, kind: input, shape index: {}]
  %s3 = inlined_call_operand.vmem [shape: bf16[2,16,128], index: 3, kind: output, shape index: {}]
  %s4 = sld [smem:[#allocation0]]
  $region86: #{flexible_image_encoder.4} parent=0
    _
  %s6 = ssub.s32 1, %s4
  %s7 = scalar_select 0, %s6, %s4
  $region1: #{flexible_image_encoder.4} parent=0
    #allocation2 [shape = 'u8[73728]{0}', space=vmem, size = 0x12000, scoped, tag = 'input window, operand 0']
    loop: start=0, step=1, limit=4
    $region2: #{flexible_image_encoder.4} parent=1 // loop_pre_header
      _
    $region3: #{flexible_image_encoder.4} parent=1 // loop_header
      %s9 = sphi 0, %s13
      %p10 = scmp.ge.s32.totalorder %s9, 4
      %s19 = sphi 0, %s21
      %s22 = sphi 0, %s19
      %s23 = sphi 0, %s22
      %s39 = sphi 0, %s23
      %s43 = sphi 0, %s43
      %s45 = sphi 0, %s43
      %s46 = sphi 0, %s45
      %s60 = sphi 0, %s46
      %s64 = sphi 0, %s64
      %s66 = sphi 0, %s64
      %s67 = sphi 0, %s66
      %s81 = sphi 0, %s67
      %s87 = sphi 0, %s89
      %s90 = sphi 0, %s87
      %s91 = sphi 0, %s90
      %s107 = sphi 0, %s91
    $region4: #{flexible_image_encoder.4} parent=1 // loop_header_branch
      %12 = sbr.rel (%p10) target = $region8
    $region5: #{flexible_image_encoder.4} parent=1 // loop_body
      %s14 = ssub.s32 %s9, 1
      %s15 = ssub.s32 %s9, 2
      %s16 = sadd.s32 %s9, 1
      %s17 = ssub.s32 %s9, %s16
      %p18 = scmp.eq.s32.totalorder %s17, 0
      %s20 = sadd.s32 %s19, 1
      %s21 = scalar_select %p18, %s19, %s20
      %p24 = pneg %p18
      %p25 = scmp.eq.s32.totalorder %s9, 1
      %p26 = por %p24, %p25
      %p27 = scmp.ne.s32.totalorder %s19, %s22
      %p28 = scmp.eq.s32.totalorder %s9, 0
      %p29 = por %p27, %p28
      %p30 = scmp.ne.s32.totalorder %s19, %s22
      %p31 = scmp.eq.s32.totalorder %s14, 1
      %p32 = por %p30, %p31
      %p33 = scmp.ne.s32.totalorder %s22, %s23
      %p34 = scmp.eq.s32.totalorder %s14, 0
      %p35 = por %p33, %p34
      %p36 = scmp.ne.s32.totalorder %s22, %s23
      %p37 = scmp.eq.s32.totalorder %s15, 1
      %p38 = por %p36, %p37
      %p40 = scmp.ne.s32.totalorder %s23, %s39
      %p41 = scmp.eq.s32.totalorder %s15, 0
      %p42 = por %p40, %p41
      %s44 = sadd.s32 %s43, 1
      %p47 = scmp.eq.s32.totalorder %s9, 1
      %p48 = scmp.ne.s32.totalorder %s43, %s45
      %p49 = scmp.eq.s32.totalorder %s9, 0
      %p50 = por %p48, %p49
      %p51 = scmp.ne.s32.totalorder %s43, %s45
      %p52 = scmp.eq.s32.totalorder %s14, 1
      %p53 = por %p51, %p52
      %p54 = scmp.ne.s32.totalorder %s45, %s46
      %p55 = scmp.eq.s32.totalorder %s14, 0
      %p56 = por %p54, %p55
      %p57 = scmp.ne.s32.totalorder %s45, %s46
      %p58 = scmp.eq.s32.totalorder %s15, 1
      %p59 = por %p57, %p58
      %p61 = scmp.ne.s32.totalorder %s46, %s60
      %p62 = scmp.eq.s32.totalorder %s15, 0
      %p63 = por %p61, %p62
      %s65 = sadd.s32 %s64, 1
      %p68 = scmp.eq.s32.totalorder %s9, 1
      %p69 = scmp.ne.s32.totalorder %s64, %s66
      %p70 = scmp.eq.s32.totalorder %s9, 0
      %p71 = por %p69, %p70
      %p72 = scmp.ne.s32.totalorder %s64, %s66
      %p73 = scmp.eq.s32.totalorder %s14, 1
      %p74 = por %p72, %p73
      %p75 = scmp.ne.s32.totalorder %s66, %s67
      %p76 = scmp.eq.s32.totalorder %s14, 0
      %p77 = por %p75, %p76
      %p78 = scmp.ne.s32.totalorder %s66, %s67
      %p79 = scmp.eq.s32.totalorder %s15, 1
      %p80 = por %p78, %p79
      %p82 = scmp.ne.s32.totalorder %s67, %s81
      %p83 = scmp.eq.s32.totalorder %s15, 0
      %p84 = por %p82, %p83
      %s85 = ssub.s32 %s9, %s16
      %p86 = scmp.eq.s32.totalorder %s85, 0
      %s88 = sadd.s32 %s87, 1
      %s89 = scalar_select %p86, %s87, %s88
      %p92 = pneg %p86
      %p93 = scmp.eq.s32.totalorder %s9, 1
      %p94 = por %p92, %p93
      %p95 = scmp.ne.s32.totalorder %s87, %s90
      %p96 = scmp.eq.s32.totalorder %s9, 0
      %p97 = por %p95, %p96
      %p98 = scmp.ne.s32.totalorder %s87, %s90
      %p99 = scmp.eq.s32.totalorder %s14, 1
      %p100 = por %p98, %p99
      %p101 = scmp.ne.s32.totalorder %s90, %s91
      %p102 = scmp.eq.s32.totalorder %s14, 0
      %p103 = por %p101, %p102
      %p104 = scmp.ne.s32.totalorder %s90, %s91
      %p105 = scmp.eq.s32.totalorder %s15, 1
      %p106 = por %p104, %p105
      %p108 = scmp.ne.s32.totalorder %s91, %s107
      %p109 = scmp.eq.s32.totalorder %s15, 0
      %p110 = por %p108, %p109
      %p111 = scmp.le.s32.totalorder 1, %s9
      %p112 = scmp.lt.s32.totalorder %s9, 3
      %p113 = pnand %p111, %p112
      %p114 = pneg %p113
      // Predicated region
      $region9: #{flexible_image_encoder.4} parent=5 // pred_check
        _
      $region10: #{flexible_image_encoder.4} parent=5 // pred_check_branch
        %116 = sbr.rel (%p113) target = $region12
      $region11: #{flexible_image_encoder.4} parent=5 // pred_region
        %s117 = ssub.s32 %s9, 1
        // Predicated region
        $region13: #{flexible_image_encoder.4} parent=11 // pred_check
          %p118 = pneg %p56
        $region14: #{flexible_image_encoder.4} parent=11 // pred_check_branch
          %120 = sbr.rel (%p118) target = $region16
        $region15: #{flexible_image_encoder.4} parent=11 // pred_region
          _
        $region16: #{flexible_image_encoder.4} parent=11 // pred_fallthru
          _
        // Predicated region
        $region17: #{flexible_image_encoder.4} parent=11 // pred_check
          %p121 = pneg %p77
        $region18: #{flexible_image_encoder.4} parent=11 // pred_check_branch
          %123 = sbr.rel (%p121) target = $region20
        $region19: #{flexible_image_encoder.4} parent=11 // pred_region
          _
        $region20: #{flexible_image_encoder.4} parent=11 // pred_fallthru
          _
      $region12: #{flexible_image_encoder.4} parent=5 // pred_fallthru
        _
      %p124 = scmp.lt.s32.totalorder %s9, 2
      // Predicated region
      $region21: #{flexible_image_encoder.4} parent=5 // pred_check
        %p125 = pneg %p124
      $region22: #{flexible_image_encoder.4} parent=5 // pred_check_branch
        %127 = sbr.rel (%p125) target = $region24
      $region23: #{flexible_image_encoder.4} parent=5 // pred_region
        // Predicated region
        $region25: #{flexible_image_encoder.4} parent=23 // pred_check
          %p128 = pneg %p29
        $region26: #{flexible_image_encoder.4} parent=23 // pred_check_branch
          %130 = sbr.rel (%p128) target = $region28
        $region27: #{flexible_image_encoder.4} parent=23 // pred_region
          %s131 = sand.u32 %s19, 1
          %s132 = sand.u32 %s19, 1
          %s133 = smul.addr %s132, 72
          %s134 = scalar_lea.vmem [#allocation2], %s133
          %s135 = smul.addr %s9, 2
          %s136 = smul.addr %s135, 4
          %s137 = scalar_lea.vmem %s0, %s136
          // Predicated region
          $region29: #{flexible_image_encoder.4} parent=27 // pred_check
            _
          $region30: #{flexible_image_encoder.4} parent=27 // pred_check_branch
            %139 = sbr.rel (0) target = $region32
          $region31: #{flexible_image_encoder.4} parent=27 // pred_region
            // Predicated region
            $region33: #{flexible_image_encoder.4} parent=31 // pred_check
              _
            $region34: #{flexible_image_encoder.4} parent=31 // pred_check_branch
              %141 = sbr.rel target = $region36
            $region35: #{flexible_image_encoder.4} parent=31 // pred_region
              // Predicated region
              $region48: #{flexible_image_encoder.4} parent=35 // pred_check
                _
              $region49: #{flexible_image_encoder.4} parent=35 // pred_check_branch
                %191 = sbr.rel (0) target = $region51
              $region50: #{flexible_image_encoder.4} parent=35 // pred_region
                loop: start=0, step=1, limit=1
                $region52: #{flexible_image_encoder.4} parent=50 // loop_pre_header
                  _
                $region53: #{flexible_image_encoder.4} parent=50 // loop_header
                  %s193 = sphi 0, %s197
                  %p194 = scmp.ge.s32.totalorder %s193, 1
                  %s198 = sphi %s137, %s137
                  %s199 = sphi %s134, %s134
                $region54: #{flexible_image_encoder.4} parent=50 // loop_header_branch
                  %196 = sbr.rel (%p194) target = $region58
                $region55: #{flexible_image_encoder.4} parent=50 // loop_body
                  _
                $region56: #{flexible_image_encoder.4} parent=50 // loop_footer
                  %s197 = sadd.s32 1, %s193
                $region57: #{flexible_image_encoder.4} parent=50 // loop_footer_branch
                  %192 = sbr.rel target = $region53
                $region58: #{flexible_image_encoder.4} parent=50 // loop_exit
                  _
                %s201 = ssub.s32 16, 1
                loop: start=0, step=1, limit=1
                $region59: #{flexible_image_encoder.4} parent=50 // loop_pre_header
                  _
                $region60: #{flexible_image_encoder.4} parent=50 // loop_header
                  %s203 = sphi 0, %s207
                  %p204 = scmp.ge.s32.totalorder %s203, 1
                  %s208 = sphi %s137, %s137
                  %s209 = sphi %s134, %s134
                $region61: #{flexible_image_encoder.4} parent=50 // loop_header_branch
                  %206 = sbr.rel (%p204) target = $region65
                $region62: #{flexible_image_encoder.4} parent=50 // loop_body
                  %v210 = vld [vmem:[%s208] sm:%s201]
                  %211 = vst [vmem:[%s209] sm:%s201] %v210
                  %v212 = vld [vmem:[%s208 + $0x4] sm:%s201]
                  %213 = vst [vmem:[%s209 + $0x4] sm:%s201] %v212
                  %v214 = vld [vmem:[%s208 + $0x10] sm:%s201]
                  %215 = vst [vmem:[%s209 + $0x8] sm:%s201] %v214
                  %v216 = vld [vmem:[%s208 + $0x14] sm:%s201]
                  %217 = vst [vmem:[%s209 + $0xc] sm:%s201] %v216
                  %v218 = vld [vmem:[%s208 + $0x20] sm:%s201]
                  %219 = vst [vmem:[%s209 + $0x10] sm:%s201] %v218
                  %v220 = vld [vmem:[%s208 + $0x24] sm:%s201]
                  %221 = vst [vmem:[%s209 + $0x14] sm:%s201] %v220
                  %v222 = vld [vmem:[%s208 + $0x30] sm:%s201]
                  %223 = vst [vmem:[%s209 + $0x18] sm:%s201] %v222
                  %v224 = vld [vmem:[%s208 + $0x34] sm:%s201]
                  %225 = vst [vmem:[%s209 + $0x1c] sm:%s201] %v224
                  %v226 = vld [vmem:[%s208 + $0x40] sm:%s201]
                  %227 = vst [vmem:[%s209 + $0x20] sm:%s201] %v226
                  %v228 = vld [vmem:[%s208 + $0x44] sm:%s201]
                  %229 = vst [vmem:[%s209 + $0x24] sm:%s201] %v228
                  %v230 = vld [vmem:[%s208 + $0x50] sm:%s201]
                  %231 = vst [vmem:[%s209 + $0x28] sm:%s201] %v230
                  %v232 = vld [vmem:[%s208 + $0x54] sm:%s201]
                  %233 = vst [vmem:[%s209 + $0x2c] sm:%s201] %v232
                  %v234 = vld [vmem:[%s208 + $0x60] sm:%s201]
                  %235 = vst [vmem:[%s209 + $0x30] sm:%s201] %v234
                  %v236 = vld [vmem:[%s208 + $0x64] sm:%s201]
                  %237 = vst [vmem:[%s209 + $0x34] sm:%s201] %v236
                  %v238 = vld [vmem:[%s208 + $0x70] sm:%s201]
                  %239 = vst [vmem:[%s209 + $0x38] sm:%s201] %v238
                  %v240 = vld [vmem:[%s208 + $0x74] sm:%s201]
                  %241 = vst [vmem:[%s209 + $0x3c] sm:%s201] %v240
                  %v242 = vld [vmem:[%s208 + $0x80] sm:%s201]
                  %243 = vst [vmem:[%s209 + $0x40] sm:%s201] %v242
                  %v244 = vld [vmem:[%s208 + $0x84] sm:%s201]
                  %245 = vst [vmem:[%s209 + $0x44] sm:%s201] %v244
                $region63: #{flexible_image_encoder.4} parent=50 // loop_footer
                  %s207 = sadd.s32 1, %s203
                $region64: #{flexible_image_encoder.4} parent=50 // loop_footer_branch
                  %202 = sbr.rel target = $region60
                $region65: #{flexible_image_encoder.4} parent=50 // loop_exit
                  _
              $region51: #{flexible_image_encoder.4} parent=35 // pred_fallthru
                _
            $region36: #{flexible_image_encoder.4} parent=31 // pred_fallthru
              _
            // Predicated region
            $region37: #{flexible_image_encoder.4} parent=31 // pred_check
              _
            $region38: #{flexible_image_encoder.4} parent=31 // pred_check_branch
              %143 = sbr.rel (0) target = $region40
            $region39: #{flexible_image_encoder.4} parent=31 // pred_region
              %s145 = ssub.s32 16, 1
              loop: start=0, step=1, limit=1
              $region41: #{flexible_image_encoder.4} parent=39 // loop_pre_header
                _
              $region42: #{flexible_image_encoder.4} parent=39 // loop_header
                %s147 = sphi 0, %s151
                %p148 = scmp.ge.s32.totalorder %s147, 1
                %s152 = sphi %s137, %s137
                %s153 = sphi %s134, %s134
              $region43: #{flexible_image_encoder.4} parent=39 // loop_header_branch
                %150 = sbr.rel (%p148) target = $region47
              $region44: #{flexible_image_encoder.4} parent=39 // loop_body
                %v154 = vld [vmem:[%s152] sm:%s145]
                %155 = vst [vmem:[%s153] sm:%s145] %v154
                %v156 = vld [vmem:[%s152 + $0x4] sm:%s145]
                %157 = vst [vmem:[%s153 + $0x4] sm:%s145] %v156
                %v158 = vld [vmem:[%s152 + $0x10] sm:%s145]
                %159 = vst [vmem:[%s153 + $0x8] sm:%s145] %v158
                %v160 = vld [vmem:[%s152 + $0x14] sm:%s145]
                %161 = vst [vmem:[%s153 + $0xc] sm:%s145] %v160
                %v162 = vld [vmem:[%s152 + $0x20] sm:%s145]
                %163 = vst [vmem:[%s153 + $0x10] sm:%s145] %v162
                %v164 = vld [vmem:[%s152 + $0x24] sm:%s145]
                %165 = vst [vmem:[%s153 + $0x14] sm:%s145] %v164
                %v166 = vld [vmem:[%s152 + $0x30] sm:%s145]
                %167 = vst [vmem:[%s153 + $0x18] sm:%s145] %v166
                %v168 = vld [vmem:[%s152 + $0x34] sm:%s145]
                %169 = vst [vmem:[%s153 + $0x1c] sm:%s145] %v168
                %v170 = vld [vmem:[%s152 + $0x40] sm:%s145]
                %171 = vst [vmem:[%s153 + $0x20] sm:%s145] %v170
                %v172 = vld [vmem:[%s152 + $0x44] sm:%s145]
                %173 = vst [vmem:[%s153 + $0x24] sm:%s145] %v172
                %v174 = vld [vmem:[%s152 + $0x50] sm:%s145]
                %175 = vst [vmem:[%s153 + $0x28] sm:%s145] %v174
                %v176 = vld [vmem:[%s152 + $0x54] sm:%s145]
                %177 = vst [vmem:[%s153 + $0x2c] sm:%s145] %v176
                %v178 = vld [vmem:[%s152 + $0x60] sm:%s145]
                %179 = vst [vmem:[%s153 + $0x30] sm:%s145] %v178
                %v180 = vld [vmem:[%s152 + $0x64] sm:%s145]
                %181 = vst [vmem:[%s153 + $0x34] sm:%s145] %v180
                %v182 = vld [vmem:[%s152 + $0x70] sm:%s145]
                %183 = vst [vmem:[%s153 + $0x38] sm:%s145] %v182
                %v184 = vld [vmem:[%s152 + $0x74] sm:%s145]
                %185 = vst [vmem:[%s153 + $0x3c] sm:%s145] %v184
                %v186 = vld [vmem:[%s152 + $0x80] sm:%s145]
                %187 = vst [vmem:[%s153 + $0x40] sm:%s145] %v186
                %v188 = vld [vmem:[%s152 + $0x84] sm:%s145]
                %189 = vst [vmem:[%s153 + $0x44] sm:%s145] %v188
              $region45: #{flexible_image_encoder.4} parent=39 // loop_footer
                %s151 = sadd.s32 1, %s147
              $region46: #{flexible_image_encoder.4} parent=39 // loop_footer_branch
                %146 = sbr.rel target = $region42
              $region47: #{flexible_image_encoder.4} parent=39 // loop_exit
                _
            $region40: #{flexible_image_encoder.4} parent=31 // pred_fallthru
              _
          $region32: #{flexible_image_encoder.4} parent=27 // pred_fallthru
            _
          %246 = vnop
        $region28: #{flexible_image_encoder.4} parent=23 // pred_fallthru
          _
      $region24: #{flexible_image_encoder.4} parent=5 // pred_fallthru
        _
      %p247 = scmp.le.s32.totalorder 1, %s9
      %p248 = scmp.lt.s32.totalorder %s9, 3
      %p249 = pnand %p247, %p248
      %p250 = pneg %p249
      // Predicated region
      $region66: #{flexible_image_encoder.4} parent=5 // pred_check
        _
      $region67: #{flexible_image_encoder.4} parent=5 // pred_check_branch
        %252 = sbr.rel (%p249) target = $region69
      $region68: #{flexible_image_encoder.4} parent=5 // pred_region
        %s253 = ssub.s32 %s9, 1
        %s254 = sand.u32 %s22, 1
        %s255 = sand.u32 %s22, 1
        %s256 = smul.addr %s255, 72
        %s257 = scalar_lea.vmem [#allocation2], %s256
        // Predicated region
        $region70: #{flexible_image_encoder.4} parent=68 // pred_check
          %p258 = pneg %p35
        $region71: #{flexible_image_encoder.4} parent=68 // pred_check_branch
          %260 = sbr.rel (%p258) target = $region73
        $region72: #{flexible_image_encoder.4} parent=68 // pred_region
          _
        $region73: #{flexible_image_encoder.4} parent=68 // pred_fallthru
          _
        %s261 = sand.u32 %s22, 1
        %s262 = sand.u32 %s22, 1
        %s263 = smul.addr %s262, 72
        %s264 = scalar_lea.vmem [#allocation2], %s263
        %p265 = pneg %p35
        %p266 = pneg %p32
        %p267 = pneg %p56
        %p268 = pneg %p53
        %p269 = pneg %p77
        %p270 = pneg %p74
        %p271 = pneg %p103
        %p272 = pneg %p100
        %p273 = scmp.lt.s32.totalorder %s14, 1
        %s274 = scalar_select %p273, %s14, 1
        %s275 = smul.addr %s274, 2
        %s276 = smul.addr %s275, 4
        %s277 = scalar_lea.vmem %s3, %s276
        %p278 = scmp.lt.s32.totalorder %s14, 1
        %s279 = scalar_select %p278, %s14, 1
        %s280 = smul.addr %s279, 2
        %s281 = smul.addr %s280, 4
        %s282 = scalar_lea.vmem %s3, %s281
        %v284 = vld [vmem:[%s257] sm:$0xf]
        %v285 = vld [vmem:[%s257 + $0x4] sm:$0xf]
        %v286 = vld [vmem:[%s1] sm:$0xf]
        %v287 = vld [vmem:[%s1 + $0x4] sm:$0xf]
        %v288 = vld [vmem:[%s1 + $0x8] sm:$0xf]
        %v289 = vld [vmem:[%s1 + $0xc] sm:$0xf]
        %s290 = scalar_lea.vmem %s257, 8 [#allocation2]
        %v291 = vld [vmem:[%s290] sm:$0xf]
        %v292 = vld [vmem:[%s290 + $0x4] sm:$0xf]
        %s293 = scalar_lea.vmem %s1, 16
        %v294 = vld [vmem:[%s293] sm:$0xf]
        %v295 = vld [vmem:[%s293 + $0x4] sm:$0xf]
        %v296 = vld [vmem:[%s293 + $0x8] sm:$0xf]
        %v297 = vld [vmem:[%s293 + $0xc] sm:$0xf]
        %v300 = vunpack.c.l.b16 %v291
        %v301 = vunpack.c.l.b16 %v292
        %v302 = vpack.c.b16 %v301, %v300
        %v307 = vunpack.c.l.b16 %v294
        %v308 = vunpack.c.l.b16 %v295
        %v309 = vunpack.c.l.b16 %v296
        %v310 = vunpack.c.l.b16 %v297
        %v311 = vpack.c.b16 %v308, %v307
        %v312 = vpack.c.b16 %v310, %v309
        %vm315 = vcmask 261120
        %v317 = vsel %vm315, %v302, 0
        %319 = vmatprep.subr.bf16.mxu0 0
        %320 = vmatpush1.bf16.msra.mxu0 0
        %321 = vmatprep.subr.bf16.mxu0 0
        %322 = vmatpush1.bf16.msra.mxu0 0
        %323 = vmatprep.subr.bf16.mxu0 0
        %324 = vmatpush1.bf16.msra.mxu0 0
        %325 = vmatprep.subr.bf16.mxu0 0
        %326 = vmatpush1.bf16.msra.mxu0 0
        %327 = vmatprep.subr.bf16.mxu0 0
        %328 = vmatpush1.bf16.msra.mxu0 0
        %329 = vmatprep.subr.bf16.mxu0 0
        %330 = vmatpush1.bf16.msra.mxu0 0
        %331 = vmatprep.subr.bf16.mxu0 0
        %332 = vmatpush1.bf16.msra.mxu0 %v312
        %333 = vmatprep.subr.bf16.mxu0 0
        %334 = vmatpush1.bf16.msra.mxu0 %v311
        %335 = vmatprep.subr.bf16.mxu0 0
        %336 = vmatpush2.bf16.msra.mxu0 0
        %337 = vmatprep.subr.bf16.mxu0 0
        %338 = vmatpush2.bf16.msra.mxu0 0
        %339 = vmatprep.subr.bf16.mxu0 0
        %340 = vmatpush2.bf16.msra.mxu0 0
        %341 = vmatprep.subr.bf16.mxu0 0
        %342 = vmatpush2.bf16.msra.mxu0 0
        %343 = vmatprep.subr.bf16.mxu0 0
        %344 = vmatpush2.bf16.msra.mxu0 0
        %345 = vmatprep.subr.bf16.mxu0 0
        %346 = vmatpush2.bf16.msra.mxu0 0
        %347 = vmatprep.subr.bf16.mxu0 0
        %348 = vmatpush2.bf16.msra.mxu0 0
        %349 = vmatprep.subr.bf16.mxu0 0
        %350 = vmatpush2.bf16.msra.mxu0 0
        %351 = vmatprep.mubr.bf16.mxu0 0
        %352 = vmatmul.mubr.bf16.gmra.mxu0 %v317
        %v353 = vpop.f32.mrf.mxu0
        %v354 = vadd.f32 0.0, %v353
        %v355 = vpop.f32.mrf.mxu0
        %v356 = vpop.f32.mrf.mxu0
        %v357 = vadd.f32 0.0, %v356
        %v358 = vpop.f32.mrf.mxu0
        %359 = vdwg.mxu0
        %v362 = vunpack.c.l.b16 %v284
        %v363 = vunpack.c.l.b16 %v285
        %v364 = vpack.c.b16 %v363, %v362
        %v369 = vunpack.c.l.b16 %v286
        %v370 = vunpack.c.l.b16 %v287
        %v371 = vunpack.c.l.b16 %v288
        %v372 = vunpack.c.l.b16 %v289
        %v373 = vpack.c.b16 %v370, %v369
        %v374 = vpack.c.b16 %v372, %v371
        %v378 = vsel %vm315, %v364, 0
        %380 = vmatprep.subr.bf16.mxu0 0
        %381 = vmatpush1.bf16.msra.mxu0 0
        %382 = vmatprep.subr.bf16.mxu0 0
        %383 = vmatpush1.bf16.msra.mxu0 0
        %384 = vmatprep.subr.bf16.mxu0 0
        %385 = vmatpush1.bf16.msra.mxu0 0
        %386 = vmatprep.subr.bf16.mxu0 0
        %387 = vmatpush1.bf16.msra.mxu0 0
        %388 = vmatprep.subr.bf16.mxu0 0
        %389 = vmatpush1.bf16.msra.mxu0 0
        %390 = vmatprep.subr.bf16.mxu0 0
        %391 = vmatpush1.bf16.msra.mxu0 0
        %392 = vmatprep.subr.bf16.mxu0 0
        %393 = vmatpush1.bf16.msra.mxu0 %v374
        %394 = vmatprep.subr.bf16.mxu0 0
        %395 = vmatpush1.bf16.msra.mxu0 %v373
        %396 = vmatprep.subr.bf16.mxu0 0
        %397 = vmatpush2.bf16.msra.mxu0 0
        %398 = vmatprep.subr.bf16.mxu0 0
        %399 = vmatpush2.bf16.msra.mxu0 0
        %400 = vmatprep.subr.bf16.mxu0 0
        %401 = vmatpush2.bf16.msra.mxu0 0
        %402 = vmatprep.subr.bf16.mxu0 0
        %403 = vmatpush2.bf16.msra.mxu0 0
        %404 = vmatprep.subr.bf16.mxu0 0
        %405 = vmatpush2.bf16.msra.mxu0 0
        %406 = vmatprep.subr.bf16.mxu0 0
        %407 = vmatpush2.bf16.msra.mxu0 0
        %408 = vmatprep.subr.bf16.mxu0 0
        %409 = vmatpush2.bf16.msra.mxu0 0
        %410 = vmatprep.subr.bf16.mxu0 0
        %411 = vmatpush2.bf16.msra.mxu0 0
        %412 = vmatprep.mubr.bf16.mxu0 0
        %413 = vmatmul.mubr.bf16.gmra.mxu0 %v378
        %v414 = vpop.f32.mrf.mxu0
        %v415 = vadd.f32 %v354, %v414
        %v416 = vpop.f32.mrf.mxu0
        %v417 = vpop.f32.mrf.mxu0
        %v418 = vadd.f32 %v357, %v417
        %v419 = vpop.f32.mrf.mxu0
        %420 = vdwg.mxu0
        %s421 = scalar_lea.vmem %s257, 16 [#allocation2]
        %v422 = vld [vmem:[%s421] sm:$0xf]
        %v423 = vld [vmem:[%s421 + $0x4] sm:$0xf]
        %s424 = scalar_lea.vmem %s1, 32
        %v425 = vld [vmem:[%s424] sm:$0xf]
        %v426 = vld [vmem:[%s424 + $0x4] sm:$0xf]
        %v427 = vld [vmem:[%s424 + $0x8] sm:$0xf]
        %v428 = vld [vmem:[%s424 + $0xc] sm:$0xf]
        %v431 = vunpack.c.l.b16 %v422
        %v432 = vunpack.c.l.b16 %v423
        %v433 = vpack.c.b16 %v432, %v431
        %v438 = vunpack.c.l.b16 %v425
        %v439 = vunpack.c.l.b16 %v426
        %v440 = vunpack.c.l.b16 %v427
        %v441 = vunpack.c.l.b16 %v428
        %v442 = vpack.c.b16 %v439, %v438
        %v443 = vpack.c.b16 %v441, %v440
        %v447 = vsel %vm315, %v433, 0
        %449 = vmatprep.subr.bf16.mxu0 0
        %450 = vmatpush1.bf16.msra.mxu0 0
        %451 = vmatprep.subr.bf16.mxu0 0
        %452 = vmatpush1.bf16.msra.mxu0 0
        %453 = vmatprep.subr.bf16.mxu0 0
        %454 = vmatpush1.bf16.msra.mxu0 0
        %455 = vmatprep.subr.bf16.mxu0 0
        %456 = vmatpush1.bf16.msra.mxu0 0
        %457 = vmatprep.subr.bf16.mxu0 0
        %458 = vmatpush1.bf16.msra.mxu0 0
        %459 = vmatprep.subr.bf16.mxu0 0
        %460 = vmatpush1.bf16.msra.mxu0 0
        %461 = vmatprep.subr.bf16.mxu0 0
        %462 = vmatpush1.bf16.msra.mxu0 %v443
        %463 = vmatprep.subr.bf16.mxu0 0
        %464 = vmatpush1.bf16.msra.mxu0 %v442
        %465 = vmatprep.subr.bf16.mxu0 0
        %466 = vmatpush2.bf16.msra.mxu0 0
        %467 = vmatprep.subr.bf16.mxu0 0
        %468 = vmatpush2.bf16.msra.mxu0 0
        %469 = vmatprep.subr.bf16.mxu0 0
        %470 = vmatpush2.bf16.msra.mxu0 0
        %471 = vmatprep.subr.bf16.mxu0 0
        %472 = vmatpush2.bf16.msra.mxu0 0
        %473 = vmatprep.subr.bf16.mxu0 0
        %474 = vmatpush2.bf16.msra.mxu0 0
        %475 = vmatprep.subr.bf16.mxu0 0
        %476 = vmatpush2.bf16.msra.mxu0 0
        %477 = vmatprep.subr.bf16.mxu0 0
        %478 = vmatpush2.bf16.msra.mxu0 0
        %479 = vmatprep.subr.bf16.mxu0 0
        %480 = vmatpush2.bf16.msra.mxu0 0
        %481 = vmatprep.mubr.bf16.mxu0 0
        %482 = vmatmul.mubr.bf16.gmra.mxu0 %v447
        %v483 = vpop.f32.mrf.mxu0
        %v484 = vadd.f32 0.0, %v483
        %v485 = vpop.f32.mrf.mxu0
        %v486 = vpop.f32.mrf.mxu0
        %v487 = vadd.f32 0.0, %v486
        %v488 = vpop.f32.mrf.mxu0
        %489 = vdwg.mxu0
        %v490 = vadd.f32 %v415, %v484
        %v491 = vadd.f32 %v418, %v487
        %s492 = scalar_lea.vmem %s257, 24 [#allocation2]
        %v493 = vld [vmem:[%s492] sm:$0xf]
        %v494 = vld [vmem:[%s492 + $0x4] sm:$0xf]
        %s495 = scalar_lea.vmem %s1, 48
        %v496 = vld [vmem:[%s495] sm:$0xf]
        %v497 = vld [vmem:[%s495 + $0x4] sm:$0xf]
        %v498 = vld [vmem:[%s495 + $0x8] sm:$0xf]
        %v499 = vld [vmem:[%s495 + $0xc] sm:$0xf]
        %v502 = vunpack.c.l.b16 %v493
        %v503 = vunpack.c.l.b16 %v494
        %v504 = vpack.c.b16 %v503, %v502
        %v509 = vunpack.c.l.b16 %v496
        %v510 = vunpack.c.l.b16 %v497
        %v511 = vunpack.c.l.b16 %v498
        %v512 = vunpack.c.l.b16 %v499
        %v513 = vpack.c.b16 %v510, %v509
        %v514 = vpack.c.b16 %v512, %v511
        %v518 = vsel %vm315, %v504, 0
        %520 = vmatprep.subr.bf16.mxu0 0
        %521 = vmatpush1.bf16.msra.mxu0 0
        %522 = vmatprep.subr.bf16.mxu0 0
        %523 = vmatpush1.bf16.msra.mxu0 0
        %524 = vmatprep.subr.bf16.mxu0 0
        %525 = vmatpush1.bf16.msra.mxu0 0
        %526 = vmatprep.subr.bf16.mxu0 0
        %527 = vmatpush1.bf16.msra.mxu0 0
        %528 = vmatprep.subr.bf16.mxu0 0
        %529 = vmatpush1.bf16.msra.mxu0 0
        %530 = vmatprep.subr.bf16.mxu0 0
        %531 = vmatpush1.bf16.msra.mxu0 0
        %532 = vmatprep.subr.bf16.mxu0 0
        %533 = vmatpush1.bf16.msra.mxu0 %v514
        %534 = vmatprep.subr.bf16.mxu0 0
        %535 = vmatpush1.bf16.msra.mxu0 %v513
        %536 = vmatprep.subr.bf16.mxu0 0
        %537 = vmatpush2.bf16.msra.mxu0 0
        %538 = vmatprep.subr.bf16.mxu0 0
        %539 = vmatpush2.bf16.msra.mxu0 0
        %540 = vmatprep.subr.bf16.mxu0 0
        %541 = vmatpush2.bf16.msra.mxu0 0
        %542 = vmatprep.subr.bf16.mxu0 0
        %543 = vmatpush2.bf16.msra.mxu0 0
        %544 = vmatprep.subr.bf16.mxu0 0
        %545 = vmatpush2.bf16.msra.mxu0 0
        %546 = vmatprep.subr.bf16.mxu0 0
        %547 = vmatpush2.bf16.msra.mxu0 0
        %548 = vmatprep.subr.bf16.mxu0 0
        %549 = vmatpush2.bf16.msra.mxu0 0
        %550 = vmatprep.subr.bf16.mxu0 0
        %551 = vmatpush2.bf16.msra.mxu0 0
        %552 = vmatprep.mubr.bf16.mxu0 0
        %553 = vmatmul.mubr.bf16.gmra.mxu0 %v518
        %v554 = vpop.f32.mrf.mxu0
        %v555 = vadd.f32 0.0, %v554
        %v556 = vpop.f32.mrf.mxu0
        %v557 = vpop.f32.mrf.mxu0
        %v558 = vadd.f32 0.0, %v557
        %v559 = vpop.f32.mrf.mxu0
        %560 = vdwg.mxu0
        %v561 = vadd.f32 %v490, %v555
        %v562 = vadd.f32 %v491, %v558
        %s563 = scalar_lea.vmem %s257, 32 [#allocation2]
        %v564 = vld [vmem:[%s563] sm:$0xf]
        %v565 = vld [vmem:[%s563 + $0x4] sm:$0xf]
        %s566 = scalar_lea.vmem %s1, 64
        %v567 = vld [vmem:[%s566] sm:$0xf]
        %v568 = vld [vmem:[%s566 + $0x4] sm:$0xf]
        %v569 = vld [vmem:[%s566 + $0x8] sm:$0xf]
        %v570 = vld [vmem:[%s566 + $0xc] sm:$0xf]
        %v573 = vunpack.c.l.b16 %v564
        %v574 = vunpack.c.l.b16 %v565
        %v575 = vpack.c.b16 %v574, %v573
        %v580 = vunpack.c.l.b16 %v567
        %v581 = vunpack.c.l.b16 %v568
        %v582 = vunpack.c.l.b16 %v569
        %v583 = vunpack.c.l.b16 %v570
        %v584 = vpack.c.b16 %v581, %v580
        %v585 = vpack.c.b16 %v583, %v582
        %v589 = vsel %vm315, %v575, 0
        %591 = vmatprep.subr.bf16.mxu0 0
        %592 = vmatpush1.bf16.msra.mxu0 0
        %593 = vmatprep.subr.bf16.mxu0 0
        %594 = vmatpush1.bf16.msra.mxu0 0
        %595 = vmatprep.subr.bf16.mxu0 0
        %596 = vmatpush1.bf16.msra.mxu0 0
        %597 = vmatprep.subr.bf16.mxu0 0
        %598 = vmatpush1.bf16.msra.mxu0 0
        %599 = vmatprep.subr.bf16.mxu0 0
        %600 = vmatpush1.bf16.msra.mxu0 0
        %601 = vmatprep.subr.bf16.mxu0 0
        %602 = vmatpush1.bf16.msra.mxu0 0
        %603 = vmatprep.subr.bf16.mxu0 0
        %604 = vmatpush1.bf16.msra.mxu0 %v585
        %605 = vmatprep.subr.bf16.mxu0 0
        %606 = vmatpush1.bf16.msra.mxu0 %v584
        %607 = vmatprep.subr.bf16.mxu0 0
        %608 = vmatpush2.bf16.msra.mxu0 0
        %609 = vmatprep.subr.bf16.mxu0 0
        %610 = vmatpush2.bf16.msra.mxu0 0
        %611 = vmatprep.subr.bf16.mxu0 0
        %612 = vmatpush2.bf16.msra.mxu0 0
        %613 = vmatprep.subr.bf16.mxu0 0
        %614 = vmatpush2.bf16.msra.mxu0 0
        %615 = vmatprep.subr.bf16.mxu0 0
        %616 = vmatpush2.bf16.msra.mxu0 0
        %617 = vmatprep.subr.bf16.mxu0 0
        %618 = vmatpush2.bf16.msra.mxu0 0
        %619 = vmatprep.subr.bf16.mxu0 0
        %620 = vmatpush2.bf16.msra.mxu0 0
        %621 = vmatprep.subr.bf16.mxu0 0
        %622 = vmatpush2.bf16.msra.mxu0 0
        %623 = vmatprep.mubr.bf16.mxu0 0
        %624 = vmatmul.mubr.bf16.gmra.mxu0 %v589
        %v625 = vpop.f32.mrf.mxu0
        %v626 = vadd.f32 0.0, %v625
        %v627 = vpop.f32.mrf.mxu0
        %v628 = vpop.f32.mrf.mxu0
        %v629 = vadd.f32 0.0, %v628
        %v630 = vpop.f32.mrf.mxu0
        %631 = vdwg.mxu0
        %v632 = vadd.f32 %v561, %v626
        %v633 = vadd.f32 %v562, %v629
        %s634 = scalar_lea.vmem %s257, 40 [#allocation2]
        %v635 = vld [vmem:[%s634] sm:$0xf]
        %v636 = vld [vmem:[%s634 + $0x4] sm:$0xf]
        %s637 = scalar_lea.vmem %s1, 80
        %v638 = vld [vmem:[%s637] sm:$0xf]
        %v639 = vld [vmem:[%s637 + $0x4] sm:$0xf]
        %v640 = vld [vmem:[%s637 + $0x8] sm:$0xf]
        %v641 = vld [vmem:[%s637 + $0xc] sm:$0xf]
        %v644 = vunpack.c.l.b16 %v635
        %v645 = vunpack.c.l.b16 %v636
        %v646 = vpack.c.b16 %v645, %v644
        %v651 = vunpack.c.l.b16 %v638
        %v652 = vunpack.c.l.b16 %v639
        %v653 = vunpack.c.l.b16 %v640
        %v654 = vunpack.c.l.b16 %v641
        %v655 = vpack.c.b16 %v652, %v651
        %v656 = vpack.c.b16 %v654, %v653
        %v660 = vsel %vm315, %v646, 0
        %662 = vmatprep.subr.bf16.mxu0 0
        %663 = vmatpush1.bf16.msra.mxu0 0
        %664 = vmatprep.subr.bf16.mxu0 0
        %665 = vmatpush1.bf16.msra.mxu0 0
        %666 = vmatprep.subr.bf16.mxu0 0
        %667 = vmatpush1.bf16.msra.mxu0 0
        %668 = vmatprep.subr.bf16.mxu0 0
        %669 = vmatpush1.bf16.msra.mxu0 0
        %670 = vmatprep.subr.bf16.mxu0 0
        %671 = vmatpush1.bf16.msra.mxu0 0
        %672 = vmatprep.subr.bf16.mxu0 0
        %673 = vmatpush1.bf16.msra.mxu0 0
        %674 = vmatprep.subr.bf16.mxu0 0
        %675 = vmatpush1.bf16.msra.mxu0 %v656
        %676 = vmatprep.subr.bf16.mxu0 0
        %677 = vmatpush1.bf16.msra.mxu0 %v655
        %678 = vmatprep.subr.bf16.mxu0 0
        %679 = vmatpush2.bf16.msra.mxu0 0
        %680 = vmatprep.subr.bf16.mxu0 0
        %681 = vmatpush2.bf16.msra.mxu0 0
        %682 = vmatprep.subr.bf16.mxu0 0
        %683 = vmatpush2.bf16.msra.mxu0 0
        %684 = vmatprep.subr.bf16.mxu0 0
        %685 = vmatpush2.bf16.msra.mxu0 0
        %686 = vmatprep.subr.bf16.mxu0 0
        %687 = vmatpush2.bf16.msra.mxu0 0
        %688 = vmatprep.subr.bf16.mxu0 0
        %689 = vmatpush2.bf16.msra.mxu0 0
        %690 = vmatprep.subr.bf16.mxu0 0
        %691 = vmatpush2.bf16.msra.mxu0 0
        %692 = vmatprep.subr.bf16.mxu0 0
        %693 = vmatpush2.bf16.msra.mxu0 0
        %694 = vmatprep.mubr.bf16.mxu0 0
        %695 = vmatmul.mubr.bf16.gmra.mxu0 %v660
        %v696 = vpop.f32.mrf.mxu0
        %v697 = vadd.f32 0.0, %v696
        %v698 = vpop.f32.mrf.mxu0
        %v699 = vpop.f32.mrf.mxu0
        %v700 = vadd.f32 0.0, %v699
        %v701 = vpop.f32.mrf.mxu0
        %702 = vdwg.mxu0
        %v703 = vadd.f32 %v632, %v697
        %v704 = vadd.f32 %v633, %v700
        %s705 = scalar_lea.vmem %s257, 48 [#allocation2]
        %v706 = vld [vmem:[%s705] sm:$0xf]
        %v707 = vld [vmem:[%s705 + $0x4] sm:$0xf]
        %s708 = scalar_lea.vmem %s1, 96
        %v709 = vld [vmem:[%s708] sm:$0xf]
        %v710 = vld [vmem:[%s708 + $0x4] sm:$0xf]
        %v711 = vld [vmem:[%s708 + $0x8] sm:$0xf]
        %v712 = vld [vmem:[%s708 + $0xc] sm:$0xf]
        %v715 = vunpack.c.l.b16 %v706
        %v716 = vunpack.c.l.b16 %v707
        %v717 = vpack.c.b16 %v716, %v715
        %v722 = vunpack.c.l.b16 %v709
        %v723 = vunpack.c.l.b16 %v710
        %v724 = vunpack.c.l.b16 %v711
        %v725 = vunpack.c.l.b16 %v712
        %v726 = vpack.c.b16 %v723, %v722
        %v727 = vpack.c.b16 %v725, %v724
        %v731 = vsel %vm315, %v717, 0
        %733 = vmatprep.subr.bf16.mxu0 0
        %734 = vmatpush1.bf16.msra.mxu0 0
        %735 = vmatprep.subr.bf16.mxu0 0
        %736 = vmatpush1.bf16.msra.mxu0 0
        %737 = vmatprep.subr.bf16.mxu0 0
        %738 = vmatpush1.bf16.msra.mxu0 0
        %739 = vmatprep.subr.bf16.mxu0 0
        %740 = vmatpush1.bf16.msra.mxu0 0
        %741 = vmatprep.subr.bf16.mxu0 0
        %742 = vmatpush1.bf16.msra.mxu0 0
        %743 = vmatprep.subr.bf16.mxu0 0
        %744 = vmatpush1.bf16.msra.mxu0 0
        %745 = vmatprep.subr.bf16.mxu0 0
        %746 = vmatpush1.bf16.msra.mxu0 %v727
        %747 = vmatprep.subr.bf16.mxu0 0
        %748 = vmatpush1.bf16.msra.mxu0 %v726
        %749 = vmatprep.subr.bf16.mxu0 0
        %750 = vmatpush2.bf16.msra.mxu0 0
        %751 = vmatprep.subr.bf16.mxu0 0
        %752 = vmatpush2.bf16.msra.mxu0 0
        %753 = vmatprep.subr.bf16.mxu0 0
        %754 = vmatpush2.bf16.msra.mxu0 0
        %755 = vmatprep.subr.bf16.mxu0 0
        %756 = vmatpush2.bf16.msra.mxu0 0
        %757 = vmatprep.subr.bf16.mxu0 0
        %758 = vmatpush2.bf16.msra.mxu0 0
        %759 = vmatprep.subr.bf16.mxu0 0
        %760 = vmatpush2.bf16.msra.mxu0 0
        %761 = vmatprep.subr.bf16.mxu0 0
        %762 = vmatpush2.bf16.msra.mxu0 0
        %763 = vmatprep.subr.bf16.mxu0 0
        %764 = vmatpush2.bf16.msra.mxu0 0
        %765 = vmatprep.mubr.bf16.mxu0 0
        %766 = vmatmul.mubr.bf16.gmra.mxu0 %v731
        %v767 = vpop.f32.mrf.mxu0
        %v768 = vadd.f32 0.0, %v767
        %v769 = vpop.f32.mrf.mxu0
        %v770 = vpop.f32.mrf.mxu0
        %v771 = vadd.f32 0.0, %v770
        %v772 = vpop.f32.mrf.mxu0
        %773 = vdwg.mxu0
        %v774 = vadd.f32 %v703, %v768
        %v775 = vadd.f32 %v704, %v771
        %s776 = scalar_lea.vmem %s257, 56 [#allocation2]
        %v777 = vld [vmem:[%s776] sm:$0xf]
        %v778 = vld [vmem:[%s776 + $0x4] sm:$0xf]
        %s779 = scalar_lea.vmem %s1, 112
        %v780 = vld [vmem:[%s779] sm:$0xf]
        %v781 = vld [vmem:[%s779 + $0x4] sm:$0xf]
        %v782 = vld [vmem:[%s779 + $0x8] sm:$0xf]
        %v783 = vld [vmem:[%s779 + $0xc] sm:$0xf]
        %v786 = vunpack.c.l.b16 %v777
        %v787 = vunpack.c.l.b16 %v778
        %v788 = vpack.c.b16 %v787, %v786
        %v793 = vunpack.c.l.b16 %v780
        %v794 = vunpack.c.l.b16 %v781
        %v795 = vunpack.c.l.b16 %v782
        %v796 = vunpack.c.l.b16 %v783
        %v797 = vpack.c.b16 %v794, %v793
        %v798 = vpack.c.b16 %v796, %v795
        %v802 = vsel %vm315, %v788, 0
        %804 = vmatprep.subr.bf16.mxu0 0
        %805 = vmatpush1.bf16.msra.mxu0 0
        %806 = vmatprep.subr.bf16.mxu0 0
        %807 = vmatpush1.bf16.msra.mxu0 0
        %808 = vmatprep.subr.bf16.mxu0 0
        %809 = vmatpush1.bf16.msra.mxu0 0
        %810 = vmatprep.subr.bf16.mxu0 0
        %811 = vmatpush1.bf16.msra.mxu0 0
        %812 = vmatprep.subr.bf16.mxu0 0
        %813 = vmatpush1.bf16.msra.mxu0 0
        %814 = vmatprep.subr.bf16.mxu0 0
        %815 = vmatpush1.bf16.msra.mxu0 0
        %816 = vmatprep.subr.bf16.mxu0 0
        %817 = vmatpush1.bf16.msra.mxu0 %v798
        %818 = vmatprep.subr.bf16.mxu0 0
        %819 = vmatpush1.bf16.msra.mxu0 %v797
        %820 = vmatprep.subr.bf16.mxu0 0
        %821 = vmatpush2.bf16.msra.mxu0 0
        %822 = vmatprep.subr.bf16.mxu0 0
        %823 = vmatpush2.bf16.msra.mxu0 0
        %824 = vmatprep.subr.bf16.mxu0 0
        %825 = vmatpush2.bf16.msra.mxu0 0
        %826 = vmatprep.subr.bf16.mxu0 0
        %827 = vmatpush2.bf16.msra.mxu0 0
        %828 = vmatprep.subr.bf16.mxu0 0
        %829 = vmatpush2.bf16.msra.mxu0 0
        %830 = vmatprep.subr.bf16.mxu0 0
        %831 = vmatpush2.bf16.msra.mxu0 0
        %832 = vmatprep.subr.bf16.mxu0 0
        %833 = vmatpush2.bf16.msra.mxu0 0
        %834 = vmatprep.subr.bf16.mxu0 0
        %835 = vmatpush2.bf16.msra.mxu0 0
        %836 = vmatprep.mubr.bf16.mxu0 0
        %837 = vmatmul.mubr.bf16.gmra.mxu0 %v802
        %v838 = vpop.f32.mrf.mxu0
        %v839 = vadd.f32 0.0, %v838
        %v840 = vpop.f32.mrf.mxu0
        %v841 = vpop.f32.mrf.mxu0
        %v842 = vadd.f32 0.0, %v841
        %v843 = vpop.f32.mrf.mxu0
        %844 = vdwg.mxu0
        %v845 = vadd.f32 %v774, %v839
        %v846 = vadd.f32 %v775, %v842
        %s847 = scalar_lea.vmem %s257, 64 [#allocation2]
        %v848 = vld [vmem:[%s847] sm:$0xf]
        %v849 = vld [vmem:[%s847 + $0x4] sm:$0xf]
        %s850 = scalar_lea.vmem %s1, 128
        %v851 = vld [vmem:[%s850] sm:$0xf]
        %v852 = vld [vmem:[%s850 + $0x4] sm:$0xf]
        %v853 = vld [vmem:[%s850 + $0x8] sm:$0xf]
        %v854 = vld [vmem:[%s850 + $0xc] sm:$0xf]
        %v857 = vunpack.c.l.b16 %v848
        %v858 = vunpack.c.l.b16 %v849
        %v859 = vpack.c.b16 %v858, %v857
        %v864 = vunpack.c.l.b16 %v851
        %v865 = vunpack.c.l.b16 %v852
        %v866 = vunpack.c.l.b16 %v853
        %v867 = vunpack.c.l.b16 %v854
        %v868 = vpack.c.b16 %v865, %v864
        %v869 = vpack.c.b16 %v867, %v866
        %v873 = vsel %vm315, %v859, 0
        %875 = vmatprep.subr.bf16.mxu0 0
        %876 = vmatpush1.bf16.msra.mxu0 0
        %877 = vmatprep.subr.bf16.mxu0 0
        %878 = vmatpush1.bf16.msra.mxu0 0
        %879 = vmatprep.subr.bf16.mxu0 0
        %880 = vmatpush1.bf16.msra.mxu0 0
        %881 = vmatprep.subr.bf16.mxu0 0
        %882 = vmatpush1.bf16.msra.mxu0 0
        %883 = vmatprep.subr.bf16.mxu0 0
        %884 = vmatpush1.bf16.msra.mxu0 0
        %885 = vmatprep.subr.bf16.mxu0 0
        %886 = vmatpush1.bf16.msra.mxu0 0
        %887 = vmatprep.subr.bf16.mxu0 0
        %888 = vmatpush1.bf16.msra.mxu0 %v869
        %889 = vmatprep.subr.bf16.mxu0 0
        %890 = vmatpush1.bf16.msra.mxu0 %v868
        %891 = vmatprep.subr.bf16.mxu0 0
        %892 = vmatpush2.bf16.msra.mxu0 0
        %893 = vmatprep.subr.bf16.mxu0 0
        %894 = vmatpush2.bf16.msra.mxu0 0
        %895 = vmatprep.subr.bf16.mxu0 0
        %896 = vmatpush2.bf16.msra.mxu0 0
        %897 = vmatprep.subr.bf16.mxu0 0
        %898 = vmatpush2.bf16.msra.mxu0 0
        %899 = vmatprep.subr.bf16.mxu0 0
        %900 = vmatpush2.bf16.msra.mxu0 0
        %901 = vmatprep.subr.bf16.mxu0 0
        %902 = vmatpush2.bf16.msra.mxu0 0
        %903 = vmatprep.subr.bf16.mxu0 0
        %904 = vmatpush2.bf16.msra.mxu0 0
        %905 = vmatprep.subr.bf16.mxu0 0
        %906 = vmatpush2.bf16.msra.mxu0 0
        %907 = vmatprep.mubr.bf16.mxu0 0
        %908 = vmatmul.mubr.bf16.gmra.mxu0 %v873
        %v909 = vpop.f32.mrf.mxu0
        %v910 = vadd.f32 0.0, %v909
        %v911 = vpop.f32.mrf.mxu0
        %v912 = vpop.f32.mrf.mxu0
        %v913 = vadd.f32 0.0, %v912
        %v914 = vpop.f32.mrf.mxu0
        %915 = vdwg.mxu0
        %v916 = vadd.f32 %v845, %v910
        %v917 = vadd.f32 %v846, %v913
        %v918 = vld [vmem:[%s2] sm:$0x1]
        %v920 = vlaneseq
        %v921 = vshrl.u32 %v920, 7
        %v922 = vsub.s32 0, %v921
        %v923 = vrot.slane %v918, %v922
        %v925 = vadd.f32 %v916, %v923
        %v926 = vadd.f32 %v917, %v923
        %v927 = vmax.f32 %v925, 0.0
        %v928 = vmax.f32 %v926, 0.0
        %v929 = vpack.c.bf16 %v928, %v927
        %v931 = vunpack.c.l.b16 %v929
        %v932 = vunpack.c.h.b16 %v929
        %v933 = vpack.c.b16 %v931, %v931
        %v934 = vpack.c.b16 %v932, %v932
        %937 = vst [vmem:[%s282] sm:$0xf] %v933
        %938 = vst [vmem:[%s282 + $0x4] sm:$0xf] %v934
        %p939 = scmp.lt.s32.totalorder %s14, 1
        %s940 = scalar_select %p939, %s14, 1
        %s941 = smul.addr %s940, 2
        %s942 = smul.addr %s941, 4
        %s943 = scalar_lea.vmem %s3, %s942
        // Predicated region
        $region74: #{flexible_image_encoder.4} parent=68 // pred_check
          %p944 = pneg %p100
        $region75: #{flexible_image_encoder.4} parent=68 // pred_check_branch
          %946 = sbr.rel (%p944) target = $region77
        $region76: #{flexible_image_encoder.4} parent=68 // pred_region
          _
        $region77: #{flexible_image_encoder.4} parent=68 // pred_fallthru
          _
      $region69: #{flexible_image_encoder.4} parent=5 // pred_fallthru
        _
      %p947 = scmp.le.s32.totalorder 2, %s9
      // Predicated region
      $region78: #{flexible_image_encoder.4} parent=5 // pred_check
        %p948 = pneg %p947
      $region79: #{flexible_image_encoder.4} parent=5 // pred_check_branch
        %950 = sbr.rel (%p948) target = $region81
      $region80: #{flexible_image_encoder.4} parent=5 // pred_region
        %s951 = ssub.s32 %s9, 2
        // Predicated region
        $region82: #{flexible_image_encoder.4} parent=80 // pred_check
          %p952 = pneg %p106
        $region83: #{flexible_image_encoder.4} parent=80 // pred_check_branch
          %954 = sbr.rel (%p952) target = $region85
        $region84: #{flexible_image_encoder.4} parent=80 // pred_region
          %p955 = scmp.lt.s32.totalorder %s15, 1
          %s956 = scalar_select %p955, %s15, 1
          %s957 = smul.addr %s956, 2
          %s958 = smul.addr %s957, 4
          %s959 = scalar_lea.vmem %s3, %s958
        $region85: #{flexible_image_encoder.4} parent=80 // pred_fallthru
          _
      $region81: #{flexible_image_encoder.4} parent=5 // pred_fallthru
        _
    $region6: #{flexible_image_encoder.4} parent=1 // loop_footer
      %s13 = sadd.s32 1, %s9
    $region7: #{flexible_image_encoder.4} parent=1 // loop_footer_branch
      %8 = sbr.rel target = $region3
    $region8: #{flexible_image_encoder.4} parent=1 // loop_exit
      _

// kernel: flexible_image_encoder.5
$region0: #{flexible_image_encoder.5}
  #allocation0 [shape = 'u32[]', space=smem, size = 0x4, offset = 0x4, fixed_abs, tag = 'smem constant byte address 0x4 - core index']
  #allocation1 [shape = 'u32[144,128]{1,0:T(1,128)}', space=vmem, size = 0x12000, scoped, tag = 'internal scratch']
  %s0 = inlined_call_operand.vmem [shape: bf16[9,2,4,64], index: 0, kind: input, shape index: {}]
  %s1 = inlined_call_operand.vmem [shape: bf16[9,64,128], index: 1, kind: input, shape index: {}]
  %s2 = inlined_call_operand.vmem [shape: f32[1,128], index: 2, kind: input, shape index: {}]
  %s3 = inlined_call_operand.vmem [shape: bf16[128,128], index: 3, kind: input, shape index: {}]
  %s4 = inlined_call_operand.vmem [shape: f32[1,128], index: 4, kind: input, shape index: {}]
  %s5 = inlined_call_operand.hbm [shape: f32[2,1,128], index: 5, kind: output, shape index: {}]
  %s6 = sld [smem:[#allocation0]]
  $region94: #{flexible_image_encoder.5} parent=0
    _
  %s8 = ssub.s32 1, %s6
  %s9 = scalar_select 0, %s8, %s6
  $region1: #{flexible_image_encoder.5} parent=0
    #allocation2 [shape = 'u8[18432]{0}', space=vmem, size = 0x4800, scoped, tag = 'input window, operand 0']
    #allocation3 [shape = 'u8[1024]{0}', space=vmem, size = 0x400, scoped, tag = 'output window, operand 0']
    #allocation4 [shape = 's32[2]{0}', space=sflag, size = 0x8, scoped, tag = 'scoped memory for flexible_image_encoder.5']
    %10 = vsyncpa [#allocation4], 0
    %s11 = scalar_lea.sflag [#allocation4], 1
    %12 = vsyncpa %s11, 0
    loop: start=0, step=1, limit=4
    $region2: #{flexible_image_encoder.5} parent=1 // loop_pre_header
      _
    $region3: #{flexible_image_encoder.5} parent=1 // loop_header
      %s14 = sphi 0, %s18
      %p15 = scmp.ge.s32.totalorder %s14, 4
      %s24 = sphi 0, %s26
      %s27 = sphi 0, %s24
      %s28 = sphi 0, %s27
      %s44 = sphi 0, %s28
      %s48 = sphi 0, %s48
      %s50 = sphi 0, %s48
      %s51 = sphi 0, %s50
      %s65 = sphi 0, %s51
      %s69 = sphi 0, %s69
      %s71 = sphi 0, %s69
      %s72 = sphi 0, %s71
      %s86 = sphi 0, %s72
      %s90 = sphi 0, %s90
      %s92 = sphi 0, %s90
      %s93 = sphi 0, %s92
      %s107 = sphi 0, %s93
      %s111 = sphi 0, %s111
      %s113 = sphi 0, %s111
      %s114 = sphi 0, %s113
      %s128 = sphi 0, %s114
      %s134 = sphi 0, %s136
      %s137 = sphi 0, %s134
      %s138 = sphi 0, %s137
      %s154 = sphi 0, %s138
    $region4: #{flexible_image_encoder.5} parent=1 // loop_header_branch
      %17 = sbr.rel (%p15) target = $region8
    $region5: #{flexible_image_encoder.5} parent=1 // loop_body
      %s19 = ssub.s32 %s14, 1
      %s20 = ssub.s32 %s14, 2
      %s21 = sadd.s32 %s14, 1
      %s22 = ssub.s32 %s14, %s21
      %p23 = scmp.eq.s32.totalorder %s22, 0
      %s25 = sadd.s32 %s24, 1
      %s26 = scalar_select %p23, %s24, %s25
      %p29 = pneg %p23
      %p30 = scmp.eq.s32.totalorder %s14, 1
      %p31 = por %p29, %p30
      %p32 = scmp.ne.s32.totalorder %s24, %s27
      %p33 = scmp.eq.s32.totalorder %s14, 0
      %p34 = por %p32, %p33
      %p35 = scmp.ne.s32.totalorder %s24, %s27
      %p36 = scmp.eq.s32.totalorder %s19, 1
      %p37 = por %p35, %p36
      %p38 = scmp.ne.s32.totalorder %s27, %s28
      %p39 = scmp.eq.s32.totalorder %s19, 0
      %p40 = por %p38, %p39
      %p41 = scmp.ne.s32.totalorder %s27, %s28
      %p42 = scmp.eq.s32.totalorder %s20, 1
      %p43 = por %p41, %p42
      %p45 = scmp.ne.s32.totalorder %s28, %s44
      %p46 = scmp.eq.s32.totalorder %s20, 0
      %p47 = por %p45, %p46
      %s49 = sadd.s32 %s48, 1
      %p52 = scmp.eq.s32.totalorder %s14, 1
      %p53 = scmp.ne.s32.totalorder %s48, %s50
      %p54 = scmp.eq.s32.totalorder %s14, 0
      %p55 = por %p53, %p54
      %p56 = scmp.ne.s32.totalorder %s48, %s50
      %p57 = scmp.eq.s32.totalorder %s19, 1
      %p58 = por %p56, %p57
      %p59 = scmp.ne.s32.totalorder %s50, %s51
      %p60 = scmp.eq.s32.totalorder %s19, 0
      %p61 = por %p59, %p60
      %p62 = scmp.ne.s32.totalorder %s50, %s51
      %p63 = scmp.eq.s32.totalorder %s20, 1
      %p64 = por %p62, %p63
      %p66 = scmp.ne.s32.totalorder %s51, %s65
      %p67 = scmp.eq.s32.totalorder %s20, 0
      %p68 = por %p66, %p67
      %s70 = sadd.s32 %s69, 1
      %p73 = scmp.eq.s32.totalorder %s14, 1
      %p74 = scmp.ne.s32.totalorder %s69, %s71
      %p75 = scmp.eq.s32.totalorder %s14, 0
      %p76 = por %p74, %p75
      %p77 = scmp.ne.s32.totalorder %s69, %s71
      %p78 = scmp.eq.s32.totalorder %s19, 1
      %p79 = por %p77, %p78
      %p80 = scmp.ne.s32.totalorder %s71, %s72
      %p81 = scmp.eq.s32.totalorder %s19, 0
      %p82 = por %p80, %p81
      %p83 = scmp.ne.s32.totalorder %s71, %s72
      %p84 = scmp.eq.s32.totalorder %s20, 1
      %p85 = por %p83, %p84
      %p87 = scmp.ne.s32.totalorder %s72, %s86
      %p88 = scmp.eq.s32.totalorder %s20, 0
      %p89 = por %p87, %p88
      %s91 = sadd.s32 %s90, 1
      %p94 = scmp.eq.s32.totalorder %s14, 1
      %p95 = scmp.ne.s32.totalorder %s90, %s92
      %p96 = scmp.eq.s32.totalorder %s14, 0
      %p97 = por %p95, %p96
      %p98 = scmp.ne.s32.totalorder %s90, %s92
      %p99 = scmp.eq.s32.totalorder %s19, 1
      %p100 = por %p98, %p99
      %p101 = scmp.ne.s32.totalorder %s92, %s93
      %p102 = scmp.eq.s32.totalorder %s19, 0
      %p103 = por %p101, %p102
      %p104 = scmp.ne.s32.totalorder %s92, %s93
      %p105 = scmp.eq.s32.totalorder %s20, 1
      %p106 = por %p104, %p105
      %p108 = scmp.ne.s32.totalorder %s93, %s107
      %p109 = scmp.eq.s32.totalorder %s20, 0
      %p110 = por %p108, %p109
      %s112 = sadd.s32 %s111, 1
      %p115 = scmp.eq.s32.totalorder %s14, 1
      %p116 = scmp.ne.s32.totalorder %s111, %s113
      %p117 = scmp.eq.s32.totalorder %s14, 0
      %p118 = por %p116, %p117
      %p119 = scmp.ne.s32.totalorder %s111, %s113
      %p120 = scmp.eq.s32.totalorder %s19, 1
      %p121 = por %p119, %p120
      %p122 = scmp.ne.s32.totalorder %s113, %s114
      %p123 = scmp.eq.s32.totalorder %s19, 0
      %p124 = por %p122, %p123
      %p125 = scmp.ne.s32.totalorder %s113, %s114
      %p126 = scmp.eq.s32.totalorder %s20, 1
      %p127 = por %p125, %p126
      %p129 = scmp.ne.s32.totalorder %s114, %s128
      %p130 = scmp.eq.s32.totalorder %s20, 0
      %p131 = por %p129, %p130
      %s132 = ssub.s32 %s14, %s21
      %p133 = scmp.eq.s32.totalorder %s132, 0
      %s135 = sadd.s32 %s134, 1
      %s136 = scalar_select %p133, %s134, %s135
      %p139 = pneg %p133
      %p140 = scmp.eq.s32.totalorder %s14, 1
      %p141 = por %p139, %p140
      %p142 = scmp.ne.s32.totalorder %s134, %s137
      %p143 = scmp.eq.s32.totalorder %s14, 0
      %p144 = por %p142, %p143
      %p145 = scmp.ne.s32.totalorder %s134, %s137
      %p146 = scmp.eq.s32.totalorder %s19, 1
      %p147 = por %p145, %p146
      %p148 = scmp.ne.s32.totalorder %s137, %s138
      %p149 = scmp.eq.s32.totalorder %s19, 0
      %p150 = por %p148, %p149
      %p151 = scmp.ne.s32.totalorder %s137, %s138
      %p152 = scmp.eq.s32.totalorder %s20, 1
      %p153 = por %p151, %p152
      %p155 = scmp.ne.s32.totalorder %s138, %s154
      %p156 = scmp.eq.s32.totalorder %s20, 0
      %p157 = por %p155, %p156
      %p158 = scmp.le.s32.totalorder 1, %s14
      %p159 = scmp.lt.s32.totalorder %s14, 3
      %p160 = pnand %p158, %p159
      %p161 = pneg %p160
      // Predicated region
      $region9: #{flexible_image_encoder.5} parent=5 // pred_check
        _
      $region10: #{flexible_image_encoder.5} parent=5 // pred_check_branch
        %163 = sbr.rel (%p160) target = $region12
      $region11: #{flexible_image_encoder.5} parent=5 // pred_region
        %s164 = ssub.s32 %s14, 1
        // Predicated region
        $region13: #{flexible_image_encoder.5} parent=11 // pred_check
          %p165 = pneg %p61
        $region14: #{flexible_image_encoder.5} parent=11 // pred_check_branch
          %167 = sbr.rel (%p165) target = $region16
        $region15: #{flexible_image_encoder.5} parent=11 // pred_region
          _
        $region16: #{flexible_image_encoder.5} parent=11 // pred_fallthru
          _
        // Predicated region
        $region17: #{flexible_image_encoder.5} parent=11 // pred_check
          %p168 = pneg %p82
        $region18: #{flexible_image_encoder.5} parent=11 // pred_check_branch
          %170 = sbr.rel (%p168) target = $region20
        $region19: #{flexible_image_encoder.5} parent=11 // pred_region
          _
        $region20: #{flexible_image_encoder.5} parent=11 // pred_fallthru
          _
        // Predicated region
        $region21: #{flexible_image_encoder.5} parent=11 // pred_check
          %p171 = pneg %p103
        $region22: #{flexible_image_encoder.5} parent=11 // pred_check_branch
          %173 = sbr.rel (%p171) target = $region24
        $region23: #{flexible_image_encoder.5} parent=11 // pred_region
          _
        $region24: #{flexible_image_encoder.5} parent=11 // pred_fallthru
          _
        // Predicated region
        $region25: #{flexible_image_encoder.5} parent=11 // pred_check
          %p174 = pneg %p124
        $region26: #{flexible_image_encoder.5} parent=11 // pred_check_branch
          %176 = sbr.rel (%p174) target = $region28
        $region27: #{flexible_image_encoder.5} parent=11 // pred_region
          _
        $region28: #{flexible_image_encoder.5} parent=11 // pred_fallthru
          _
      $region12: #{flexible_image_encoder.5} parent=5 // pred_fallthru
        _
      %p177 = scmp.lt.s32.totalorder %s14, 2
      // Predicated region
      $region29: #{flexible_image_encoder.5} parent=5 // pred_check
        %p178 = pneg %p177
      $region30: #{flexible_image_encoder.5} parent=5 // pred_check_branch
        %180 = sbr.rel (%p178) target = $region32
      $region31: #{flexible_image_encoder.5} parent=5 // pred_region
        // Predicated region
        $region33: #{flexible_image_encoder.5} parent=31 // pred_check
          %p181 = pneg %p34
        $region34: #{flexible_image_encoder.5} parent=31 // pred_check_branch
          %183 = sbr.rel (%p181) target = $region36
        $region35: #{flexible_image_encoder.5} parent=31 // pred_region
          %s184 = sand.u32 %s24, 1
          %s185 = sand.u32 %s24, 1
          %s186 = smul.addr %s185, 18
          %s187 = scalar_lea.vmem [#allocation2], %s186
          %s188 = smul.addr %s14, 2
          %s189 = scalar_lea.vmem %s0, %s188
          // Predicated region
          $region37: #{flexible_image_encoder.5} parent=35 // pred_check
            _
          $region38: #{flexible_image_encoder.5} parent=35 // pred_check_branch
            %191 = sbr.rel (0) target = $region40
          $region39: #{flexible_image_encoder.5} parent=35 // pred_region
            // Predicated region
            $region41: #{flexible_image_encoder.5} parent=39 // pred_check
              _
            $region42: #{flexible_image_encoder.5} parent=39 // pred_check_branch
              %193 = sbr.rel target = $region44
            $region43: #{flexible_image_encoder.5} parent=39 // pred_region
              // Predicated region
              $region56: #{flexible_image_encoder.5} parent=43 // pred_check
                _
              $region57: #{flexible_image_encoder.5} parent=43 // pred_check_branch
                %225 = sbr.rel (0) target = $region59
              $region58: #{flexible_image_encoder.5} parent=43 // pred_region
                loop: start=0, step=1, limit=1
                $region60: #{flexible_image_encoder.5} parent=58 // loop_pre_header
                  _
                $region61: #{flexible_image_encoder.5} parent=58 // loop_header
                  %s227 = sphi 0, %s231
                  %p228 = scmp.ge.s32.totalorder %s227, 1
                  %s232 = sphi %s189, %s189
                  %s233 = sphi %s187, %s187
                $region62: #{flexible_image_encoder.5} parent=58 // loop_header_branch
                  %230 = sbr.rel (%p228) target = $region66
                $region63: #{flexible_image_encoder.5} parent=58 // loop_body
                  _
                $region64: #{flexible_image_encoder.5} parent=58 // loop_footer
                  %s231 = sadd.s32 1, %s227
                $region65: #{flexible_image_encoder.5} parent=58 // loop_footer_branch
                  %226 = sbr.rel target = $region61
                $region66: #{flexible_image_encoder.5} parent=58 // loop_exit
                  _
                %s235 = ssub.s32 4, 1
                loop: start=0, step=1, limit=1
                $region67: #{flexible_image_encoder.5} parent=58 // loop_pre_header
                  _
                $region68: #{flexible_image_encoder.5} parent=58 // loop_header
                  %s237 = sphi 0, %s241
                  %p238 = scmp.ge.s32.totalorder %s237, 1
                  %s242 = sphi %s189, %s189
                  %s243 = sphi %s187, %s187
                $region69: #{flexible_image_encoder.5} parent=58 // loop_header_branch
                  %240 = sbr.rel (%p238) target = $region73
                $region70: #{flexible_image_encoder.5} parent=58 // loop_body
                  %v244 = vld [vmem:[%s242] sm:%s235]
                  %245 = vst [vmem:[%s243] sm:%s235] %v244
                  %v246 = vld [vmem:[%s242 + $0x4] sm:%s235]
                  %247 = vst [vmem:[%s243 + $0x2] sm:%s235] %v246
                  %v248 = vld [vmem:[%s242 + $0x8] sm:%s235]
                  %249 = vst [vmem:[%s243 + $0x4] sm:%s235] %v248
                  %v250 = vld [vmem:[%s242 + $0xc] sm:%s235]
                  %251 = vst [vmem:[%s243 + $0x6] sm:%s235] %v250
                  %v252 = vld [vmem:[%s242 + $0x10] sm:%s235]
                  %253 = vst [vmem:[%s243 + $0x8] sm:%s235] %v252
                  %v254 = vld [vmem:[%s242 + $0x14] sm:%s235]
                  %255 = vst [vmem:[%s243 + $0xa] sm:%s235] %v254
                  %v256 = vld [vmem:[%s242 + $0x18] sm:%s235]
                  %257 = vst [vmem:[%s243 + $0xc] sm:%s235] %v256
                  %v258 = vld [vmem:[%s242 + $0x1c] sm:%s235]
                  %259 = vst [vmem:[%s243 + $0xe] sm:%s235] %v258
                  %v260 = vld [vmem:[%s242 + $0x20] sm:%s235]
                  %261 = vst [vmem:[%s243 + $0x10] sm:%s235] %v260
                $region71: #{flexible_image_encoder.5} parent=58 // loop_footer
                  %s241 = sadd.s32 1, %s237
                $region72: #{flexible_image_encoder.5} parent=58 // loop_footer_branch
                  %236 = sbr.rel target = $region68
                $region73: #{flexible_image_encoder.5} parent=58 // loop_exit
                  _
              $region59: #{flexible_image_encoder.5} parent=43 // pred_fallthru
                _
            $region44: #{flexible_image_encoder.5} parent=39 // pred_fallthru
              _
            // Predicated region
            $region45: #{flexible_image_encoder.5} parent=39 // pred_check
              _
            $region46: #{flexible_image_encoder.5} parent=39 // pred_check_branch
              %195 = sbr.rel (0) target = $region48
            $region47: #{flexible_image_encoder.5} parent=39 // pred_region
              %s197 = ssub.s32 4, 1
              loop: start=0, step=1, limit=1
              $region49: #{flexible_image_encoder.5} parent=47 // loop_pre_header
                _
              $region50: #{flexible_image_encoder.5} parent=47 // loop_header
                %s199 = sphi 0, %s203
                %p200 = scmp.ge.s32.totalorder %s199, 1
                %s204 = sphi %s189, %s189
                %s205 = sphi %s187, %s187
              $region51: #{flexible_image_encoder.5} parent=47 // loop_header_branch
                %202 = sbr.rel (%p200) target = $region55
              $region52: #{flexible_image_encoder.5} parent=47 // loop_body
                %v206 = vld [vmem:[%s204] sm:%s197]
                %207 = vst [vmem:[%s205] sm:%s197] %v206
                %v208 = vld [vmem:[%s204 + $0x4] sm:%s197]
                %209 = vst [vmem:[%s205 + $0x2] sm:%s197] %v208
                %v210 = vld [vmem:[%s204 + $0x8] sm:%s197]
                %211 = vst [vmem:[%s205 + $0x4] sm:%s197] %v210
                %v212 = vld [vmem:[%s204 + $0xc] sm:%s197]
                %213 = vst [vmem:[%s205 + $0x6] sm:%s197] %v212
                %v214 = vld [vmem:[%s204 + $0x10] sm:%s197]
                %215 = vst [vmem:[%s205 + $0x8] sm:%s197] %v214
                %v216 = vld [vmem:[%s204 + $0x14] sm:%s197]
                %217 = vst [vmem:[%s205 + $0xa] sm:%s197] %v216
                %v218 = vld [vmem:[%s204 + $0x18] sm:%s197]
                %219 = vst [vmem:[%s205 + $0xc] sm:%s197] %v218
                %v220 = vld [vmem:[%s204 + $0x1c] sm:%s197]
                %221 = vst [vmem:[%s205 + $0xe] sm:%s197] %v220
                %v222 = vld [vmem:[%s204 + $0x20] sm:%s197]
                %223 = vst [vmem:[%s205 + $0x10] sm:%s197] %v222
              $region53: #{flexible_image_encoder.5} parent=47 // loop_footer
                %s203 = sadd.s32 1, %s199
              $region54: #{flexible_image_encoder.5} parent=47 // loop_footer_branch
                %198 = sbr.rel target = $region50
              $region55: #{flexible_image_encoder.5} parent=47 // loop_exit
                _
            $region48: #{flexible_image_encoder.5} parent=39 // pred_fallthru
              _
          $region40: #{flexible_image_encoder.5} parent=35 // pred_fallthru
            _
          %262 = vnop
        $region36: #{flexible_image_encoder.5} parent=31 // pred_fallthru
          _
      $region32: #{flexible_image_encoder.5} parent=5 // pred_fallthru
        _
      %p263 = scmp.le.s32.totalorder 1, %s14
      %p264 = scmp.lt.s32.totalorder %s14, 3
      %p265 = pnand %p263, %p264
      %p266 = pneg %p265
      // Predicated region
      $region74: #{flexible_image_encoder.5} parent=5 // pred_check
        _
      $region75: #{flexible_image_encoder.5} parent=5 // pred_check_branch
        %268 = sbr.rel (%p265) target = $region77
      $region76: #{flexible_image_encoder.5} parent=5 // pred_region
        %s269 = ssub.s32 %s14, 1
        %s270 = sand.u32 %s27, 1
        %s271 = sand.u32 %s27, 1
        %s272 = smul.addr %s271, 18
        %s273 = scalar_lea.vmem [#allocation2], %s272
        // Predicated region
        $region78: #{flexible_image_encoder.5} parent=76 // pred_check
          %p274 = pneg %p40
        $region79: #{flexible_image_encoder.5} parent=76 // pred_check_branch
          %276 = sbr.rel (%p274) target = $region81
        $region80: #{flexible_image_encoder.5} parent=76 // pred_region
          _
        $region81: #{flexible_image_encoder.5} parent=76 // pred_fallthru
          _
        %s277 = sand.u32 %s27, 1
        %s278 = sand.u32 %s27, 1
        %s279 = smul.addr %s278, 18
        %s280 = scalar_lea.vmem [#allocation2], %s279
        %p281 = pneg %p40
        %p282 = pneg %p37
        %p283 = pneg %p61
        %p284 = pneg %p58
        %p285 = pneg %p82
        %p286 = pneg %p79
        %p287 = pneg %p103
        %p288 = pneg %p100
        %p289 = pneg %p124
        %p290 = pneg %p121
        %p291 = pneg %p150
        %p292 = pneg %p147
        %s293 = sand.u32 %s137, 1
        %s294 = scalar_lea.sflag [#allocation4], %s293
        %s295 = sand.u32 %s137, 1
        %s296 = scalar_lea.vmem [#allocation3], %s295
        %v298 = vld [vmem:[%s273] sm:$0x3]
        %v299 = vld [vmem:[%s1] sm:$0xf]
        %v300 = vld [vmem:[%s1 + $0x4] sm:$0xf]
        %v301 = vld [vmem:[%s1 + $0x8] sm:$0xf]
        %v302 = vld [vmem:[%s1 + $0xc] sm:$0xf]
        %v303 = vld [vmem:[%s1 + $0x10] sm:$0xf]
        %v304 = vld [vmem:[%s1 + $0x14] sm:$0xf]
        %v305 = vld [vmem:[%s1 + $0x18] sm:$0xf]
        %v306 = vld [vmem:[%s1 + $0x1c] sm:$0xf]
        %s307 = scalar_lea.vmem %s273, 2 [#allocation2]
        %v308 = vld [vmem:[%s307] sm:$0x3]
        %s309 = scalar_lea.vmem %s1, 32
        %v310 = vld [vmem:[%s309] sm:$0xf]
        %v311 = vld [vmem:[%s309 + $0x4] sm:$0xf]
        %v312 = vld [vmem:[%s309 + $0x8] sm:$0xf]
        %v313 = vld [vmem:[%s309 + $0xc] sm:$0xf]
        %v314 = vld [vmem:[%s309 + $0x10] sm:$0xf]
        %v315 = vld [vmem:[%s309 + $0x14] sm:$0xf]
        %v316 = vld [vmem:[%s309 + $0x18] sm:$0xf]
        %v317 = vld [vmem:[%s309 + $0x1c] sm:$0xf]
        %v326 = vunpack.c.l.b16 %v310
        %v327 = vunpack.c.l.b16 %v311
        %v328 = vunpack.c.l.b16 %v312
        %v329 = vunpack.c.l.b16 %v313
        %v330 = vunpack.c.l.b16 %v314
        %v331 = vunpack.c.l.b16 %v315
        %v332 = vunpack.c.l.b16 %v316
        %v333 = vunpack.c.l.b16 %v317
        %v334 = vpack.c.b16 %v327, %v326
        %v335 = vpack.c.b16 %v329, %v328
        %v336 = vpack.c.b16 %v331, %v330
        %v337 = vpack.c.b16 %v333, %v332
        %vm342 = vcmask 523264
        %v344 = vsel %vm342, %v308, 0
        %346 = vmatprep.subr.bf16.mxu0 0
        %347 = vmatpush1.bf16.msra.mxu0 0
        %348 = vmatprep.subr.bf16.mxu0 0
        %349 = vmatpush1.bf16.msra.mxu0 0
        %350 = vmatprep.subr.bf16.mxu0 0
        %351 = vmatpush1.bf16.msra.mxu0 0
        %352 = vmatprep.subr.bf16.mxu0 0
        %353 = vmatpush1.bf16.msra.mxu0 0
        %354 = vmatprep.subr.bf16.mxu0 0
        %355 = vmatpush1.bf16.msra.mxu0 %v337
        %356 = vmatprep.subr.bf16.mxu0 0
        %357 = vmatpush1.bf16.msra.mxu0 %v336
        %358 = vmatprep.subr.bf16.mxu0 0
        %359 = vmatpush1.bf16.msra.mxu0 %v335
        %360 = vmatprep.subr.bf16.mxu0 0
        %361 = vmatpush1.bf16.msra.mxu0 %v334
        %362 = vmatprep.subr.bf16.mxu0 0
        %363 = vmatpush2.bf16.msra.mxu0 0
        %364 = vmatprep.subr.bf16.mxu0 0
        %365 = vmatpush2.bf16.msra.mxu0 0
        %366 = vmatprep.subr.bf16.mxu0 0
        %367 = vmatpush2.bf16.msra.mxu0 0
        %368 = vmatprep.subr.bf16.mxu0 0
        %369 = vmatpush2.bf16.msra.mxu0 0
        %370 = vmatprep.subr.bf16.mxu0 0
        %371 = vmatpush2.bf16.msra.mxu0 0
        %372 = vmatprep.subr.bf16.mxu0 0
        %373 = vmatpush2.bf16.msra.mxu0 0
        %374 = vmatprep.subr.bf16.mxu0 0
        %375 = vmatpush2.bf16.msra.mxu0 0
        %376 = vmatprep.subr.bf16.mxu0 0
        %377 = vmatpush2.bf16.msra.mxu0 0
        %378 = vmatprep.mubr.bf16.mxu0 0
        %379 = vmatmul.mubr.bf16.gmra.mxu0 %v344
        %v380 = vpop.f32.mrf.mxu0
        %v381 = vadd.f32 0.0, %v380
        %v382 = vpop.f32.mrf.mxu0
        %v383 = vpop.f32.mrf.mxu0
        %v384 = vpop.f32.mrf.mxu0
        %385 = vdwg.mxu0
        %v394 = vunpack.c.l.b16 %v299
        %v395 = vunpack.c.l.b16 %v300
        %v396 = vunpack.c.l.b16 %v301
        %v397 = vunpack.c.l.b16 %v302
        %v398 = vunpack.c.l.b16 %v303
        %v399 = vunpack.c.l.b16 %v304
        %v400 = vunpack.c.l.b16 %v305
        %v401 = vunpack.c.l.b16 %v306
        %v402 = vpack.c.b16 %v395, %v394
        %v403 = vpack.c.b16 %v397, %v396
        %v404 = vpack.c.b16 %v399, %v398
        %v405 = vpack.c.b16 %v401, %v400
        %v411 = vsel %vm342, %v298, 0
        %413 = vmatprep.subr.bf16.mxu0 0
        %414 = vmatpush1.bf16.msra.mxu0 0
        %415 = vmatprep.subr.bf16.mxu0 0
        %416 = vmatpush1.bf16.msra.mxu0 0
        %417 = vmatprep.subr.bf16.mxu0 0
        %418 = vmatpush1.bf16.msra.mxu0 0
        %419 = vmatprep.subr.bf16.mxu0 0
        %420 = vmatpush1.bf16.msra.mxu0 0
        %421 = vmatprep.subr.bf16.mxu0 0
        %422 = vmatpush1.bf16.msra.mxu0 %v405
        %423 = vmatprep.subr.bf16.mxu0 0
        %424 = vmatpush1.bf16.msra.mxu0 %v404
        %425 = vmatprep.subr.bf16.mxu0 0
        %426 = vmatpush1.bf16.msra.mxu0 %v403
        %427 = vmatprep.subr.bf16.mxu0 0
        %428 = vmatpush1.bf16.msra.mxu0 %v402
        %429 = vmatprep.subr.bf16.mxu0 0
        %430 = vmatpush2.bf16.msra.mxu0 0
        %431 = vmatprep.subr.bf16.mxu0 0
        %432 = vmatpush2.bf16.msra.mxu0 0
        %433 = vmatprep.subr.bf16.mxu0 0
        %434 = vmatpush2.bf16.msra.mxu0 0
        %435 = vmatprep.subr.bf16.mxu0 0
        %436 = vmatpush2.bf16.msra.mxu0 0
        %437 = vmatprep.subr.bf16.mxu0 0
        %438 = vmatpush2.bf16.msra.mxu0 0
        %439 = vmatprep.subr.bf16.mxu0 0
        %440 = vmatpush2.bf16.msra.mxu0 0
        %441 = vmatprep.subr.bf16.mxu0 0
        %442 = vmatpush2.bf16.msra.mxu0 0
        %443 = vmatprep.subr.bf16.mxu0 0
        %444 = vmatpush2.bf16.msra.mxu0 0
        %445 = vmatprep.mubr.bf16.mxu0 0
        %446 = vmatmul.mubr.bf16.gmra.mxu0 %v411
        %v447 = vpop.f32.mrf.mxu0
        %v448 = vadd.f32 %v381, %v447
        %v449 = vpop.f32.mrf.mxu0
        %v450 = vpop.f32.mrf.mxu0
        %v451 = vpop.f32.mrf.mxu0
        %452 = vdwg.mxu0
        %s453 = scalar_lea.vmem %s273, 4 [#allocation2]
        %v454 = vld [vmem:[%s453] sm:$0x3]
        %s455 = scalar_lea.vmem %s1, 64
        %v456 = vld [vmem:[%s455] sm:$0xf]
        %v457 = vld [vmem:[%s455 + $0x4] sm:$0xf]
        %v458 = vld [vmem:[%s455 + $0x8] sm:$0xf]
        %v459 = vld [vmem:[%s455 + $0xc] sm:$0xf]
        %v460 = vld [vmem:[%s455 + $0x10] sm:$0xf]
        %v461 = vld [vmem:[%s455 + $0x14] sm:$0xf]
        %v462 = vld [vmem:[%s455 + $0x18] sm:$0xf]
        %v463 = vld [vmem:[%s455 + $0x1c] sm:$0xf]
        %v472 = vunpack.c.l.b16 %v456
        %v473 = vunpack.c.l.b16 %v457
        %v474 = vunpack.c.l.b16 %v458
        %v475 = vunpack.c.l.b16 %v459
        %v476 = vunpack.c.l.b16 %v460
        %v477 = vunpack.c.l.b16 %v461
        %v478 = vunpack.c.l.b16 %v462
        %v479 = vunpack.c.l.b16 %v463
        %v480 = vpack.c.b16 %v473, %v472
        %v481 = vpack.c.b16 %v475, %v474
        %v482 = vpack.c.b16 %v477, %v476
        %v483 = vpack.c.b16 %v479, %v478
        %v489 = vsel %vm342, %v454, 0
        %491 = vmatprep.subr.bf16.mxu0 0
        %492 = vmatpush1.bf16.msra.mxu0 0
        %493 = vmatprep.subr.bf16.mxu0 0
        %494 = vmatpush1.bf16.msra.mxu0 0
        %495 = vmatprep.subr.bf16.mxu0 0
        %496 = vmatpush1.bf16.msra.mxu0 0
        %497 = vmatprep.subr.bf16.mxu0 0
        %498 = vmatpush1.bf16.msra.mxu0 0
        %499 = vmatprep.subr.bf16.mxu0 0
        %500 = vmatpush1.bf16.msra.mxu0 %v483
        %501 = vmatprep.subr.bf16.mxu0 0
        %502 = vmatpush1.bf16.msra.mxu0 %v482
        %503 = vmatprep.subr.bf16.mxu0 0
        %504 = vmatpush1.bf16.msra.mxu0 %v481
        %505 = vmatprep.subr.bf16.mxu0 0
        %506 = vmatpush1.bf16.msra.mxu0 %v480
        %507 = vmatprep.subr.bf16.mxu0 0
        %508 = vmatpush2.bf16.msra.mxu0 0
        %509 = vmatprep.subr.bf16.mxu0 0
        %510 = vmatpush2.bf16.msra.mxu0 0
        %511 = vmatprep.subr.bf16.mxu0 0
        %512 = vmatpush2.bf16.msra.mxu0 0
        %513 = vmatprep.subr.bf16.mxu0 0
        %514 = vmatpush2.bf16.msra.mxu0 0
        %515 = vmatprep.subr.bf16.mxu0 0
        %516 = vmatpush2.bf16.msra.mxu0 0
        %517 = vmatprep.subr.bf16.mxu0 0
        %518 = vmatpush2.bf16.msra.mxu0 0
        %519 = vmatprep.subr.bf16.mxu0 0
        %520 = vmatpush2.bf16.msra.mxu0 0
        %521 = vmatprep.subr.bf16.mxu0 0
        %522 = vmatpush2.bf16.msra.mxu0 0
        %523 = vmatprep.mubr.bf16.mxu0 0
        %524 = vmatmul.mubr.bf16.gmra.mxu0 %v489
        %v525 = vpop.f32.mrf.mxu0
        %v526 = vadd.f32 0.0, %v525
        %v527 = vpop.f32.mrf.mxu0
        %v528 = vpop.f32.mrf.mxu0
        %v529 = vpop.f32.mrf.mxu0
        %530 = vdwg.mxu0
        %v531 = vadd.f32 %v448, %v526
        %s532 = scalar_lea.vmem %s273, 6 [#allocation2]
        %v533 = vld [vmem:[%s532] sm:$0x3]
        %s534 = scalar_lea.vmem %s1, 96
        %v535 = vld [vmem:[%s534] sm:$0xf]
        %v536 = vld [vmem:[%s534 + $0x4] sm:$0xf]
        %v537 = vld [vmem:[%s534 + $0x8] sm:$0xf]
        %v538 = vld [vmem:[%s534 + $0xc] sm:$0xf]
        %v539 = vld [vmem:[%s534 + $0x10] sm:$0xf]
        %v540 = vld [vmem:[%s534 + $0x14] sm:$0xf]
        %v541 = vld [vmem:[%s534 + $0x18] sm:$0xf]
        %v542 = vld [vmem:[%s534 + $0x1c] sm:$0xf]
        %v551 = vunpack.c.l.b16 %v535
        %v552 = vunpack.c.l.b16 %v536
        %v553 = vunpack.c.l.b16 %v537
        %v554 = vunpack.c.l.b16 %v538
        %v555 = vunpack.c.l.b16 %v539
        %v556 = vunpack.c.l.b16 %v540
        %v557 = vunpack.c.l.b16 %v541
        %v558 = vunpack.c.l.b16 %v542
        %v559 = vpack.c.b16 %v552, %v551
        %v560 = vpack.c.b16 %v554, %v553
        %v561 = vpack.c.b16 %v556, %v555
        %v562 = vpack.c.b16 %v558, %v557
        %v568 = vsel %vm342, %v533, 0
        %570 = vmatprep.subr.bf16.mxu0 0
        %571 = vmatpush1.bf16.msra.mxu0 0
        %572 = vmatprep.subr.bf16.mxu0 0
        %573 = vmatpush1.bf16.msra.mxu0 0
        %574 = vmatprep.subr.bf16.mxu0 0
        %575 = vmatpush1.bf16.msra.mxu0 0
        %576 = vmatprep.subr.bf16.mxu0 0
        %577 = vmatpush1.bf16.msra.mxu0 0
        %578 = vmatprep.subr.bf16.mxu0 0
        %579 = vmatpush1.bf16.msra.mxu0 %v562
        %580 = vmatprep.subr.bf16.mxu0 0
        %581 = vmatpush1.bf16.msra.mxu0 %v561
        %582 = vmatprep.subr.bf16.mxu0 0
        %583 = vmatpush1.bf16.msra.mxu0 %v560
        %584 = vmatprep.subr.bf16.mxu0 0
        %585 = vmatpush1.bf16.msra.mxu0 %v559
        %586 = vmatprep.subr.bf16.mxu0 0
        %587 = vmatpush2.bf16.msra.mxu0 0
        %588 = vmatprep.subr.bf16.mxu0 0
        %589 = vmatpush2.bf16.msra.mxu0 0
        %590 = vmatprep.subr.bf16.mxu0 0
        %591 = vmatpush2.bf16.msra.mxu0 0
        %592 = vmatprep.subr.bf16.mxu0 0
        %593 = vmatpush2.bf16.msra.mxu0 0
        %594 = vmatprep.subr.bf16.mxu0 0
        %595 = vmatpush2.bf16.msra.mxu0 0
        %596 = vmatprep.subr.bf16.mxu0 0
        %597 = vmatpush2.bf16.msra.mxu0 0
        %598 = vmatprep.subr.bf16.mxu0 0
        %599 = vmatpush2.bf16.msra.mxu0 0
        %600 = vmatprep.subr.bf16.mxu0 0
        %601 = vmatpush2.bf16.msra.mxu0 0
        %602 = vmatprep.mubr.bf16.mxu0 0
        %603 = vmatmul.mubr.bf16.gmra.mxu0 %v568
        %v604 = vpop.f32.mrf.mxu0
        %v605 = vadd.f32 0.0, %v604
        %v606 = vpop.f32.mrf.mxu0
        %v607 = vpop.f32.mrf.mxu0
        %v608 = vpop.f32.mrf.mxu0
        %609 = vdwg.mxu0
        %v610 = vadd.f32 %v531, %v605
        %s611 = scalar_lea.vmem %s273, 8 [#allocation2]
        %v612 = vld [vmem:[%s611] sm:$0x3]
        %s613 = scalar_lea.vmem %s1, 128
        %v614 = vld [vmem:[%s613] sm:$0xf]
        %v615 = vld [vmem:[%s613 + $0x4] sm:$0xf]
        %v616 = vld [vmem:[%s613 + $0x8] sm:$0xf]
        %v617 = vld [vmem:[%s613 + $0xc] sm:$0xf]
        %v618 = vld [vmem:[%s613 + $0x10] sm:$0xf]
        %v619 = vld [vmem:[%s613 + $0x14] sm:$0xf]
        %v620 = vld [vmem:[%s613 + $0x18] sm:$0xf]
        %v621 = vld [vmem:[%s613 + $0x1c] sm:$0xf]
        %v630 = vunpack.c.l.b16 %v614
        %v631 = vunpack.c.l.b16 %v615
        %v632 = vunpack.c.l.b16 %v616
        %v633 = vunpack.c.l.b16 %v617
        %v634 = vunpack.c.l.b16 %v618
        %v635 = vunpack.c.l.b16 %v619
        %v636 = vunpack.c.l.b16 %v620
        %v637 = vunpack.c.l.b16 %v621
        %v638 = vpack.c.b16 %v631, %v630
        %v639 = vpack.c.b16 %v633, %v632
        %v640 = vpack.c.b16 %v635, %v634
        %v641 = vpack.c.b16 %v637, %v636
        %v647 = vsel %vm342, %v612, 0
        %649 = vmatprep.subr.bf16.mxu0 0
        %650 = vmatpush1.bf16.msra.mxu0 0
        %651 = vmatprep.subr.bf16.mxu0 0
        %652 = vmatpush1.bf16.msra.mxu0 0
        %653 = vmatprep.subr.bf16.mxu0 0
        %654 = vmatpush1.bf16.msra.mxu0 0
        %655 = vmatprep.subr.bf16.mxu0 0
        %656 = vmatpush1.bf16.msra.mxu0 0
        %657 = vmatprep.subr.bf16.mxu0 0
        %658 = vmatpush1.bf16.msra.mxu0 %v641
        %659 = vmatprep.subr.bf16.mxu0 0
        %660 = vmatpush1.bf16.msra.mxu0 %v640
        %661 = vmatprep.subr.bf16.mxu0 0
        %662 = vmatpush1.bf16.msra.mxu0 %v639
        %663 = vmatprep.subr.bf16.mxu0 0
        %664 = vmatpush1.bf16.msra.mxu0 %v638
        %665 = vmatprep.subr.bf16.mxu0 0
        %666 = vmatpush2.bf16.msra.mxu0 0
        %667 = vmatprep.subr.bf16.mxu0 0
        %668 = vmatpush2.bf16.msra.mxu0 0
        %669 = vmatprep.subr.bf16.mxu0 0
        %670 = vmatpush2.bf16.msra.mxu0 0
        %671 = vmatprep.subr.bf16.mxu0 0
        %672 = vmatpush2.bf16.msra.mxu0 0
        %673 = vmatprep.subr.bf16.mxu0 0
        %674 = vmatpush2.bf16.msra.mxu0 0
        %675 = vmatprep.subr.bf16.mxu0 0
        %676 = vmatpush2.bf16.msra.mxu0 0
        %677 = vmatprep.subr.bf16.mxu0 0
        %678 = vmatpush2.bf16.msra.mxu0 0
        %679 = vmatprep.subr.bf16.mxu0 0
        %680 = vmatpush2.bf16.msra.mxu0 0
        %681 = vmatprep.mubr.bf16.mxu0 0
        %682 = vmatmul.mubr.bf16.gmra.mxu0 %v647
        %v683 = vpop.f32.mrf.mxu0
        %v684 = vadd.f32 0.0, %v683
        %v685 = vpop.f32.mrf.mxu0
        %v686 = vpop.f32.mrf.mxu0
        %v687 = vpop.f32.mrf.mxu0
        %688 = vdwg.mxu0
        %v689 = vadd.f32 %v610, %v684
        %s690 = scalar_lea.vmem %s273, 10 [#allocation2]
        %v691 = vld [vmem:[%s690] sm:$0x3]
        %s692 = scalar_lea.vmem %s1, 160
        %v693 = vld [vmem:[%s692] sm:$0xf]
        %v694 = vld [vmem:[%s692 + $0x4] sm:$0xf]
        %v695 = vld [vmem:[%s692 + $0x8] sm:$0xf]
        %v696 = vld [vmem:[%s692 + $0xc] sm:$0xf]
        %v697 = vld [vmem:[%s692 + $0x10] sm:$0xf]
        %v698 = vld [vmem:[%s692 + $0x14] sm:$0xf]
        %v699 = vld [vmem:[%s692 + $0x18] sm:$0xf]
        %v700 = vld [vmem:[%s692 + $0x1c] sm:$0xf]
        %v709 = vunpack.c.l.b16 %v693
        %v710 = vunpack.c.l.b16 %v694
        %v711 = vunpack.c.l.b16 %v695
        %v712 = vunpack.c.l.b16 %v696
        %v713 = vunpack.c.l.b16 %v697
        %v714 = vunpack.c.l.b16 %v698
        %v715 = vunpack.c.l.b16 %v699
        %v716 = vunpack.c.l.b16 %v700
        %v717 = vpack.c.b16 %v710, %v709
        %v718 = vpack.c.b16 %v712, %v711
        %v719 = vpack.c.b16 %v714, %v713
        %v720 = vpack.c.b16 %v716, %v715
        %v726 = vsel %vm342, %v691, 0
        %728 = vmatprep.subr.bf16.mxu0 0
        %729 = vmatpush1.bf16.msra.mxu0 0
        %730 = vmatprep.subr.bf16.mxu0 0
        %731 = vmatpush1.bf16.msra.mxu0 0
        %732 = vmatprep.subr.bf16.mxu0 0
        %733 = vmatpush1.bf16.msra.mxu0 0
        %734 = vmatprep.subr.bf16.mxu0 0
        %735 = vmatpush1.bf16.msra.mxu0 0
        %736 = vmatprep.subr.bf16.mxu0 0
        %737 = vmatpush1.bf16.msra.mxu0 %v720
        %738 = vmatprep.subr.bf16.mxu0 0
        %739 = vmatpush1.bf16.msra.mxu0 %v719
        %740 = vmatprep.subr.bf16.mxu0 0
        %741 = vmatpush1.bf16.msra.mxu0 %v718
        %742 = vmatprep.subr.bf16.mxu0 0
        %743 = vmatpush1.bf16.msra.mxu0 %v717
        %744 = vmatprep.subr.bf16.mxu0 0
        %745 = vmatpush2.bf16.msra.mxu0 0
        %746 = vmatprep.subr.bf16.mxu0 0
        %747 = vmatpush2.bf16.msra.mxu0 0
        %748 = vmatprep.subr.bf16.mxu0 0
        %749 = vmatpush2.bf16.msra.mxu0 0
        %750 = vmatprep.subr.bf16.mxu0 0
        %751 = vmatpush2.bf16.msra.mxu0 0
        %752 = vmatprep.subr.bf16.mxu0 0
        %753 = vmatpush2.bf16.msra.mxu0 0
        %754 = vmatprep.subr.bf16.mxu0 0
        %755 = vmatpush2.bf16.msra.mxu0 0
        %756 = vmatprep.subr.bf16.mxu0 0
        %757 = vmatpush2.bf16.msra.mxu0 0
        %758 = vmatprep.subr.bf16.mxu0 0
        %759 = vmatpush2.bf16.msra.mxu0 0
        %760 = vmatprep.mubr.bf16.mxu0 0
        %761 = vmatmul.mubr.bf16.gmra.mxu0 %v726
        %v762 = vpop.f32.mrf.mxu0
        %v763 = vadd.f32 0.0, %v762
        %v764 = vpop.f32.mrf.mxu0
        %v765 = vpop.f32.mrf.mxu0
        %v766 = vpop.f32.mrf.mxu0
        %767 = vdwg.mxu0
        %v768 = vadd.f32 %v689, %v763
        %s769 = scalar_lea.vmem %s273, 12 [#allocation2]
        %v770 = vld [vmem:[%s769] sm:$0x3]
        %s771 = scalar_lea.vmem %s1, 192
        %v772 = vld [vmem:[%s771] sm:$0xf]
        %v773 = vld [vmem:[%s771 + $0x4] sm:$0xf]
        %v774 = vld [vmem:[%s771 + $0x8] sm:$0xf]
        %v775 = vld [vmem:[%s771 + $0xc] sm:$0xf]
        %v776 = vld [vmem:[%s771 + $0x10] sm:$0xf]
        %v777 = vld [vmem:[%s771 + $0x14] sm:$0xf]
        %v778 = vld [vmem:[%s771 + $0x18] sm:$0xf]
        %v779 = vld [vmem:[%s771 + $0x1c] sm:$0xf]
        %v788 = vunpack.c.l.b16 %v772
        %v789 = vunpack.c.l.b16 %v773
        %v790 = vunpack.c.l.b16 %v774
        %v791 = vunpack.c.l.b16 %v775
        %v792 = vunpack.c.l.b16 %v776
        %v793 = vunpack.c.l.b16 %v777
        %v794 = vunpack.c.l.b16 %v778
        %v795 = vunpack.c.l.b16 %v779
        %v796 = vpack.c.b16 %v789, %v788
        %v797 = vpack.c.b16 %v791, %v790
        %v798 = vpack.c.b16 %v793, %v792
        %v799 = vpack.c.b16 %v795, %v794
        %v805 = vsel %vm342, %v770, 0
        %807 = vmatprep.subr.bf16.mxu0 0
        %808 = vmatpush1.bf16.msra.mxu0 0
        %809 = vmatprep.subr.bf16.mxu0 0
        %810 = vmatpush1.bf16.msra.mxu0 0
        %811 = vmatprep.subr.bf16.mxu0 0
        %812 = vmatpush1.bf16.msra.mxu0 0
        %813 = vmatprep.subr.bf16.mxu0 0
        %814 = vmatpush1.bf16.msra.mxu0 0
        %815 = vmatprep.subr.bf16.mxu0 0
        %816 = vmatpush1.bf16.msra.mxu0 %v799
        %817 = vmatprep.subr.bf16.mxu0 0
        %818 = vmatpush1.bf16.msra.mxu0 %v798
        %819 = vmatprep.subr.bf16.mxu0 0
        %820 = vmatpush1.bf16.msra.mxu0 %v797
        %821 = vmatprep.subr.bf16.mxu0 0
        %822 = vmatpush1.bf16.msra.mxu0 %v796
        %823 = vmatprep.subr.bf16.mxu0 0
        %824 = vmatpush2.bf16.msra.mxu0 0
        %825 = vmatprep.subr.bf16.mxu0 0
        %826 = vmatpush2.bf16.msra.mxu0 0
        %827 = vmatprep.subr.bf16.mxu0 0
        %828 = vmatpush2.bf16.msra.mxu0 0
        %829 = vmatprep.subr.bf16.mxu0 0
        %830 = vmatpush2.bf16.msra.mxu0 0
        %831 = vmatprep.subr.bf16.mxu0 0
        %832 = vmatpush2.bf16.msra.mxu0 0
        %833 = vmatprep.subr.bf16.mxu0 0
        %834 = vmatpush2.bf16.msra.mxu0 0
        %835 = vmatprep.subr.bf16.mxu0 0
        %836 = vmatpush2.bf16.msra.mxu0 0
        %837 = vmatprep.subr.bf16.mxu0 0
        %838 = vmatpush2.bf16.msra.mxu0 0
        %839 = vmatprep.mubr.bf16.mxu0 0
        %840 = vmatmul.mubr.bf16.gmra.mxu0 %v805
        %v841 = vpop.f32.mrf.mxu0
        %v842 = vadd.f32 0.0, %v841
        %v843 = vpop.f32.mrf.mxu0
        %v844 = vpop.f32.mrf.mxu0
        %v845 = vpop.f32.mrf.mxu0
        %846 = vdwg.mxu0
        %v847 = vadd.f32 %v768, %v842
        %s848 = scalar_lea.vmem %s273, 14 [#allocation2]
        %v849 = vld [vmem:[%s848] sm:$0x3]
        %s850 = scalar_lea.vmem %s1, 224
        %v851 = vld [vmem:[%s850] sm:$0xf]
        %v852 = vld [vmem:[%s850 + $0x4] sm:$0xf]
        %v853 = vld [vmem:[%s850 + $0x8] sm:$0xf]
        %v854 = vld [vmem:[%s850 + $0xc] sm:$0xf]
        %v855 = vld [vmem:[%s850 + $0x10] sm:$0xf]
        %v856 = vld [vmem:[%s850 + $0x14] sm:$0xf]
        %v857 = vld [vmem:[%s850 + $0x18] sm:$0xf]
        %v858 = vld [vmem:[%s850 + $0x1c] sm:$0xf]
        %v867 = vunpack.c.l.b16 %v851
        %v868 = vunpack.c.l.b16 %v852
        %v869 = vunpack.c.l.b16 %v853
        %v870 = vunpack.c.l.b16 %v854
        %v871 = vunpack.c.l.b16 %v855
        %v872 = vunpack.c.l.b16 %v856
        %v873 = vunpack.c.l.b16 %v857
        %v874 = vunpack.c.l.b16 %v858
        %v875 = vpack.c.b16 %v868, %v867
        %v876 = vpack.c.b16 %v870, %v869
        %v877 = vpack.c.b16 %v872, %v871
        %v878 = vpack.c.b16 %v874, %v873
        %v884 = vsel %vm342, %v849, 0
        %886 = vmatprep.subr.bf16.mxu0 0
        %887 = vmatpush1.bf16.msra.mxu0 0
        %888 = vmatprep.subr.bf16.mxu0 0
        %889 = vmatpush1.bf16.msra.mxu0 0
        %890 = vmatprep.subr.bf16.mxu0 0
        %891 = vmatpush1.bf16.msra.mxu0 0
        %892 = vmatprep.subr.bf16.mxu0 0
        %893 = vmatpush1.bf16.msra.mxu0 0
        %894 = vmatprep.subr.bf16.mxu0 0
        %895 = vmatpush1.bf16.msra.mxu0 %v878
        %896 = vmatprep.subr.bf16.mxu0 0
        %897 = vmatpush1.bf16.msra.mxu0 %v877
        %898 = vmatprep.subr.bf16.mxu0 0
        %899 = vmatpush1.bf16.msra.mxu0 %v876
        %900 = vmatprep.subr.bf16.mxu0 0
        %901 = vmatpush1.bf16.msra.mxu0 %v875
        %902 = vmatprep.subr.bf16.mxu0 0
        %903 = vmatpush2.bf16.msra.mxu0 0
        %904 = vmatprep.subr.bf16.mxu0 0
        %905 = vmatpush2.bf16.msra.mxu0 0
        %906 = vmatprep.subr.bf16.mxu0 0
        %907 = vmatpush2.bf16.msra.mxu0 0
        %908 = vmatprep.subr.bf16.mxu0 0
        %909 = vmatpush2.bf16.msra.mxu0 0
        %910 = vmatprep.subr.bf16.mxu0 0
        %911 = vmatpush2.bf16.msra.mxu0 0
        %912 = vmatprep.subr.bf16.mxu0 0
        %913 = vmatpush2.bf16.msra.mxu0 0
        %914 = vmatprep.subr.bf16.mxu0 0
        %915 = vmatpush2.bf16.msra.mxu0 0
        %916 = vmatprep.subr.bf16.mxu0 0
        %917 = vmatpush2.bf16.msra.mxu0 0
        %918 = vmatprep.mubr.bf16.mxu0 0
        %919 = vmatmul.mubr.bf16.gmra.mxu0 %v884
        %v920 = vpop.f32.mrf.mxu0
        %v921 = vadd.f32 0.0, %v920
        %v922 = vpop.f32.mrf.mxu0
        %v923 = vpop.f32.mrf.mxu0
        %v924 = vpop.f32.mrf.mxu0
        %925 = vdwg.mxu0
        %v926 = vadd.f32 %v847, %v921
        %s927 = scalar_lea.vmem %s273, 16 [#allocation2]
        %v928 = vld [vmem:[%s927] sm:$0x3]
        %s929 = scalar_lea.vmem %s1, 256
        %v930 = vld [vmem:[%s929] sm:$0xf]
        %v931 = vld [vmem:[%s929 + $0x4] sm:$0xf]
        %v932 = vld [vmem:[%s929 + $0x8] sm:$0xf]
        %v933 = vld [vmem:[%s929 + $0xc] sm:$0xf]
        %v934 = vld [vmem:[%s929 + $0x10] sm:$0xf]
        %v935 = vld [vmem:[%s929 + $0x14] sm:$0xf]
        %v936 = vld [vmem:[%s929 + $0x18] sm:$0xf]
        %v937 = vld [vmem:[%s929 + $0x1c] sm:$0xf]
        %v946 = vunpack.c.l.b16 %v930
        %v947 = vunpack.c.l.b16 %v931
        %v948 = vunpack.c.l.b16 %v932
        %v949 = vunpack.c.l.b16 %v933
        %v950 = vunpack.c.l.b16 %v934
        %v951 = vunpack.c.l.b16 %v935
        %v952 = vunpack.c.l.b16 %v936
        %v953 = vunpack.c.l.b16 %v937
        %v954 = vpack.c.b16 %v947, %v946
        %v955 = vpack.c.b16 %v949, %v948
        %v956 = vpack.c.b16 %v951, %v950
        %v957 = vpack.c.b16 %v953, %v952
        %v963 = vsel %vm342, %v928, 0
        %965 = vmatprep.subr.bf16.mxu0 0
        %966 = vmatpush1.bf16.msra.mxu0 0
        %967 = vmatprep.subr.bf16.mxu0 0
        %968 = vmatpush1.bf16.msra.mxu0 0
        %969 = vmatprep.subr.bf16.mxu0 0
        %970 = vmatpush1.bf16.msra.mxu0 0
        %971 = vmatprep.subr.bf16.mxu0 0
        %972 = vmatpush1.bf16.msra.mxu0 0
        %973 = vmatprep.subr.bf16.mxu0 0
        %974 = vmatpush1.bf16.msra.mxu0 %v957
        %975 = vmatprep.subr.bf16.mxu0 0
        %976 = vmatpush1.bf16.msra.mxu0 %v956
        %977 = vmatprep.subr.bf16.mxu0 0
        %978 = vmatpush1.bf16.msra.mxu0 %v955
        %979 = vmatprep.subr.bf16.mxu0 0
        %980 = vmatpush1.bf16.msra.mxu0 %v954
        %981 = vmatprep.subr.bf16.mxu0 0
        %982 = vmatpush2.bf16.msra.mxu0 0
        %983 = vmatprep.subr.bf16.mxu0 0
        %984 = vmatpush2.bf16.msra.mxu0 0
        %985 = vmatprep.subr.bf16.mxu0 0
        %986 = vmatpush2.bf16.msra.mxu0 0
        %987 = vmatprep.subr.bf16.mxu0 0
        %988 = vmatpush2.bf16.msra.mxu0 0
        %989 = vmatprep.subr.bf16.mxu0 0
        %990 = vmatpush2.bf16.msra.mxu0 0
        %991 = vmatprep.subr.bf16.mxu0 0
        %992 = vmatpush2.bf16.msra.mxu0 0
        %993 = vmatprep.subr.bf16.mxu0 0
        %994 = vmatpush2.bf16.msra.mxu0 0
        %995 = vmatprep.subr.bf16.mxu0 0
        %996 = vmatpush2.bf16.msra.mxu0 0
        %997 = vmatprep.mubr.bf16.mxu0 0
        %998 = vmatmul.mubr.bf16.gmra.mxu0 %v963
        %v999 = vpop.f32.mrf.mxu0
        %v1000 = vadd.f32 0.0, %v999
        %v1001 = vpop.f32.mrf.mxu0
        %v1002 = vpop.f32.mrf.mxu0
        %v1003 = vpop.f32.mrf.mxu0
        %1004 = vdwg.mxu0
        %v1005 = vadd.f32 %v926, %v1000
        %v1006 = vld [vmem:[%s2] sm:$0x1]
        %v1008 = vlaneseq
        %v1009 = vshrl.u32 %v1008, 7
        %v1010 = vsub.s32 0, %v1009
        %v1011 = vrot.slane %v1006, %v1010
        %v1013 = vadd.f32 %v1005, %v1011
        %v1014 = vmax.f32 %v1013, 0.0
        %vm1015 = vcmask 1043456
        %v1016 = vsel %vm1015, %v1014, 0.0
        %v1017 = vrot.slane %v1016, 4
        %v1018 = vadd.f32 %v1016, %v1017
        %v1019 = vrot.slane %v1018, 2
        %v1020 = vadd.f32 %v1018, %v1019
        %v1021 = vrot.slane %v1020, 1
        %v1022 = vadd.f32 %v1020, %v1021
        %v1023 = vrcp.pop 4.0
        %v1024 = vmul.f32 %v1022, %v1023
        %v1025 = vpack.c.bf16 %v1024, %v1024
        %v1026 = vld [vmem:[%s3] sm:$0xf]
        %v1027 = vld [vmem:[%s3 + $0x4] sm:$0xf]
        %v1028 = vld [vmem:[%s3 + $0x8] sm:$0xf]
        %v1029 = vld [vmem:[%s3 + $0xc] sm:$0xf]
        %v1030 = vld [vmem:[%s3 + $0x10] sm:$0xf]
        %v1031 = vld [vmem:[%s3 + $0x14] sm:$0xf]
        %v1032 = vld [vmem:[%s3 + $0x18] sm:$0xf]
        %v1033 = vld [vmem:[%s3 + $0x1c] sm:$0xf]
        %v1034 = vld [vmem:[%s3 + $0x20] sm:$0xf]
        %v1035 = vld [vmem:[%s3 + $0x24] sm:$0xf]
        %v1036 = vld [vmem:[%s3 + $0x28] sm:$0xf]
        %v1037 = vld [vmem:[%s3 + $0x2c] sm:$0xf]
        %v1038 = vld [vmem:[%s3 + $0x30] sm:$0xf]
        %v1039 = vld [vmem:[%s3 + $0x34] sm:$0xf]
        %v1040 = vld [vmem:[%s3 + $0x38] sm:$0xf]
        %v1041 = vld [vmem:[%s3 + $0x3c] sm:$0xf]
        %v1042 = vld [vmem:[%s4] sm:$0x1]
        %v1059 = vunpack.c.l.b16 %v1026
        %v1060 = vunpack.c.l.b16 %v1027
        %v1061 = vunpack.c.l.b16 %v1028
        %v1062 = vunpack.c.l.b16 %v1029
        %v1063 = vunpack.c.l.b16 %v1030
        %v1064 = vunpack.c.l.b16 %v1031
        %v1065 = vunpack.c.l.b16 %v1032
        %v1066 = vunpack.c.l.b16 %v1033
        %v1067 = vunpack.c.l.b16 %v1034
        %v1068 = vunpack.c.l.b16 %v1035
        %v1069 = vunpack.c.l.b16 %v1036
        %v1070 = vunpack.c.l.b16 %v1037
        %v1071 = vunpack.c.l.b16 %v1038
        %v1072 = vunpack.c.l.b16 %v1039
        %v1073 = vunpack.c.l.b16 %v1040
        %v1074 = vunpack.c.l.b16 %v1041
        %v1075 = vpack.c.b16 %v1060, %v1059
        %v1076 = vpack.c.b16 %v1062, %v1061
        %v1077 = vpack.c.b16 %v1064, %v1063
        %v1078 = vpack.c.b16 %v1066, %v1065
        %v1079 = vpack.c.b16 %v1068, %v1067
        %v1080 = vpack.c.b16 %v1070, %v1069
        %v1081 = vpack.c.b16 %v1072, %v1071
        %v1082 = vpack.c.b16 %v1074, %v1073
        %1091 = vmatprep.subr.bf16.mxu0 0
        %1092 = vmatpush1.bf16.msra.mxu0 %v1082
        %1093 = vmatprep.subr.bf16.mxu0 0
        %1094 = vmatpush1.bf16.msra.mxu0 %v1081
        %1095 = vmatprep.subr.bf16.mxu0 0
        %1096 = vmatpush1.bf16.msra.mxu0 %v1080
        %1097 = vmatprep.subr.bf16.mxu0 0
        %1098 = vmatpush1.bf16.msra.mxu0 %v1079
        %1099 = vmatprep.subr.bf16.mxu0 0
        %1100 = vmatpush1.bf16.msra.mxu0 %v1078
        %1101 = vmatprep.subr.bf16.mxu0 0
        %1102 = vmatpush1.bf16.msra.mxu0 %v1077
        %1103 = vmatprep.subr.bf16.mxu0 0
        %1104 = vmatpush1.bf16.msra.mxu0 %v1076
        %1105 = vmatprep.subr.bf16.mxu0 0
        %1106 = vmatpush1.bf16.msra.mxu0 %v1075
        %1107 = vmatprep.subr.bf16.mxu0 0
        %1108 = vmatpush2.bf16.msra.mxu0 0
        %1109 = vmatprep.subr.bf16.mxu0 0
        %1110 = vmatpush2.bf16.msra.mxu0 0
        %1111 = vmatprep.subr.bf16.mxu0 0
        %1112 = vmatpush2.bf16.msra.mxu0 0
        %1113 = vmatprep.subr.bf16.mxu0 0
        %1114 = vmatpush2.bf16.msra.mxu0 0
        %1115 = vmatprep.subr.bf16.mxu0 0
        %1116 = vmatpush2.bf16.msra.mxu0 0
        %1117 = vmatprep.subr.bf16.mxu0 0
        %1118 = vmatpush2.bf16.msra.mxu0 0
        %1119 = vmatprep.subr.bf16.mxu0 0
        %1120 = vmatpush2.bf16.msra.mxu0 0
        %1121 = vmatprep.subr.bf16.mxu0 0
        %1122 = vmatpush2.bf16.msra.mxu0 0
        %1123 = vmatprep.mubr.bf16.mxu0 0
        %1124 = vmatmul.mubr.bf16.gmra.mxu0 %v1025
        %v1125 = vpop.f32.mrf.mxu0
        %v1126 = vadd.f32 %v1042, %v1125
        %v1127 = vpop.f32.mrf.mxu0
        %v1128 = vpop.f32.mrf.mxu0
        %v1129 = vpop.f32.mrf.mxu0
        %1130 = vdwg.mxu0
        %v1131 = vtanh.pop %v1126
        %1132 = vst [vmem:[%s296] sm:$0x1] %v1131
        %s1133 = sand.u32 %s137, 1
        %s1134 = scalar_lea.sflag [#allocation4], %s1133
        %s1135 = sand.u32 %s137, 1
        %s1136 = scalar_lea.vmem [#allocation3], %s1135
        // Predicated region
        $region82: #{flexible_image_encoder.5} parent=76 // pred_check
          %p1137 = pneg %p147
        $region83: #{flexible_image_encoder.5} parent=76 // pred_check_branch
          %1139 = sbr.rel (%p1137) target = $region85
        $region84: #{flexible_image_encoder.5} parent=76 // pred_region
          %s1141 = ssub.s32 16, 16
          %1142 = vsyncadd %s1134, %s1141
          %s1143 = smul.addr %s19, 16
          %s1144 = scalar_lea.hbm %s5, %s1143
          %s1146 = sshll.u32 %s1136, 4
          %s1147 = int_to_ptr.vmem [resolvable:$true] %s1146
          %1149 = dma.vmem_to_hbm [thread:$0]  %s1147, 16, %s1144, %s1134
        $region85: #{flexible_image_encoder.5} parent=76 // pred_fallthru
          _
      $region77: #{flexible_image_encoder.5} parent=5 // pred_fallthru
        _
      %p1150 = scmp.le.s32.totalorder 2, %s14
      // Predicated region
      $region86: #{flexible_image_encoder.5} parent=5 // pred_check
        %p1151 = pneg %p1150
      $region87: #{flexible_image_encoder.5} parent=5 // pred_check_branch
        %1153 = sbr.rel (%p1151) target = $region89
      $region88: #{flexible_image_encoder.5} parent=5 // pred_region
        %s1154 = ssub.s32 %s14, 2
        // Predicated region
        $region90: #{flexible_image_encoder.5} parent=88 // pred_check
          %p1155 = pneg %p153
        $region91: #{flexible_image_encoder.5} parent=88 // pred_check_branch
          %1157 = sbr.rel (%p1155) target = $region93
        $region92: #{flexible_image_encoder.5} parent=88 // pred_region
          %s1158 = sand.u32 %s138, 1
          %s1159 = scalar_lea.sflag [#allocation4], %s1158
          %s1160 = sand.u32 %s138, 1
          %s1161 = scalar_lea.vmem [#allocation3], %s1160
          %1162 = dma.done %s1159, 16
        $region93: #{flexible_image_encoder.5} parent=88 // pred_fallthru
          _
      $region89: #{flexible_image_encoder.5} parent=5 // pred_fallthru
        _
    $region6: #{flexible_image_encoder.5} parent=1 // loop_footer
      %s18 = sadd.s32 1, %s14
    $region7: #{flexible_image_encoder.5} parent=1 // loop_footer_branch
      %13 = sbr.rel target = $region3
    $region8: #{flexible_image_encoder.5} parent=1 // loop_exit
      _
    %1163 = vsyncpa [#allocation4], 1
    %s1164 = scalar_lea.sflag [#allocation4], 1
    %1165 = vsyncpa %s1164, 1

</llo_original>
